<compile_context>
chip_gen: v7x
topology: tpu7x:2x2x1
jax: 0.10.0
libtpu: 0.0.40
codegen_flags: <defaults>
</compile_context>

<pallas_src>
import jax
import jax.numpy as jnp
from jax import lax
from jax.experimental import pallas as pl
from jax.experimental.pallas import tpu as pltpu

EPS = 1e-5
MXU_DTYPE = jnp.bfloat16            # MXU feed + intermediate storage dtype


# ------------------------------ Pallas kernels ------------------------------ #

def make_conv_stats_kernel(NB, H, W, Cin, Cout, fuse_input_bn):
    """3x3 / stride-1 / pad-1 conv over an NB-sample tile + channel sum/sumsq.

    Single MXU matmul: M = NB*H*W rows, K = 9*Cin (taps concatenated on lanes).
    im2col goes through a zero-bordered VMEM scratch; only the border is zeroed
    each step (interior is fully overwritten each step, border never written).
    If `fuse_input_bn`, an affine BN (scale, shift) + ReLU is applied to the
    input tile first (this fuses bn1 of the block into the conv2 pass).
    """
    Hp, Wp = H + 2, W + 2
    M = NB * H * W

    def _zero_border(pad_ref):
        dt = pad_ref.dtype
        zrow = jnp.zeros((NB, 1, Wp, Cin), dt)
        zcol = jnp.zeros((NB, H, 1, Cin), dt)
        pad_ref[:, 0:1, :, :] = zrow
        pad_ref[:, Hp - 1:Hp, :, :] = zrow
        pad_ref[:, 1:1 + H, 0:1, :] = zcol
        pad_ref[:, 1:1 + H, Wp - 1:Wp, :] = zcol

    def _conv_from_pad(pad_ref, w_ref):
        taps = [pad_ref[:, kh:kh + H, kw:kw + W, :]
                for kh in range(3) for kw in range(3)]
        col = jnp.concatenate(taps, axis=-1)            # (NB, H, W, 9*Cin) bf16
        col = col.reshape(M, 9 * Cin)
        return jnp.dot(col, w_ref[...], preferred_element_type=jnp.float32)

    def _emit(acc, y_ref, sum_ref, sq_ref):
        y_ref[...] = acc.reshape(NB, H, W, Cout).astype(y_ref.dtype)
        sum_ref[...] = jnp.sum(acc, axis=0).reshape(1, 1, Cout)
        sq_ref[...] = jnp.sum(acc * acc, axis=0).reshape(1, 1, Cout)

    if fuse_input_bn:
        def kernel(x_ref, scale_ref, shift_ref, w_ref,
                   y_ref, sum_ref, sq_ref, pad_ref):
            _zero_border(pad_ref)
            z = x_ref[...].astype(jnp.float32) * scale_ref[...] + shift_ref[...]
            z = jnp.maximum(z, 0.0)
            pad_ref[:, 1:1 + H, 1:1 + W, :] = z.astype(pad_ref.dtype)
            acc = _conv_from_pad(pad_ref, w_ref)
            _emit(acc, y_ref, sum_ref, sq_ref)
    else:
        def kernel(x_ref, w_ref, y_ref, sum_ref, sq_ref, pad_ref):
            _zero_border(pad_ref)
            pad_ref[:, 1:1 + H, 1:1 + W, :] = x_ref[...].astype(pad_ref.dtype)
            acc = _conv_from_pad(pad_ref, w_ref)
            _emit(acc, y_ref, sum_ref, sq_ref)

    return kernel


def make_conv_stats_phase_kernel(NB, Ho, Wo, Cin, Cout, Hh):
    """3x3 / stride-2 / pad-1 conv from a phase-decomposed (parity-split) input.

    The host splits the zero-padded input into its 4 (row, col) parity phases
    (stacked along a merged row axis of size 4*Hh), so every strided tap is a
    CONTIGUOUS slice of one phase; no strided reads in-kernel.  The 9 taps are
    concatenated into a single K = 9*Cin matmul with M = NB*Ho*Wo.
    """
    M = NB * Ho * Wo

    def kernel(ph_ref, w_ref, y_ref, sum_ref, sq_ref):
        taps = []
        for kh in range(3):
            for kw in range(3):
                base = (2 * (kh % 2) + (kw % 2)) * Hh + kh // 2
                dw = kw // 2
                taps.append(ph_ref[:, base:base + Ho, dw:dw + Wo, :])
        col = jnp.concatenate(taps, axis=-1).reshape(M, 9 * Cin)
        acc = jnp.dot(col, w_ref[...], preferred_element_type=jnp.float32)
        y_ref[...] = acc.reshape(NB, Ho, Wo, Cout).astype(y_ref.dtype)
        sum_ref[...] = jnp.sum(acc, axis=0).reshape(1, 1, Cout)
        sq_ref[...] = jnp.sum(acc * acc, axis=0).reshape(1, 1, Cout)

    return kernel


def _bn_add_relu_kernel(y_ref, scale_ref, shift_ref, res_ref, o_ref):
    """Lane-dense elementwise pass: bn2 (pre-folded affine) + shortcut + relu."""
    y = (y_ref[...].astype(jnp.float32) * scale_ref[...] + shift_ref[...]
         + res_ref[...])
    o_ref[...] = jnp.maximum(y, 0.0)


# --------------------------- pallas_call wrappers --------------------------- #

def _conv_stats_call(kernel, args, in_specs, scratch_shapes,
                     grid_len, nb, Ho, Wo, Cout, vmem_limit):
    return pl.pallas_call(
        kernel,
        out_shape=(
            jax.ShapeDtypeStruct((grid_len * nb, Ho, Wo, Cout), MXU_DTYPE),
            jax.ShapeDtypeStruct((grid_len, 1, Cout), jnp.float32),
            jax.ShapeDtypeStruct((grid_len, 1, Cout), jnp.float32),
        ),
        grid=(grid_len,),
        in_specs=list(in_specs),
        out_specs=(
            pl.BlockSpec((nb, Ho, Wo, Cout), lambda g: (g, 0, 0, 0)),
            pl.BlockSpec((1, 1, Cout), lambda g: (g, 0, 0)),
            pl.BlockSpec((1, 1, Cout), lambda g: (g, 0, 0)),
        ),
        scratch_shapes=list(scratch_shapes),
        compiler_params=pltpu.CompilerParams(
            dimension_semantics=("parallel",),
            vmem_limit_bytes=vmem_limit),
    )(*args)


def _fold_bn(sum_g, sq_g, count, gamma, beta):
    """Combine per-step sums into folded training-mode BN scale/shift (f32)."""
    s = jnp.sum(sum_g, axis=(0, 1))
    q = jnp.sum(sq_g, axis=(0, 1))
    mean = s / count
    # NOTE: E[x^2]-E[x]^2 in f32 with a clamp at 0; adequate at these
    # magnitudes.  A Welford-style combine would be more robust for
    # activations with mean >> std.
    var = jnp.maximum(q / count - mean * mean, 0.0)
    scale = gamma * lax.rsqrt(var + EPS)
    shift = beta - mean * scale
    return scale.astype(jnp.float32), shift.astype(jnp.float32)


def _phase_split(x):
    """(N, 4*Hh, Wh, C): 4 parity phases of the zero-padded input, row-stacked.

    Replaces the old 2.25x strided tap gather; every strided 3x3 tap becomes a
    contiguous slice of one phase inside the kernel.
    """
    N, H, W, C = x.shape
    xp = jnp.pad(x, ((0, 0), (1, 1 + (H % 2)), (1, 1 + (W % 2)), (0, 0)))
    Hh, Wh = xp.shape[1] // 2, xp.shape[2] // 2
    phases = [xp[:, p::2, q::2, :] for p in (0, 1) for q in (0, 1)]
    ph = jnp.stack(phases, axis=1).reshape(N, 4 * Hh, Wh, C)
    return ph, Hh, Wh


# ------------------------------ VMEM budgeting ------------------------------ #

def _vmem_caps():
    cap = 64 << 20                      # conservative default (v7x per-core)
    try:
        info = pltpu.get_tpu_info()
        cap = int(getattr(info, "vmem_capacity_bytes", cap)) or cap
    except Exception:
        pass
    budget = max(cap // 4, 8 << 20)                         # per-step working set
    limit = int(min(max(cap - (16 << 20), 32 << 20), 100 << 20))
    return budget, limit


def _per_sample_vmem_bytes(H, W, Cin, Cout):
    # Crude upper bound accounting for 128-lane padding of small channel counts
    # (pad scratch, im2col slab, f32 accumulator, double-buffered in/out tiles).
    lane = lambda c: max(c, 128)
    return ((H + 2) * (W + 2) * lane(Cin) * 2
            + H * W * lane(9 * Cin) * 2
            + H * W * lane(Cout) * 4
            + 4 * H * W * lane(max(Cin, Cout)) * 2)


def _choose_nb(N, per_sample_bytes, budget):
    nb = 1
    for cand in range(1, N + 1):
        if N % cand == 0 and cand * per_sample_bytes <= budget:
            nb = cand
    return nb


# ------------------------------- block forward ------------------------------ #

def basic_block_a(x_nchw, params, stride):
    in_planes = x_nchw.shape[1]
    planes = params["w1"].shape[-1]
    x = jnp.transpose(x_nchw, (0, 2, 3, 1)).astype(jnp.float32)   # NCHW -> NHWC
    N, H, W, _ = x.shape
    Ho = (H - 1) // stride + 1
    Wo = (W - 1) // stride + 1
    count = N * Ho * Wo

    budget, vmem_limit = _vmem_caps()
    nb = _choose_nb(N, _per_sample_vmem_bytes(H, W, in_planes, planes), budget)
    G = N // nb

    w1 = params["w1"].reshape(9 * in_planes, planes).astype(MXU_DTYPE)
    w2 = params["w2"].reshape(9 * planes, planes).astype(MXU_DTYPE)
    x_bf = x.astype(MXU_DTYPE)

    # ---- pass A: conv1 + per-step BN1 partial sums --------------------------
    if stride == 1:
        kern_a = make_conv_stats_kernel(nb, H, W, in_planes, planes,
                                        fuse_input_bn=False)
        in_specs_a = [
            pl.BlockSpec((nb, H, W, in_planes), lambda g: (g, 0, 0, 0)),
            pl.BlockSpec((9 * in_planes, planes), lambda g: (0, 0)),
        ]
        scratch_a = [pltpu.VMEM((nb, H + 2, W + 2, in_planes), MXU_DTYPE)]
        args_a = (x_bf, w1)
    else:
        phases, Hh, Wh = _phase_split(x_bf)
        kern_a = make_conv_stats_phase_kernel(nb, Ho, Wo, in_planes, planes, Hh)
        in_specs_a = [
            pl.BlockSpec((nb, 4 * Hh, Wh, in_planes), lambda g: (g, 0, 0, 0)),
            pl.BlockSpec((9 * in_planes, planes), lambda g: (0, 0)),
        ]
        scratch_a = []
        args_a = (phases, w1)
    y1, s1, q1 = _conv_stats_call(kern_a, args_a, in_specs_a, scratch_a,
                                  G, nb, Ho, Wo, planes, vmem_limit)
    scale1, shift1 = _fold_bn(s1, q1, count, params["g1"], params["b1"])

    # ---- pass B: bn1+relu fused into conv2 + per-step BN2 partial sums ------
    kern_b = make_conv_stats_kernel(nb, Ho, Wo, planes, planes,
                                    fuse_input_bn=True)
    in_specs_b = [
        pl.BlockSpec((nb, Ho, Wo, planes), lambda g: (g, 0, 0, 0)),
        pl.BlockSpec((1, planes), lambda g: (0, 0)),
        pl.BlockSpec((1, planes), lambda g: (0, 0)),
        pl.BlockSpec((9 * planes, planes), lambda g: (0, 0)),
    ]
    scratch_b = [pltpu.VMEM((nb, Ho + 2, Wo + 2, planes), MXU_DTYPE)]
    y2, s2, q2 = _conv_stats_call(
        kern_b,
        (y1, scale1.reshape(1, planes), shift1.reshape(1, planes), w2),
        in_specs_b, scratch_b, G, nb, Ho, Wo, planes, vmem_limit)
    scale2, shift2 = _fold_bn(s2, q2, count, params["g2"], params["b2"])

    # ---- option-A shortcut (host layout glue, as in the PyTorch module) -----
    if stride != 1 or in_planes != planes:
        sc = x[:, ::2, ::2, :]
        pad = planes // 4
        sc = jnp.pad(sc, ((0, 0), (0, 0), (0, 0), (pad, pad)))
    else:
        sc = x

    # ---- pass C: bn2 + shortcut add + relu (lane-dense elementwise) ---------
    D = Ho * Wo * planes
    scale2_t = jnp.tile(scale2, Ho * Wo)      # channel-fastest, matches reshape
    shift2_t = jnp.tile(shift2, Ho * Wo)
    if D % 128 == 0:
        R, lane = D // 128, 128
    else:
        R, lane = Ho * Wo, planes             # fallback: channels stay on lanes
    y2_e = y2.reshape(N, R, lane)
    sc_e = sc.reshape(N, R, lane)
    scale_e = scale2_t.reshape(1, R, lane)
    shift_e = shift2_t.reshape(1, R, lane)

    out = pl.pallas_call(
        _bn_add_relu_kernel,
        out_shape=jax.ShapeDtypeStruct((N, R, lane), jnp.float32),
        grid=(G,),
        in_specs=[
            pl.BlockSpec((nb, R, lane), lambda g: (g, 0, 0)),
            pl.BlockSpec((1, R, lane), lambda g: (0, 0, 0)),
            pl.BlockSpec((1, R, lane), lambda g: (0, 0, 0)),
            pl.BlockSpec((nb, R, lane), lambda g: (g, 0, 0)),
        ],
        out_specs=pl.BlockSpec((nb, R, lane), lambda g: (g, 0, 0)),
        compiler_params=pltpu.CompilerParams(
            dimension_semantics=("parallel",),
            vmem_limit_bytes=vmem_limit),
    )(y2_e, scale_e, shift_e, sc_e)

    out = out.reshape(N, Ho, Wo, planes)
    return jnp.transpose(out, (0, 3, 1, 2))                       # NHWC -> NCHW


# ---------------------------- pure-JAX reference ----------------------------- #

def _ref_block(x_nchw, params, stride):
    x = jnp.transpose(x_nchw, (0, 2, 3, 1))

    def conv(a, w, s):
        return lax.conv_general_dilated(
            a, w, (s, s), ((1, 1), (1, 1)),
            dimension_numbers=("NHWC", "HWIO", "NHWC"),
            precision=lax.Precision.HIGHEST)

    def bn(y, g, b):
        mean = jnp.mean(y, axis=(0, 1, 2), keepdims=True)
        var = jnp.mean(jnp.square(y - mean), axis=(0, 1, 2), keepdims=True)
        return (y - mean) * lax.rsqrt(var + EPS) * g + b

    in_planes = x.shape[-1]
    planes = params["w1"].shape[-1]
    out = jax.nn.relu(bn(conv(x, params["w1"], stride), params["g1"], params["b1"]))
    out = bn(conv(out, params["w2"], 1), params["g2"], params["b2"])
    if stride != 1 or in_planes != planes:
        sc = x[:, ::2, ::2, :]
        pad = planes // 4
        sc = jnp.pad(sc, ((0, 0), (0, 0), (0, 0), (pad, pad)))
    else:
        sc = x
    return jnp.transpose(jax.nn.relu(out + sc), (0, 3, 1, 2))


# ----------------------------------- setup ----------------------------------- #

def init_params(key, in_planes, planes):
    k = jax.random.split(key, 6)
    return {
        "w1": 0.1 * jax.random.normal(k[0], (3, 3, in_planes, planes), jnp.float32),
        "w2": 0.1 * jax.random.normal(k[1], (3, 3, planes, planes), jnp.float32),
        "g1": 1.0 + 0.1 * jax.random.normal(k[2], (planes,), jnp.float32),
        "b1": 0.1 * jax.random.normal(k[3], (planes,), jnp.float32),
        "g2": 1.0 + 0.1 * jax.random.normal(k[4], (planes,), jnp.float32),
        "b2": 0.1 * jax.random.normal(k[5], (planes,), jnp.float32),
    }


if __name__ == "__main__":
    key = jax.random.PRNGKey(0)
    kx, kp1, kp2 = jax.random.split(key, 3)
    x = jax.random.normal(kx, (2, 4, 16, 16), jnp.float32)   # NCHW, like PyTorch

    block = jax.jit(basic_block_a, static_argnames=("stride",))

    # bf16 MXU feed + bf16 intermediates -> compare at bf16-level tolerance.
    ATOL = RTOL = 5e-2

    # Case 1: downsampling block with option-A shortcut (in=4, planes=8, stride=2)
    params_a = init_params(kp1, in_planes=4, planes=8)
    out_a = jax.block_until_ready(block(x, params_a, stride=2))
    ref_a = jax.block_until_ready(_ref_block(x, params_a, stride=2))
    assert out_a.shape == (2, 8, 8, 8)
    assert jnp.allclose(out_a, ref_a, atol=ATOL, rtol=RTOL), \
        float(jnp.max(jnp.abs(out_a - ref_a)))

    # Case 2: identity-shortcut block (in=4, planes=4, stride=1)
    params_b = init_params(kp2, in_planes=4, planes=4)
    out_b = jax.block_until_ready(block(x, params_b, stride=1))
    ref_b = jax.block_until_ready(_ref_block(x, params_b, stride=1))
    assert out_b.shape == (2, 4, 16, 16)
    assert jnp.allclose(out_b, ref_b, atol=ATOL, rtol=RTOL), \
        float(jnp.max(jnp.abs(out_b - ref_b)))

    print("KERNEL_OK")
</pallas_src>

<mosaic_0001>
module attributes {stable_mosaic.version = 11 : i64} {
  func.func @kernel(%arg0: i32, %arg1: memref<2x8x8x8xbf16, #tpu.memory_space<vmem>>, %arg2: memref<1x8xf32, #tpu.memory_space<vmem>>, %arg3: memref<1x8xf32, #tpu.memory_space<vmem>>, %arg4: memref<72x8xbf16, #tpu.memory_space<vmem>>, %arg5: memref<2x8x8x8xbf16, #tpu.memory_space<vmem>>, %arg6: memref<1x1x8xf32, #tpu.memory_space<vmem>>, %arg7: memref<1x1x8xf32, #tpu.memory_space<vmem>>, %arg8: memref<2x10x10x8xbf16, #tpu.memory_space<vmem>>) attributes {dimension_semantics = [#tpu.dimension_semantics<parallel>], iteration_bounds = array<i64: 1>, scalar_prefetch = 0 : i64, scratch_operands = 1 : i64, tpu.core_type = #tpu.core_type<tc>, window_params = [{transform_indices = @transform_0, window_bounds = array<i64: 2, 8, 8, 8>}, {pipeline_mode = #tpu.pipeline_mode<synchronous>, transform_indices = @transform_1, window_bounds = array<i64: 1, 8>}, {pipeline_mode = #tpu.pipeline_mode<synchronous>, transform_indices = @transform_2, window_bounds = array<i64: 1, 8>}, {pipeline_mode = #tpu.pipeline_mode<synchronous>, transform_indices = @transform_3, window_bounds = array<i64: 72, 8>}, {transform_indices = @transform_4, window_bounds = array<i64: 2, 8, 8, 8>}, {transform_indices = @transform_5, window_bounds = array<i64: 1, 1, 8>}, {transform_indices = @transform_6, window_bounds = array<i64: 1, 1, 8>}]} {
    %cst = arith.constant 0.000000e+00 : bf16
    %0 = vector.broadcast %cst : bf16 to vector<2x1x10x8xbf16>
    %cst_0 = arith.constant 0.000000e+00 : bf16
    %1 = vector.broadcast %cst_0 : bf16 to vector<2x8x1x8xbf16>
    %c0 = arith.constant 0 : index
    %c0_1 = arith.constant 0 : index
    %c0_2 = arith.constant 0 : index
    %c0_3 = arith.constant 0 : index
    %2 = vector.load %arg8[%c0, %c0_1, %c0_2, %c0_3] : memref<2x10x10x8xbf16, #tpu.memory_space<vmem>>, vector<2x1x10x8xbf16>
    tpu.vector_store %arg8[%c0, %c0_1, %c0_2, %c0_3], %0 {strides = array<i32>} : memref<2x10x10x8xbf16, #tpu.memory_space<vmem>>, vector<2x1x10x8xbf16>,
    %c0_4 = arith.constant 0 : index
    %c9 = arith.constant 9 : index
    %c0_5 = arith.constant 0 : index
    %c0_6 = arith.constant 0 : index
    %3 = vector.load %arg8[%c0_4, %c9, %c0_5, %c0_6] : memref<2x10x10x8xbf16, #tpu.memory_space<vmem>>, vector<2x1x10x8xbf16>
    tpu.vector_store %arg8[%c0_4, %c9, %c0_5, %c0_6], %0 {strides = array<i32>} : memref<2x10x10x8xbf16, #tpu.memory_space<vmem>>, vector<2x1x10x8xbf16>,
    %c0_7 = arith.constant 0 : index
    %c1 = arith.constant 1 : index
    %c0_8 = arith.constant 0 : index
    %c0_9 = arith.constant 0 : index
    %4 = vector.load %arg8[%c0_7, %c1, %c0_8, %c0_9] : memref<2x10x10x8xbf16, #tpu.memory_space<vmem>>, vector<2x8x1x8xbf16>
    tpu.vector_store %arg8[%c0_7, %c1, %c0_8, %c0_9], %1 {strides = array<i32>} : memref<2x10x10x8xbf16, #tpu.memory_space<vmem>>, vector<2x8x1x8xbf16>,
    %c0_10 = arith.constant 0 : index
    %c1_11 = arith.constant 1 : index
    %c9_12 = arith.constant 9 : index
    %c0_13 = arith.constant 0 : index
    %5 = vector.load %arg8[%c0_10, %c1_11, %c9_12, %c0_13] : memref<2x10x10x8xbf16, #tpu.memory_space<vmem>>, vector<2x8x1x8xbf16>
    tpu.vector_store %arg8[%c0_10, %c1_11, %c9_12, %c0_13], %1 {strides = array<i32>} : memref<2x10x10x8xbf16, #tpu.memory_space<vmem>>, vector<2x8x1x8xbf16>,
    %c0_14 = arith.constant 0 : index
    %c0_15 = arith.constant 0 : index
    %c0_16 = arith.constant 0 : index
    %c0_17 = arith.constant 0 : index
    %6 = vector.load %arg1[%c0_14, %c0_15, %c0_16, %c0_17] : memref<2x8x8x8xbf16, #tpu.memory_space<vmem>>, vector<2x8x8x8xbf16>
    %7 = arith.extf %6 : vector<2x8x8x8xbf16> to vector<2x8x8x8xf32>
    %c0_18 = arith.constant 0 : index
    %c0_19 = arith.constant 0 : index
    %8 = vector.load %arg2[%c0_18, %c0_19] : memref<1x8xf32, #tpu.memory_space<vmem>>, vector<1x8xf32>
    %9 = vector.shape_cast %8 : vector<1x8xf32> to vector<1x1x1x8xf32>
    %10 = vector.broadcast %9 : vector<1x1x1x8xf32> to vector<2x8x8x8xf32>
    %11 = arith.mulf %7, %10 : vector<2x8x8x8xf32>
    %c0_20 = arith.constant 0 : index
    %c0_21 = arith.constant 0 : index
    %12 = vector.load %arg3[%c0_20, %c0_21] : memref<1x8xf32, #tpu.memory_space<vmem>>, vector<1x8xf32>
    %13 = vector.shape_cast %12 : vector<1x8xf32> to vector<1x1x1x8xf32>
    %14 = vector.broadcast %13 : vector<1x1x1x8xf32> to vector<2x8x8x8xf32>
    %15 = arith.addf %11, %14 : vector<2x8x8x8xf32>
    %cst_22 = arith.constant 0.000000e+00 : f32
    %16 = vector.broadcast %cst_22 : f32 to vector<2x8x8x8xf32>
    %17 = arith.maximumf %15, %16 : vector<2x8x8x8xf32>
    %18 = arith.truncf %17 : vector<2x8x8x8xf32> to vector<2x8x8x8xbf16>
    %c0_23 = arith.constant 0 : index
    %c1_24 = arith.constant 1 : index
    %c1_25 = arith.constant 1 : index
    %c0_26 = arith.constant 0 : index
    %19 = vector.load %arg8[%c0_23, %c1_24, %c1_25, %c0_26] : memref<2x10x10x8xbf16, #tpu.memory_space<vmem>>, vector<2x8x8x8xbf16>
    tpu.vector_store %arg8[%c0_23, %c1_24, %c1_25, %c0_26], %18 {strides = array<i32>} : memref<2x10x10x8xbf16, #tpu.memory_space<vmem>>, vector<2x8x8x8xbf16>,
    %c0_27 = arith.constant 0 : index
    %c0_28 = arith.constant 0 : index
    %c0_29 = arith.constant 0 : index
    %c0_30 = arith.constant 0 : index
    %20 = vector.load %arg8[%c0_27, %c0_28, %c0_29, %c0_30] : memref<2x10x10x8xbf16, #tpu.memory_space<vmem>>, vector<2x8x8x8xbf16>
    %c0_31 = arith.constant 0 : index
    %c0_32 = arith.constant 0 : index
    %c1_33 = arith.constant 1 : index
    %c0_34 = arith.constant 0 : index
    %21 = vector.load %arg8[%c0_31, %c0_32, %c1_33, %c0_34] : memref<2x10x10x8xbf16, #tpu.memory_space<vmem>>, vector<2x8x8x8xbf16>
    %c0_35 = arith.constant 0 : index
    %c0_36 = arith.constant 0 : index
    %c2 = arith.constant 2 : index
    %c0_37 = arith.constant 0 : index
    %22 = vector.load %arg8[%c0_35, %c0_36, %c2, %c0_37] : memref<2x10x10x8xbf16, #tpu.memory_space<vmem>>, vector<2x8x8x8xbf16>
    %c0_38 = arith.constant 0 : index
    %c1_39 = arith.constant 1 : index
    %c0_40 = arith.constant 0 : index
    %c0_41 = arith.constant 0 : index
    %23 = vector.load %arg8[%c0_38, %c1_39, %c0_40, %c0_41] : memref<2x10x10x8xbf16, #tpu.memory_space<vmem>>, vector<2x8x8x8xbf16>
    %c0_42 = arith.constant 0 : index
    %c1_43 = arith.constant 1 : index
    %c1_44 = arith.constant 1 : index
    %c0_45 = arith.constant 0 : index
    %24 = vector.load %arg8[%c0_42, %c1_43, %c1_44, %c0_45] : memref<2x10x10x8xbf16, #tpu.memory_space<vmem>>, vector<2x8x8x8xbf16>
    %c0_46 = arith.constant 0 : index
    %c1_47 = arith.constant 1 : index
    %c2_48 = arith.constant 2 : index
    %c0_49 = arith.constant 0 : index
    %25 = vector.load %arg8[%c0_46, %c1_47, %c2_48, %c0_49] : memref<2x10x10x8xbf16, #tpu.memory_space<vmem>>, vector<2x8x8x8xbf16>
    %c0_50 = arith.constant 0 : index
    %c2_51 = arith.constant 2 : index
    %c0_52 = arith.constant 0 : index
    %c0_53 = arith.constant 0 : index
    %26 = vector.load %arg8[%c0_50, %c2_51, %c0_52, %c0_53] : memref<2x10x10x8xbf16, #tpu.memory_space<vmem>>, vector<2x8x8x8xbf16>
    %c0_54 = arith.constant 0 : index
    %c2_55 = arith.constant 2 : index
    %c1_56 = arith.constant 1 : index
    %c0_57 = arith.constant 0 : index
    %27 = vector.load %arg8[%c0_54, %c2_55, %c1_56, %c0_57] : memref<2x10x10x8xbf16, #tpu.memory_space<vmem>>, vector<2x8x8x8xbf16>
    %c0_58 = arith.constant 0 : index
    %c2_59 = arith.constant 2 : index
    %c2_60 = arith.constant 2 : index
    %c0_61 = arith.constant 0 : index
    %28 = vector.load %arg8[%c0_58, %c2_59, %c2_60, %c0_61] : memref<2x10x10x8xbf16, #tpu.memory_space<vmem>>, vector<2x8x8x8xbf16>
    %29 = tpu.concatenate %20, %21, %22, %23, %24, %25, %26, %27, %28 in 3 : vector<2x8x8x8xbf16>, vector<2x8x8x8xbf16>, vector<2x8x8x8xbf16>, vector<2x8x8x8xbf16>, vector<2x8x8x8xbf16>, vector<2x8x8x8xbf16>, vector<2x8x8x8xbf16>, vector<2x8x8x8xbf16>, vector<2x8x8x8xbf16> -> vector<2x8x8x72xbf16>
    %30 = vector.shape_cast %29 : vector<2x8x8x72xbf16> to vector<128x72xbf16>
    %c0_62 = arith.constant 0 : index
    %c0_63 = arith.constant 0 : index
    %31 = vector.load %arg4[%c0_62, %c0_63] : memref<72x8xbf16, #tpu.memory_space<vmem>>, vector<72x8xbf16>
    %cst_64 = arith.constant dense<0.000000e+00> : vector<128x8xf32>
    %32 = tpu.matmul %30, %31, %cst_64 {dimension_numbers = #tpu.dot_dimension_numbers<[1], [0], [0], [1], [0, 0, 1, 1], [], []>} : vector<128x72xbf16>, vector<72x8xbf16>, vector<128x8xf32> -> vector<128x8xf32>
    %33 = vector.shape_cast %32 : vector<128x8xf32> to vector<2x8x8x8xf32>
    %34 = arith.truncf %33 : vector<2x8x8x8xf32> to vector<2x8x8x8xbf16>
    %c0_65 = arith.constant 0 : index
    %c0_66 = arith.constant 0 : index
    %c0_67 = arith.constant 0 : index
    %c0_68 = arith.constant 0 : index
    %35 = vector.load %arg5[%c0_65, %c0_66, %c0_67, %c0_68] : memref<2x8x8x8xbf16, #tpu.memory_space<vmem>>, vector<2x8x8x8xbf16>
    tpu.vector_store %arg5[%c0_65, %c0_66, %c0_67, %c0_68], %34 {strides = array<i32>} : memref<2x8x8x8xbf16, #tpu.memory_space<vmem>>, vector<2x8x8x8xbf16>,
    %cst_69 = arith.constant dense<0.000000e+00> : vector<8xf32>
    %36 = vector.multi_reduction <add>, %32, %cst_69 [0] : vector<128x8xf32> to vector<8xf32>
    %37 = vector.shape_cast %36 : vector<8xf32> to vector<1x1x8xf32>
    %c0_70 = arith.constant 0 : index
    %c0_71 = arith.constant 0 : index
    %c0_72 = arith.constant 0 : index
    %38 = vector.load %arg6[%c0_70, %c0_71, %c0_72] : memref<1x1x8xf32, #tpu.memory_space<vmem>>, vector<1x1x8xf32>
    tpu.vector_store %arg6[%c0_70, %c0_71, %c0_72], %37 {strides = array<i32>} : memref<1x1x8xf32, #tpu.memory_space<vmem>>, vector<1x1x8xf32>,
    %39 = arith.mulf %32, %32 : vector<128x8xf32>
    %cst_73 = arith.constant dense<0.000000e+00> : vector<8xf32>
    %40 = vector.multi_reduction <add>, %39, %cst_73 [0] : vector<128x8xf32> to vector<8xf32>
    %41 = vector.shape_cast %40 : vector<8xf32> to vector<1x1x8xf32>
    %c0_74 = arith.constant 0 : index
    %c0_75 = arith.constant 0 : index
    %c0_76 = arith.constant 0 : index
    %42 = vector.load %arg7[%c0_74, %c0_75, %c0_76] : memref<1x1x8xf32, #tpu.memory_space<vmem>>, vector<1x1x8xf32>
    tpu.vector_store %arg7[%c0_74, %c0_75, %c0_76], %41 {strides = array<i32>} : memref<1x1x8xf32, #tpu.memory_space<vmem>>, vector<1x1x8xf32>,
    return
  }
  func.func @transform_0(%arg0: i32) -> (i32, i32, i32, i32) {
    %c0_i32 = arith.constant 0 : i32
    %c0_i32_0 = arith.constant 0 : i32
    %c0_i32_1 = arith.constant 0 : i32
    %c0_i32_2 = arith.constant 0 : i32
    return %arg0, %c0_i32, %c0_i32_0, %c0_i32_1 : i32, i32, i32, i32
  }
  func.func @transform_1(%arg0: i32) -> (i32, i32) {
    %c0_i32 = arith.constant 0 : i32
    %c0_i32_0 = arith.constant 0 : i32
    %c0_i32_1 = arith.constant 0 : i32
    return %c0_i32, %c0_i32_0 : i32, i32
  }
  func.func @transform_2(%arg0: i32) -> (i32, i32) {
    %c0_i32 = arith.constant 0 : i32
    %c0_i32_0 = arith.constant 0 : i32
    %c0_i32_1 = arith.constant 0 : i32
    return %c0_i32, %c0_i32_0 : i32, i32
  }
  func.func @transform_3(%arg0: i32) -> (i32, i32) {
    %c0_i32 = arith.constant 0 : i32
    %c0_i32_0 = arith.constant 0 : i32
    %c0_i32_1 = arith.constant 0 : i32
    return %c0_i32, %c0_i32_0 : i32, i32
  }
  func.func @transform_4(%arg0: i32) -> (i32, i32, i32, i32) {
    %c0_i32 = arith.constant 0 : i32
    %c0_i32_0 = arith.constant 0 : i32
    %c0_i32_1 = arith.constant 0 : i32
    %c0_i32_2 = arith.constant 0 : i32
    return %arg0, %c0_i32, %c0_i32_0, %c0_i32_1 : i32, i32, i32, i32
  }
  func.func @transform_5(%arg0: i32) -> (i32, i32, i32) {
    %c0_i32 = arith.constant 0 : i32
    %c0_i32_0 = arith.constant 0 : i32
    %c0_i32_1 = arith.constant 0 : i32
    return %arg0, %c0_i32, %c0_i32_0 : i32, i32, i32
  }
  func.func @transform_6(%arg0: i32) -> (i32, i32, i32) {
    %c0_i32 = arith.constant 0 : i32
    %c0_i32_0 = arith.constant 0 : i32
    %c0_i32_1 = arith.constant 0 : i32
    return %arg0, %c0_i32, %c0_i32_0 : i32, i32, i32
  }
}

module attributes {stable_mosaic.version = 11 : i64} {
  func.func @kernel(%arg0: i32, %arg1: memref<2x36x9x4xbf16, #tpu.memory_space<vmem>>, %arg2: memref<36x8xbf16, #tpu.memory_space<vmem>>, %arg3: memref<2x8x8x8xbf16, #tpu.memory_space<vmem>>, %arg4: memref<1x1x8xf32, #tpu.memory_space<vmem>>, %arg5: memref<1x1x8xf32, #tpu.memory_space<vmem>>) attributes {dimension_semantics = [#tpu.dimension_semantics<parallel>], iteration_bounds = array<i64: 1>, scalar_prefetch = 0 : i64, scratch_operands = 0 : i64, tpu.core_type = #tpu.core_type<tc>, window_params = [{transform_indices = @transform_0, window_bounds = array<i64: 2, 36, 9, 4>}, {pipeline_mode = #tpu.pipeline_mode<synchronous>, transform_indices = @transform_1, window_bounds = array<i64: 36, 8>}, {transform_indices = @transform_2, window_bounds = array<i64: 2, 8, 8, 8>}, {transform_indices = @transform_3, window_bounds = array<i64: 1, 1, 8>}, {transform_indices = @transform_4, window_bounds = array<i64: 1, 1, 8>}]} {
    %c0 = arith.constant 0 : index
    %c0_0 = arith.constant 0 : index
    %c0_1 = arith.constant 0 : index
    %c0_2 = arith.constant 0 : index
    %0 = vector.load %arg1[%c0, %c0_0, %c0_1, %c0_2] : memref<2x36x9x4xbf16, #tpu.memory_space<vmem>>, vector<2x8x8x4xbf16>
    %c0_3 = arith.constant 0 : index
    %c9 = arith.constant 9 : index
    %c0_4 = arith.constant 0 : index
    %c0_5 = arith.constant 0 : index
    %1 = vector.load %arg1[%c0_3, %c9, %c0_4, %c0_5] : memref<2x36x9x4xbf16, #tpu.memory_space<vmem>>, vector<2x8x8x4xbf16>
    %c0_6 = arith.constant 0 : index
    %c0_7 = arith.constant 0 : index
    %c1 = arith.constant 1 : index
    %c0_8 = arith.constant 0 : index
    %2 = vector.load %arg1[%c0_6, %c0_7, %c1, %c0_8] : memref<2x36x9x4xbf16, #tpu.memory_space<vmem>>, vector<2x8x8x4xbf16>
    %c0_9 = arith.constant 0 : index
    %c18 = arith.constant 18 : index
    %c0_10 = arith.constant 0 : index
    %c0_11 = arith.constant 0 : index
    %3 = vector.load %arg1[%c0_9, %c18, %c0_10, %c0_11] : memref<2x36x9x4xbf16, #tpu.memory_space<vmem>>, vector<2x8x8x4xbf16>
    %c0_12 = arith.constant 0 : index
    %c27 = arith.constant 27 : index
    %c0_13 = arith.constant 0 : index
    %c0_14 = arith.constant 0 : index
    %4 = vector.load %arg1[%c0_12, %c27, %c0_13, %c0_14] : memref<2x36x9x4xbf16, #tpu.memory_space<vmem>>, vector<2x8x8x4xbf16>
    %c0_15 = arith.constant 0 : index
    %c18_16 = arith.constant 18 : index
    %c1_17 = arith.constant 1 : index
    %c0_18 = arith.constant 0 : index
    %5 = vector.load %arg1[%c0_15, %c18_16, %c1_17, %c0_18] : memref<2x36x9x4xbf16, #tpu.memory_space<vmem>>, vector<2x8x8x4xbf16>
    %c0_19 = arith.constant 0 : index
    %c1_20 = arith.constant 1 : index
    %c0_21 = arith.constant 0 : index
    %c0_22 = arith.constant 0 : index
    %6 = vector.load %arg1[%c0_19, %c1_20, %c0_21, %c0_22] : memref<2x36x9x4xbf16, #tpu.memory_space<vmem>>, vector<2x8x8x4xbf16>
    %c0_23 = arith.constant 0 : index
    %c10 = arith.constant 10 : index
    %c0_24 = arith.constant 0 : index
    %c0_25 = arith.constant 0 : index
    %7 = vector.load %arg1[%c0_23, %c10, %c0_24, %c0_25] : memref<2x36x9x4xbf16, #tpu.memory_space<vmem>>, vector<2x8x8x4xbf16>
    %c0_26 = arith.constant 0 : index
    %c1_27 = arith.constant 1 : index
    %c1_28 = arith.constant 1 : index
    %c0_29 = arith.constant 0 : index
    %8 = vector.load %arg1[%c0_26, %c1_27, %c1_28, %c0_29] : memref<2x36x9x4xbf16, #tpu.memory_space<vmem>>, vector<2x8x8x4xbf16>
    %9 = tpu.concatenate %0, %1, %2, %3, %4, %5, %6, %7, %8 in 3 : vector<2x8x8x4xbf16>, vector<2x8x8x4xbf16>, vector<2x8x8x4xbf16>, vector<2x8x8x4xbf16>, vector<2x8x8x4xbf16>, vector<2x8x8x4xbf16>, vector<2x8x8x4xbf16>, vector<2x8x8x4xbf16>, vector<2x8x8x4xbf16> -> vector<2x8x8x36xbf16>
    %10 = vector.shape_cast %9 : vector<2x8x8x36xbf16> to vector<128x36xbf16>
    %c0_30 = arith.constant 0 : index
    %c0_31 = arith.constant 0 : index
    %11 = vector.load %arg2[%c0_30, %c0_31] : memref<36x8xbf16, #tpu.memory_space<vmem>>, vector<36x8xbf16>
    %cst = arith.constant dense<0.000000e+00> : vector<128x8xf32>
    %12 = tpu.matmul %10, %11, %cst {dimension_numbers = #tpu.dot_dimension_numbers<[1], [0], [0], [1], [0, 0, 1, 1], [], []>} : vector<128x36xbf16>, vector<36x8xbf16>, vector<128x8xf32> -> vector<128x8xf32>
    %13 = vector.shape_cast %12 : vector<128x8xf32> to vector<2x8x8x8xf32>
    %14 = arith.truncf %13 : vector<2x8x8x8xf32> to vector<2x8x8x8xbf16>
    %c0_32 = arith.constant 0 : index
    %c0_33 = arith.constant 0 : index
    %c0_34 = arith.constant 0 : index
    %c0_35 = arith.constant 0 : index
    %15 = vector.load %arg3[%c0_32, %c0_33, %c0_34, %c0_35] : memref<2x8x8x8xbf16, #tpu.memory_space<vmem>>, vector<2x8x8x8xbf16>
    tpu.vector_store %arg3[%c0_32, %c0_33, %c0_34, %c0_35], %14 {strides = array<i32>} : memref<2x8x8x8xbf16, #tpu.memory_space<vmem>>, vector<2x8x8x8xbf16>,
    %cst_36 = arith.constant dense<0.000000e+00> : vector<8xf32>
    %16 = vector.multi_reduction <add>, %12, %cst_36 [0] : vector<128x8xf32> to vector<8xf32>
    %17 = vector.shape_cast %16 : vector<8xf32> to vector<1x1x8xf32>
    %c0_37 = arith.constant 0 : index
    %c0_38 = arith.constant 0 : index
    %c0_39 = arith.constant 0 : index
    %18 = vector.load %arg4[%c0_37, %c0_38, %c0_39] : memref<1x1x8xf32, #tpu.memory_space<vmem>>, vector<1x1x8xf32>
    tpu.vector_store %arg4[%c0_37, %c0_38, %c0_39], %17 {strides = array<i32>} : memref<1x1x8xf32, #tpu.memory_space<vmem>>, vector<1x1x8xf32>,
    %19 = arith.mulf %12, %12 : vector<128x8xf32>
    %cst_40 = arith.constant dense<0.000000e+00> : vector<8xf32>
    %20 = vector.multi_reduction <add>, %19, %cst_40 [0] : vector<128x8xf32> to vector<8xf32>
    %21 = vector.shape_cast %20 : vector<8xf32> to vector<1x1x8xf32>
    %c0_41 = arith.constant 0 : index
    %c0_42 = arith.constant 0 : index
    %c0_43 = arith.constant 0 : index
    %22 = vector.load %arg5[%c0_41, %c0_42, %c0_43] : memref<1x1x8xf32, #tpu.memory_space<vmem>>, vector<1x1x8xf32>
    tpu.vector_store %arg5[%c0_41, %c0_42, %c0_43], %21 {strides = array<i32>} : memref<1x1x8xf32, #tpu.memory_space<vmem>>, vector<1x1x8xf32>,
    return
  }
  func.func @transform_0(%arg0: i32) -> (i32, i32, i32, i32) {
    %c0_i32 = arith.constant 0 : i32
    %c0_i32_0 = arith.constant 0 : i32
    %c0_i32_1 = arith.constant 0 : i32
    %c0_i32_2 = arith.constant 0 : i32
    return %arg0, %c0_i32, %c0_i32_0, %c0_i32_1 : i32, i32, i32, i32
  }
  func.func @transform_1(%arg0: i32) -> (i32, i32) {
    %c0_i32 = arith.constant 0 : i32
    %c0_i32_0 = arith.constant 0 : i32
    %c0_i32_1 = arith.constant 0 : i32
    return %c0_i32, %c0_i32_0 : i32, i32
  }
  func.func @transform_2(%arg0: i32) -> (i32, i32, i32, i32) {
    %c0_i32 = arith.constant 0 : i32
    %c0_i32_0 = arith.constant 0 : i32
    %c0_i32_1 = arith.constant 0 : i32
    %c0_i32_2 = arith.constant 0 : i32
    return %arg0, %c0_i32, %c0_i32_0, %c0_i32_1 : i32, i32, i32, i32
  }
  func.func @transform_3(%arg0: i32) -> (i32, i32, i32) {
    %c0_i32 = arith.constant 0 : i32
    %c0_i32_0 = arith.constant 0 : i32
    %c0_i32_1 = arith.constant 0 : i32
    return %arg0, %c0_i32, %c0_i32_0 : i32, i32, i32
  }
  func.func @transform_4(%arg0: i32) -> (i32, i32, i32) {
    %c0_i32 = arith.constant 0 : i32
    %c0_i32_0 = arith.constant 0 : i32
    %c0_i32_1 = arith.constant 0 : i32
    return %arg0, %c0_i32, %c0_i32_0 : i32, i32, i32
  }
}

module attributes {stable_mosaic.version = 11 : i64} {
  func.func @_bn_add_relu_kernel(%arg0: i32, %arg1: memref<2x4x128xbf16, #tpu.memory_space<vmem>>, %arg2: memref<1x4x128xf32, #tpu.memory_space<vmem>>, %arg3: memref<1x4x128xf32, #tpu.memory_space<vmem>>, %arg4: memref<2x4x128xf32, #tpu.memory_space<vmem>>, %arg5: memref<2x4x128xf32, #tpu.memory_space<vmem>>) attributes {dimension_semantics = [#tpu.dimension_semantics<parallel>], iteration_bounds = array<i64: 1>, scalar_prefetch = 0 : i64, scratch_operands = 0 : i64, tpu.core_type = #tpu.core_type<tc>, window_params = [{transform_indices = @transform_0, window_bounds = array<i64: 2, 4, 128>}, {pipeline_mode = #tpu.pipeline_mode<synchronous>, transform_indices = @transform_1, window_bounds = array<i64: 1, 4, 128>}, {pipeline_mode = #tpu.pipeline_mode<synchronous>, transform_indices = @transform_2, window_bounds = array<i64: 1, 4, 128>}, {transform_indices = @transform_3, window_bounds = array<i64: 2, 4, 128>}, {transform_indices = @transform_4, window_bounds = array<i64: 2, 4, 128>}]} {
    %c0 = arith.constant 0 : index
    %c0_0 = arith.constant 0 : index
    %c0_1 = arith.constant 0 : index
    %0 = vector.load %arg1[%c0, %c0_0, %c0_1] : memref<2x4x128xbf16, #tpu.memory_space<vmem>>, vector<2x4x128xbf16>
    %1 = arith.extf %0 : vector<2x4x128xbf16> to vector<2x4x128xf32>
    %c0_2 = arith.constant 0 : index
    %c0_3 = arith.constant 0 : index
    %c0_4 = arith.constant 0 : index
    %2 = vector.load %arg2[%c0_2, %c0_3, %c0_4] : memref<1x4x128xf32, #tpu.memory_space<vmem>>, vector<1x4x128xf32>
    %3 = vector.broadcast %2 : vector<1x4x128xf32> to vector<2x4x128xf32>
    %4 = arith.mulf %1, %3 : vector<2x4x128xf32>
    %c0_5 = arith.constant 0 : index
    %c0_6 = arith.constant 0 : index
    %c0_7 = arith.constant 0 : index
    %5 = vector.load %arg3[%c0_5, %c0_6, %c0_7] : memref<1x4x128xf32, #tpu.memory_space<vmem>>, vector<1x4x128xf32>
    %6 = vector.broadcast %5 : vector<1x4x128xf32> to vector<2x4x128xf32>
    %7 = arith.addf %4, %6 : vector<2x4x128xf32>
    %c0_8 = arith.constant 0 : index
    %c0_9 = arith.constant 0 : index
    %c0_10 = arith.constant 0 : index
    %8 = vector.load %arg4[%c0_8, %c0_9, %c0_10] : memref<2x4x128xf32, #tpu.memory_space<vmem>>, vector<2x4x128xf32>
    %9 = arith.addf %7, %8 : vector<2x4x128xf32>
    %cst = arith.constant 0.000000e+00 : f32
    %10 = vector.broadcast %cst : f32 to vector<2x4x128xf32>
    %11 = arith.maximumf %9, %10 : vector<2x4x128xf32>
    %c0_11 = arith.constant 0 : index
    %c0_12 = arith.constant 0 : index
    %c0_13 = arith.constant 0 : index
    %12 = vector.load %arg5[%c0_11, %c0_12, %c0_13] : memref<2x4x128xf32, #tpu.memory_space<vmem>>, vector<2x4x128xf32>
    tpu.vector_store %arg5[%c0_11, %c0_12, %c0_13], %11 {strides = array<i32>} : memref<2x4x128xf32, #tpu.memory_space<vmem>>, vector<2x4x128xf32>,
    return
  }
  func.func @transform_0(%arg0: i32) -> (i32, i32, i32) {
    %c0_i32 = arith.constant 0 : i32
    %c0_i32_0 = arith.constant 0 : i32
    %c0_i32_1 = arith.constant 0 : i32
    return %arg0, %c0_i32, %c0_i32_0 : i32, i32, i32
  }
  func.func @transform_1(%arg0: i32) -> (i32, i32, i32) {
    %c0_i32 = arith.constant 0 : i32
    %c0_i32_0 = arith.constant 0 : i32
    %c0_i32_1 = arith.constant 0 : i32
    %c0_i32_2 = arith.constant 0 : i32
    return %c0_i32, %c0_i32_0, %c0_i32_1 : i32, i32, i32
  }
  func.func @transform_2(%arg0: i32) -> (i32, i32, i32) {
    %c0_i32 = arith.constant 0 : i32
    %c0_i32_0 = arith.constant 0 : i32
    %c0_i32_1 = arith.constant 0 : i32
    %c0_i32_2 = arith.constant 0 : i32
    return %c0_i32, %c0_i32_0, %c0_i32_1 : i32, i32, i32
  }
  func.func @transform_3(%arg0: i32) -> (i32, i32, i32) {
    %c0_i32 = arith.constant 0 : i32
    %c0_i32_0 = arith.constant 0 : i32
    %c0_i32_1 = arith.constant 0 : i32
    return %arg0, %c0_i32, %c0_i32_0 : i32, i32, i32
  }
  func.func @transform_4(%arg0: i32) -> (i32, i32, i32) {
    %c0_i32 = arith.constant 0 : i32
    %c0_i32_0 = arith.constant 0 : i32
    %c0_i32_1 = arith.constant 0 : i32
    return %arg0, %c0_i32, %c0_i32_0 : i32, i32, i32
  }
}

</mosaic_0001>

<llo_original>
// kernel: basic_block_a.5
$region0: #{basic_block_a.5}
  #allocation0 [shape = 'u32[]', space=smem, size = 0x4, offset = 0x4, fixed_abs, tag = 'smem constant byte address 0x4 - core index']
  #allocation1 [shape = 'u32[144,128]{1,0:T(1,128)}', space=vmem, size = 0x12000, scoped, tag = 'internal scratch']
  %s0 = inlined_call_operand.vmem [shape: bf16[2,4,128], index: 0, kind: input, shape index: {}]
  %s1 = inlined_call_operand.vmem [shape: f32[1,4,128], index: 1, kind: input, shape index: {}]
  %s2 = inlined_call_operand.vmem [shape: f32[1,4,128], index: 2, kind: input, shape index: {}]
  %s3 = inlined_call_operand.vmem [shape: f32[2,4,128], index: 3, kind: input, shape index: {}]
  %s4 = inlined_call_operand.vmem [shape: f32[2,4,128], index: 4, kind: output, shape index: {}]
  %s5 = sld [smem:[#allocation0]]
  $region26: #{basic_block_a.5} parent=0
    _
  %s7 = ssub.s32 1, %s5
  %s8 = scalar_select 0, %s7, %s5
  // Predicated region
  $region2: #{basic_block_a.5} parent=0 // pred_check
    _
  $region3: #{basic_block_a.5} parent=0 // pred_check_branch
    %10 = sbr.rel (0) target = $region5
  $region4: #{basic_block_a.5} parent=0 // pred_region
    _
  $region5: #{basic_block_a.5} parent=0 // pred_fallthru
    _
  // Predicated region
  $region6: #{basic_block_a.5} parent=0 // pred_check
    _
  $region7: #{basic_block_a.5} parent=0 // pred_check_branch
    %12 = sbr.rel (0) target = $region9
  $region8: #{basic_block_a.5} parent=0 // pred_region
    _
  $region9: #{basic_block_a.5} parent=0 // pred_fallthru
    _
  // Predicated region
  $region10: #{basic_block_a.5} parent=0 // pred_check
    _
  $region11: #{basic_block_a.5} parent=0 // pred_check_branch
    %14 = sbr.rel (0) target = $region13
  $region12: #{basic_block_a.5} parent=0 // pred_region
    _
  $region13: #{basic_block_a.5} parent=0 // pred_fallthru
    _
  // Predicated region
  $region14: #{basic_block_a.5} parent=0 // pred_check
    _
  $region15: #{basic_block_a.5} parent=0 // pred_check_branch
    %16 = sbr.rel (0) target = $region17
  $region16: #{basic_block_a.5} parent=0 // pred_region
    _
  $region17: #{basic_block_a.5} parent=0 // pred_fallthru
    _
  %v17 = vld [vmem:[%s0] sm:$0x3]
  %v18 = vld [vmem:[%s0 + $0x2] sm:$0x3]
  %v19 = vunpack.c.l.bf16 %v17
  %v20 = vunpack.c.l.bf16 %v18
  %v21 = vld [vmem:[%s1] sm:$0xf]
  %v22 = vmul.f32 %v19, %v21
  %v23 = vmul.f32 %v20, %v21
  %v24 = vld [vmem:[%s2] sm:$0xf]
  %v25 = vadd.f32 %v22, %v24
  %v26 = vadd.f32 %v23, %v24
  %v27 = vld [vmem:[%s3] sm:$0xf]
  %v28 = vld [vmem:[%s3 + $0x4] sm:$0xf]
  %v29 = vadd.f32 %v25, %v27
  %v30 = vadd.f32 %v26, %v28
  %v31 = vmax.f32 %v29, 0.0
  %v32 = vmax.f32 %v30, 0.0
  %33 = vst [vmem:[%s4] sm:$0xf] %v31
  %34 = vst [vmem:[%s4 + $0x4] sm:$0xf] %v32
  // Predicated region
  $region18: #{basic_block_a.5} parent=0 // pred_check
    _
  $region19: #{basic_block_a.5} parent=0 // pred_check_branch
    %36 = sbr.rel (0) target = $region21
  $region20: #{basic_block_a.5} parent=0 // pred_region
    _
  $region21: #{basic_block_a.5} parent=0 // pred_fallthru
    _
  // Predicated region
  $region22: #{basic_block_a.5} parent=0 // pred_check
    _
  $region23: #{basic_block_a.5} parent=0 // pred_check_branch
    %38 = sbr.rel (0) target = $region25
  $region24: #{basic_block_a.5} parent=0 // pred_region
    _
  $region25: #{basic_block_a.5} parent=0 // pred_fallthru
    _

// kernel: basic_block_a.3
$region0: #{basic_block_a.3}
  #allocation0 [shape = 'u32[]', space=smem, size = 0x4, offset = 0x4, fixed_abs, tag = 'smem constant byte address 0x4 - core index']
  #allocation1 [shape = 'u32[144,128]{1,0:T(1,128)}', space=vmem, size = 0x12000, scoped, tag = 'internal scratch']
  %s0 = inlined_call_operand.vmem [shape: bf16[2,36,9,4], index: 0, kind: input, shape index: {}]
  %s1 = inlined_call_operand.vmem [shape: bf16[36,8], index: 1, kind: input, shape index: {}]
  %s2 = inlined_call_operand.vmem [shape: bf16[2,8,8,8], index: 2, kind: output, shape index: {0}]
  %s3 = inlined_call_operand.vmem [shape: f32[1,1,8], index: 3, kind: output, shape index: {1}]
  %s4 = inlined_call_operand.vmem [shape: f32[1,1,8], index: 4, kind: output, shape index: {2}]
  %5 = xla_tuple %s2, %s3, %s4
  %s6 = sld [smem:[#allocation0]]
  $region34: #{basic_block_a.3} parent=0
    _
  %s8 = ssub.s32 1, %s6
  %s9 = scalar_select 0, %s8, %s6
  // Predicated region
  $region2: #{basic_block_a.3} parent=0 // pred_check
    _
  $region3: #{basic_block_a.3} parent=0 // pred_check_branch
    %11 = sbr.rel (0) target = $region5
  $region4: #{basic_block_a.3} parent=0 // pred_region
    _
  $region5: #{basic_block_a.3} parent=0 // pred_fallthru
    _
  // Predicated region
  $region6: #{basic_block_a.3} parent=0 // pred_check
    _
  $region7: #{basic_block_a.3} parent=0 // pred_check_branch
    %13 = sbr.rel (0) target = $region9
  $region8: #{basic_block_a.3} parent=0 // pred_region
    _
  $region9: #{basic_block_a.3} parent=0 // pred_fallthru
    _
  %v15 = vld [vmem:[%s0] sm:$0xf]
  %v16 = vld [vmem:[%s0 + $0x8] sm:$0xf]
  %v17 = vld [vmem:[%s0 + $0x10] sm:$0xf]
  %v18 = vld [vmem:[%s0 + $0x18] sm:$0xf]
  %v19 = vld [vmem:[%s0 + $0x20] sm:$0xf]
  %v20 = vld [vmem:[%s0 + $0x28] sm:$0xf]
  %v21 = vld [vmem:[%s0 + $0x30] sm:$0xf]
  %v22 = vld [vmem:[%s0 + $0x38] sm:$0xf]
  %v23 = vld [vmem:[%s0 + $0x120] sm:$0xf]
  %v24 = vld [vmem:[%s0 + $0x128] sm:$0xf]
  %v25 = vld [vmem:[%s0 + $0x130] sm:$0xf]
  %v26 = vld [vmem:[%s0 + $0x138] sm:$0xf]
  %v27 = vld [vmem:[%s0 + $0x140] sm:$0xf]
  %v28 = vld [vmem:[%s0 + $0x148] sm:$0xf]
  %v29 = vld [vmem:[%s0 + $0x150] sm:$0xf]
  %v30 = vld [vmem:[%s0 + $0x158] sm:$0xf]
  %s31 = scalar_lea.vmem %s0, 72
  %v32 = vld [vmem:[%s31] sm:$0xf]
  %v33 = vld [vmem:[%s31 + $0x8] sm:$0xf]
  %v34 = vld [vmem:[%s31 + $0x10] sm:$0xf]
  %v35 = vld [vmem:[%s31 + $0x18] sm:$0xf]
  %v36 = vld [vmem:[%s31 + $0x20] sm:$0xf]
  %v37 = vld [vmem:[%s31 + $0x28] sm:$0xf]
  %v38 = vld [vmem:[%s31 + $0x30] sm:$0xf]
  %v39 = vld [vmem:[%s31 + $0x38] sm:$0xf]
  %v40 = vld [vmem:[%s31 + $0x120] sm:$0xf]
  %v41 = vld [vmem:[%s31 + $0x128] sm:$0xf]
  %v42 = vld [vmem:[%s31 + $0x130] sm:$0xf]
  %v43 = vld [vmem:[%s31 + $0x138] sm:$0xf]
  %v44 = vld [vmem:[%s31 + $0x140] sm:$0xf]
  %v45 = vld [vmem:[%s31 + $0x148] sm:$0xf]
  %v46 = vld [vmem:[%s31 + $0x150] sm:$0xf]
  %v47 = vld [vmem:[%s31 + $0x158] sm:$0xf]
  %v48 = vld [vmem:[%s0 + $0x4] sm:$0x1]
  %v49 = vld [vmem:[%s0 + $0xc] sm:$0x1]
  %v50 = vld [vmem:[%s0 + $0x14] sm:$0x1]
  %v51 = vld [vmem:[%s0 + $0x1c] sm:$0x1]
  %v52 = vld [vmem:[%s0 + $0x24] sm:$0x1]
  %v53 = vld [vmem:[%s0 + $0x2c] sm:$0x1]
  %v54 = vld [vmem:[%s0 + $0x34] sm:$0x1]
  %v55 = vld [vmem:[%s0 + $0x3c] sm:$0x1]
  %v56 = vld [vmem:[%s0 + $0x124] sm:$0x1]
  %v57 = vld [vmem:[%s0 + $0x12c] sm:$0x1]
  %v58 = vld [vmem:[%s0 + $0x134] sm:$0x1]
  %v59 = vld [vmem:[%s0 + $0x13c] sm:$0x1]
  %v60 = vld [vmem:[%s0 + $0x144] sm:$0x1]
  %v61 = vld [vmem:[%s0 + $0x14c] sm:$0x1]
  %v62 = vld [vmem:[%s0 + $0x154] sm:$0x1]
  %v63 = vld [vmem:[%s0 + $0x15c] sm:$0x1]
  %s64 = scalar_lea.vmem %s0, 144
  %v65 = vld [vmem:[%s64] sm:$0xf]
  %v66 = vld [vmem:[%s64 + $0x8] sm:$0xf]
  %v67 = vld [vmem:[%s64 + $0x10] sm:$0xf]
  %v68 = vld [vmem:[%s64 + $0x18] sm:$0xf]
  %v69 = vld [vmem:[%s64 + $0x20] sm:$0xf]
  %v70 = vld [vmem:[%s64 + $0x28] sm:$0xf]
  %v71 = vld [vmem:[%s64 + $0x30] sm:$0xf]
  %v72 = vld [vmem:[%s64 + $0x38] sm:$0xf]
  %v73 = vld [vmem:[%s64 + $0x120] sm:$0xf]
  %v74 = vld [vmem:[%s64 + $0x128] sm:$0xf]
  %v75 = vld [vmem:[%s64 + $0x130] sm:$0xf]
  %v76 = vld [vmem:[%s64 + $0x138] sm:$0xf]
  %v77 = vld [vmem:[%s64 + $0x140] sm:$0xf]
  %v78 = vld [vmem:[%s64 + $0x148] sm:$0xf]
  %v79 = vld [vmem:[%s64 + $0x150] sm:$0xf]
  %v80 = vld [vmem:[%s64 + $0x158] sm:$0xf]
  %s81 = scalar_lea.vmem %s0, 216
  %v82 = vld [vmem:[%s81] sm:$0xf]
  %v83 = vld [vmem:[%s81 + $0x8] sm:$0xf]
  %v84 = vld [vmem:[%s81 + $0x10] sm:$0xf]
  %v85 = vld [vmem:[%s81 + $0x18] sm:$0xf]
  %v86 = vld [vmem:[%s81 + $0x20] sm:$0xf]
  %v87 = vld [vmem:[%s81 + $0x28] sm:$0xf]
  %v88 = vld [vmem:[%s81 + $0x30] sm:$0xf]
  %v89 = vld [vmem:[%s81 + $0x38] sm:$0xf]
  %v90 = vld [vmem:[%s81 + $0x120] sm:$0xf]
  %v91 = vld [vmem:[%s81 + $0x128] sm:$0xf]
  %v92 = vld [vmem:[%s81 + $0x130] sm:$0xf]
  %v93 = vld [vmem:[%s81 + $0x138] sm:$0xf]
  %v94 = vld [vmem:[%s81 + $0x140] sm:$0xf]
  %v95 = vld [vmem:[%s81 + $0x148] sm:$0xf]
  %v96 = vld [vmem:[%s81 + $0x150] sm:$0xf]
  %v97 = vld [vmem:[%s81 + $0x158] sm:$0xf]
  %v98 = vld [vmem:[%s64 + $0x4] sm:$0x1]
  %v99 = vld [vmem:[%s64 + $0xc] sm:$0x1]
  %v100 = vld [vmem:[%s64 + $0x14] sm:$0x1]
  %v101 = vld [vmem:[%s64 + $0x1c] sm:$0x1]
  %v102 = vld [vmem:[%s64 + $0x24] sm:$0x1]
  %v103 = vld [vmem:[%s64 + $0x2c] sm:$0x1]
  %v104 = vld [vmem:[%s64 + $0x34] sm:$0x1]
  %v105 = vld [vmem:[%s64 + $0x3c] sm:$0x1]
  %v106 = vld [vmem:[%s64 + $0x124] sm:$0x1]
  %v107 = vld [vmem:[%s64 + $0x12c] sm:$0x1]
  %v108 = vld [vmem:[%s64 + $0x134] sm:$0x1]
  %v109 = vld [vmem:[%s64 + $0x13c] sm:$0x1]
  %v110 = vld [vmem:[%s64 + $0x144] sm:$0x1]
  %v111 = vld [vmem:[%s64 + $0x14c] sm:$0x1]
  %v112 = vld [vmem:[%s64 + $0x154] sm:$0x1]
  %v113 = vld [vmem:[%s64 + $0x15c] sm:$0x1]
  %s114 = scalar_lea.vmem %s0, 8
  %v115 = vld [vmem:[%s114] sm:$0xf]
  %v116 = vld [vmem:[%s114 + $0x8] sm:$0xf]
  %v117 = vld [vmem:[%s114 + $0x10] sm:$0xf]
  %v118 = vld [vmem:[%s114 + $0x18] sm:$0xf]
  %v119 = vld [vmem:[%s114 + $0x20] sm:$0xf]
  %v120 = vld [vmem:[%s114 + $0x28] sm:$0xf]
  %v121 = vld [vmem:[%s114 + $0x30] sm:$0xf]
  %v122 = vld [vmem:[%s114 + $0x38] sm:$0xf]
  %v123 = vld [vmem:[%s114 + $0x120] sm:$0xf]
  %v124 = vld [vmem:[%s114 + $0x128] sm:$0xf]
  %v125 = vld [vmem:[%s114 + $0x130] sm:$0xf]
  %v126 = vld [vmem:[%s114 + $0x138] sm:$0xf]
  %v127 = vld [vmem:[%s114 + $0x140] sm:$0xf]
  %v128 = vld [vmem:[%s114 + $0x148] sm:$0xf]
  %v129 = vld [vmem:[%s114 + $0x150] sm:$0xf]
  %v130 = vld [vmem:[%s114 + $0x158] sm:$0xf]
  %s131 = scalar_lea.vmem %s0, 80
  %v132 = vld [vmem:[%s131] sm:$0xf]
  %v133 = vld [vmem:[%s131 + $0x8] sm:$0xf]
  %v134 = vld [vmem:[%s131 + $0x10] sm:$0xf]
  %v135 = vld [vmem:[%s131 + $0x18] sm:$0xf]
  %v136 = vld [vmem:[%s131 + $0x20] sm:$0xf]
  %v137 = vld [vmem:[%s131 + $0x28] sm:$0xf]
  %v138 = vld [vmem:[%s131 + $0x30] sm:$0xf]
  %v139 = vld [vmem:[%s131 + $0x38] sm:$0xf]
  %v140 = vld [vmem:[%s131 + $0x120] sm:$0xf]
  %v141 = vld [vmem:[%s131 + $0x128] sm:$0xf]
  %v142 = vld [vmem:[%s131 + $0x130] sm:$0xf]
  %v143 = vld [vmem:[%s131 + $0x138] sm:$0xf]
  %v144 = vld [vmem:[%s131 + $0x140] sm:$0xf]
  %v145 = vld [vmem:[%s131 + $0x148] sm:$0xf]
  %v146 = vld [vmem:[%s131 + $0x150] sm:$0xf]
  %v147 = vld [vmem:[%s131 + $0x158] sm:$0xf]
  %v148 = vld [vmem:[%s114 + $0x4] sm:$0x1]
  %v149 = vld [vmem:[%s114 + $0xc] sm:$0x1]
  %v150 = vld [vmem:[%s114 + $0x14] sm:$0x1]
  %v151 = vld [vmem:[%s114 + $0x1c] sm:$0x1]
  %v152 = vld [vmem:[%s114 + $0x24] sm:$0x1]
  %v153 = vld [vmem:[%s114 + $0x2c] sm:$0x1]
  %v154 = vld [vmem:[%s114 + $0x34] sm:$0x1]
  %v155 = vld [vmem:[%s114 + $0x3c] sm:$0x1]
  %v156 = vld [vmem:[%s114 + $0x124] sm:$0x1]
  %v157 = vld [vmem:[%s114 + $0x12c] sm:$0x1]
  %v158 = vld [vmem:[%s114 + $0x134] sm:$0x1]
  %v159 = vld [vmem:[%s114 + $0x13c] sm:$0x1]
  %v160 = vld [vmem:[%s114 + $0x144] sm:$0x1]
  %v161 = vld [vmem:[%s114 + $0x14c] sm:$0x1]
  %v162 = vld [vmem:[%s114 + $0x154] sm:$0x1]
  %v163 = vld [vmem:[%s114 + $0x15c] sm:$0x1]
  %v180 = vunpack.c.l.b16 %v32
  %v181 = vunpack.c.l.b16 %v33
  %v182 = vunpack.c.l.b16 %v34
  %v183 = vunpack.c.l.b16 %v35
  %v184 = vunpack.c.l.b16 %v36
  %v185 = vunpack.c.l.b16 %v37
  %v186 = vunpack.c.l.b16 %v38
  %v187 = vunpack.c.l.b16 %v39
  %v188 = vunpack.c.l.b16 %v40
  %v189 = vunpack.c.l.b16 %v41
  %v190 = vunpack.c.l.b16 %v42
  %v191 = vunpack.c.l.b16 %v43
  %v192 = vunpack.c.l.b16 %v44
  %v193 = vunpack.c.l.b16 %v45
  %v194 = vunpack.c.l.b16 %v46
  %v195 = vunpack.c.l.b16 %v47
  %v196 = vpack.c.b16 %v180, %v180
  %v197 = vpack.c.b16 %v181, %v181
  %v198 = vpack.c.b16 %v182, %v182
  %v199 = vpack.c.b16 %v183, %v183
  %v200 = vpack.c.b16 %v184, %v184
  %v201 = vpack.c.b16 %v185, %v185
  %v202 = vpack.c.b16 %v186, %v186
  %v203 = vpack.c.b16 %v187, %v187
  %v204 = vpack.c.b16 %v188, %v188
  %v205 = vpack.c.b16 %v189, %v189
  %v206 = vpack.c.b16 %v190, %v190
  %v207 = vpack.c.b16 %v191, %v191
  %v208 = vpack.c.b16 %v192, %v192
  %v209 = vpack.c.b16 %v193, %v193
  %v210 = vpack.c.b16 %v194, %v194
  %v211 = vpack.c.b16 %v195, %v195
  %212 = vrot.lane.b32.xlu0 %v196, 4
  %v213 = vpop.permute.xlu0 %212
  %214 = vrot.lane.b32.xlu0 %v197, 4
  %v215 = vpop.permute.xlu0 %214
  %216 = vrot.lane.b32.xlu0 %v198, 4
  %v217 = vpop.permute.xlu0 %216
  %218 = vrot.lane.b32.xlu0 %v199, 4
  %v219 = vpop.permute.xlu0 %218
  %220 = vrot.lane.b32.xlu0 %v200, 4
  %v221 = vpop.permute.xlu0 %220
  %222 = vrot.lane.b32.xlu0 %v201, 4
  %v223 = vpop.permute.xlu0 %222
  %224 = vrot.lane.b32.xlu0 %v202, 4
  %v225 = vpop.permute.xlu0 %224
  %226 = vrot.lane.b32.xlu0 %v203, 4
  %v227 = vpop.permute.xlu0 %226
  %228 = vrot.lane.b32.xlu0 %v204, 4
  %v229 = vpop.permute.xlu0 %228
  %230 = vrot.lane.b32.xlu0 %v205, 4
  %v231 = vpop.permute.xlu0 %230
  %232 = vrot.lane.b32.xlu0 %v206, 4
  %v233 = vpop.permute.xlu0 %232
  %234 = vrot.lane.b32.xlu0 %v207, 4
  %v235 = vpop.permute.xlu0 %234
  %236 = vrot.lane.b32.xlu0 %v208, 4
  %v237 = vpop.permute.xlu0 %236
  %238 = vrot.lane.b32.xlu0 %v209, 4
  %v239 = vpop.permute.xlu0 %238
  %240 = vrot.lane.b32.xlu0 %v210, 4
  %v241 = vpop.permute.xlu0 %240
  %242 = vrot.lane.b32.xlu0 %v211, 4
  %v243 = vpop.permute.xlu0 %242
  %v276 = vunpack.c.l.b16 %v15
  %v277 = vunpack.c.l.b16 %v48
  %v278 = vunpack.c.l.b16 %v16
  %v279 = vunpack.c.l.b16 %v49
  %v280 = vunpack.c.l.b16 %v17
  %v281 = vunpack.c.l.b16 %v50
  %v282 = vunpack.c.l.b16 %v18
  %v283 = vunpack.c.l.b16 %v51
  %v284 = vunpack.c.l.b16 %v19
  %v285 = vunpack.c.l.b16 %v52
  %v286 = vunpack.c.l.b16 %v20
  %v287 = vunpack.c.l.b16 %v53
  %v288 = vunpack.c.l.b16 %v21
  %v289 = vunpack.c.l.b16 %v54
  %v290 = vunpack.c.l.b16 %v22
  %v291 = vunpack.c.l.b16 %v55
  %v292 = vunpack.c.l.b16 %v23
  %v293 = vunpack.c.l.b16 %v56
  %v294 = vunpack.c.l.b16 %v24
  %v295 = vunpack.c.l.b16 %v57
  %v296 = vunpack.c.l.b16 %v25
  %v297 = vunpack.c.l.b16 %v58
  %v298 = vunpack.c.l.b16 %v26
  %v299 = vunpack.c.l.b16 %v59
  %v300 = vunpack.c.l.b16 %v27
  %v301 = vunpack.c.l.b16 %v60
  %v302 = vunpack.c.l.b16 %v28
  %v303 = vunpack.c.l.b16 %v61
  %v304 = vunpack.c.l.b16 %v29
  %v305 = vunpack.c.l.b16 %v62
  %v306 = vunpack.c.l.b16 %v30
  %v307 = vunpack.c.l.b16 %v63
  %v308 = vpack.c.b16 %v277, %v276
  %v309 = vpack.c.b16 %v279, %v278
  %v310 = vpack.c.b16 %v281, %v280
  %v311 = vpack.c.b16 %v283, %v282
  %v312 = vpack.c.b16 %v285, %v284
  %v313 = vpack.c.b16 %v287, %v286
  %v314 = vpack.c.b16 %v289, %v288
  %v315 = vpack.c.b16 %v291, %v290
  %v316 = vpack.c.b16 %v293, %v292
  %v317 = vpack.c.b16 %v295, %v294
  %v318 = vpack.c.b16 %v297, %v296
  %v319 = vpack.c.b16 %v299, %v298
  %v320 = vpack.c.b16 %v301, %v300
  %v321 = vpack.c.b16 %v303, %v302
  %v322 = vpack.c.b16 %v305, %v304
  %v323 = vpack.c.b16 %v307, %v306
  %v325 = vshrl.u32 %v308, 16
  %v327 = vshll.u32 %v308, 16
  %v329 = vrot.slane %v327, 1
  %v330 = vor.u32 %v325, %v329
  %v332 = vshrl.u32 %v309, 16
  %v334 = vshll.u32 %v309, 16
  %v336 = vrot.slane %v334, 1
  %v337 = vor.u32 %v332, %v336
  %v339 = vshrl.u32 %v310, 16
  %v341 = vshll.u32 %v310, 16
  %v343 = vrot.slane %v341, 1
  %v344 = vor.u32 %v339, %v343
  %v346 = vshrl.u32 %v311, 16
  %v348 = vshll.u32 %v311, 16
  %v350 = vrot.slane %v348, 1
  %v351 = vor.u32 %v346, %v350
  %v353 = vshrl.u32 %v312, 16
  %v355 = vshll.u32 %v312, 16
  %v357 = vrot.slane %v355, 1
  %v358 = vor.u32 %v353, %v357
  %v360 = vshrl.u32 %v313, 16
  %v362 = vshll.u32 %v313, 16
  %v364 = vrot.slane %v362, 1
  %v365 = vor.u32 %v360, %v364
  %v367 = vshrl.u32 %v314, 16
  %v369 = vshll.u32 %v314, 16
  %v371 = vrot.slane %v369, 1
  %v372 = vor.u32 %v367, %v371
  %v374 = vshrl.u32 %v315, 16
  %v376 = vshll.u32 %v315, 16
  %v378 = vrot.slane %v376, 1
  %v379 = vor.u32 %v374, %v378
  %v381 = vshrl.u32 %v316, 16
  %v383 = vshll.u32 %v316, 16
  %v385 = vrot.slane %v383, 1
  %v386 = vor.u32 %v381, %v385
  %v388 = vshrl.u32 %v317, 16
  %v390 = vshll.u32 %v317, 16
  %v392 = vrot.slane %v390, 1
  %v393 = vor.u32 %v388, %v392
  %v395 = vshrl.u32 %v318, 16
  %v397 = vshll.u32 %v318, 16
  %v399 = vrot.slane %v397, 1
  %v400 = vor.u32 %v395, %v399
  %v402 = vshrl.u32 %v319, 16
  %v404 = vshll.u32 %v319, 16
  %v406 = vrot.slane %v404, 1
  %v407 = vor.u32 %v402, %v406
  %v409 = vshrl.u32 %v320, 16
  %v411 = vshll.u32 %v320, 16
  %v413 = vrot.slane %v411, 1
  %v414 = vor.u32 %v409, %v413
  %v416 = vshrl.u32 %v321, 16
  %v418 = vshll.u32 %v321, 16
  %v420 = vrot.slane %v418, 1
  %v421 = vor.u32 %v416, %v420
  %v423 = vshrl.u32 %v322, 16
  %v425 = vshll.u32 %v322, 16
  %v427 = vrot.slane %v425, 1
  %v428 = vor.u32 %v423, %v427
  %v430 = vshrl.u32 %v323, 16
  %v432 = vshll.u32 %v323, 16
  %v434 = vrot.slane %v432, 1
  %v435 = vor.u32 %v430, %v434
  %436 = vrot.lane.b32.xlu0 %v330, 8
  %v437 = vpop.permute.xlu0 %436
  %438 = vrot.lane.b32.xlu0 %v337, 8
  %v439 = vpop.permute.xlu0 %438
  %440 = vrot.lane.b32.xlu0 %v344, 8
  %v441 = vpop.permute.xlu0 %440
  %442 = vrot.lane.b32.xlu0 %v351, 8
  %v443 = vpop.permute.xlu0 %442
  %444 = vrot.lane.b32.xlu0 %v358, 8
  %v445 = vpop.permute.xlu0 %444
  %446 = vrot.lane.b32.xlu0 %v365, 8
  %v447 = vpop.permute.xlu0 %446
  %448 = vrot.lane.b32.xlu0 %v372, 8
  %v449 = vpop.permute.xlu0 %448
  %450 = vrot.lane.b32.xlu0 %v379, 8
  %v451 = vpop.permute.xlu0 %450
  %452 = vrot.lane.b32.xlu0 %v386, 8
  %v453 = vpop.permute.xlu0 %452
  %454 = vrot.lane.b32.xlu0 %v393, 8
  %v455 = vpop.permute.xlu0 %454
  %456 = vrot.lane.b32.xlu0 %v400, 8
  %v457 = vpop.permute.xlu0 %456
  %458 = vrot.lane.b32.xlu0 %v407, 8
  %v459 = vpop.permute.xlu0 %458
  %460 = vrot.lane.b32.xlu0 %v414, 8
  %v461 = vpop.permute.xlu0 %460
  %462 = vrot.lane.b32.xlu0 %v421, 8
  %v463 = vpop.permute.xlu0 %462
  %464 = vrot.lane.b32.xlu0 %v428, 8
  %v465 = vpop.permute.xlu0 %464
  %466 = vrot.lane.b32.xlu0 %v435, 8
  %v467 = vpop.permute.xlu0 %466
  %v484 = vunpack.c.l.b16 %v65
  %v485 = vunpack.c.l.b16 %v66
  %v486 = vunpack.c.l.b16 %v67
  %v487 = vunpack.c.l.b16 %v68
  %v488 = vunpack.c.l.b16 %v69
  %v489 = vunpack.c.l.b16 %v70
  %v490 = vunpack.c.l.b16 %v71
  %v491 = vunpack.c.l.b16 %v72
  %v492 = vunpack.c.l.b16 %v73
  %v493 = vunpack.c.l.b16 %v74
  %v494 = vunpack.c.l.b16 %v75
  %v495 = vunpack.c.l.b16 %v76
  %v496 = vunpack.c.l.b16 %v77
  %v497 = vunpack.c.l.b16 %v78
  %v498 = vunpack.c.l.b16 %v79
  %v499 = vunpack.c.l.b16 %v80
  %v500 = vpack.c.b16 %v484, %v484
  %v501 = vpack.c.b16 %v485, %v485
  %v502 = vpack.c.b16 %v486, %v486
  %v503 = vpack.c.b16 %v487, %v487
  %v504 = vpack.c.b16 %v488, %v488
  %v505 = vpack.c.b16 %v489, %v489
  %v506 = vpack.c.b16 %v490, %v490
  %v507 = vpack.c.b16 %v491, %v491
  %v508 = vpack.c.b16 %v492, %v492
  %v509 = vpack.c.b16 %v493, %v493
  %v510 = vpack.c.b16 %v494, %v494
  %v511 = vpack.c.b16 %v495, %v495
  %v512 = vpack.c.b16 %v496, %v496
  %v513 = vpack.c.b16 %v497, %v497
  %v514 = vpack.c.b16 %v498, %v498
  %v515 = vpack.c.b16 %v499, %v499
  %516 = vrot.lane.b32.xlu0 %v500, 12
  %v517 = vpop.permute.xlu0 %516
  %518 = vrot.lane.b32.xlu0 %v501, 12
  %v519 = vpop.permute.xlu0 %518
  %520 = vrot.lane.b32.xlu0 %v502, 12
  %v521 = vpop.permute.xlu0 %520
  %522 = vrot.lane.b32.xlu0 %v503, 12
  %v523 = vpop.permute.xlu0 %522
  %524 = vrot.lane.b32.xlu0 %v504, 12
  %v525 = vpop.permute.xlu0 %524
  %526 = vrot.lane.b32.xlu0 %v505, 12
  %v527 = vpop.permute.xlu0 %526
  %528 = vrot.lane.b32.xlu0 %v506, 12
  %v529 = vpop.permute.xlu0 %528
  %530 = vrot.lane.b32.xlu0 %v507, 12
  %v531 = vpop.permute.xlu0 %530
  %532 = vrot.lane.b32.xlu0 %v508, 12
  %v533 = vpop.permute.xlu0 %532
  %534 = vrot.lane.b32.xlu0 %v509, 12
  %v535 = vpop.permute.xlu0 %534
  %536 = vrot.lane.b32.xlu0 %v510, 12
  %v537 = vpop.permute.xlu0 %536
  %538 = vrot.lane.b32.xlu0 %v511, 12
  %v539 = vpop.permute.xlu0 %538
  %540 = vrot.lane.b32.xlu0 %v512, 12
  %v541 = vpop.permute.xlu0 %540
  %542 = vrot.lane.b32.xlu0 %v513, 12
  %v543 = vpop.permute.xlu0 %542
  %544 = vrot.lane.b32.xlu0 %v514, 12
  %v545 = vpop.permute.xlu0 %544
  %546 = vrot.lane.b32.xlu0 %v515, 12
  %v547 = vpop.permute.xlu0 %546
  %v564 = vunpack.c.l.b16 %v82
  %v565 = vunpack.c.l.b16 %v83
  %v566 = vunpack.c.l.b16 %v84
  %v567 = vunpack.c.l.b16 %v85
  %v568 = vunpack.c.l.b16 %v86
  %v569 = vunpack.c.l.b16 %v87
  %v570 = vunpack.c.l.b16 %v88
  %v571 = vunpack.c.l.b16 %v89
  %v572 = vunpack.c.l.b16 %v90
  %v573 = vunpack.c.l.b16 %v91
  %v574 = vunpack.c.l.b16 %v92
  %v575 = vunpack.c.l.b16 %v93
  %v576 = vunpack.c.l.b16 %v94
  %v577 = vunpack.c.l.b16 %v95
  %v578 = vunpack.c.l.b16 %v96
  %v579 = vunpack.c.l.b16 %v97
  %v580 = vpack.c.b16 %v564, %v564
  %v581 = vpack.c.b16 %v565, %v565
  %v582 = vpack.c.b16 %v566, %v566
  %v583 = vpack.c.b16 %v567, %v567
  %v584 = vpack.c.b16 %v568, %v568
  %v585 = vpack.c.b16 %v569, %v569
  %v586 = vpack.c.b16 %v570, %v570
  %v587 = vpack.c.b16 %v571, %v571
  %v588 = vpack.c.b16 %v572, %v572
  %v589 = vpack.c.b16 %v573, %v573
  %v590 = vpack.c.b16 %v574, %v574
  %v591 = vpack.c.b16 %v575, %v575
  %v592 = vpack.c.b16 %v576, %v576
  %v593 = vpack.c.b16 %v577, %v577
  %v594 = vpack.c.b16 %v578, %v578
  %v595 = vpack.c.b16 %v579, %v579
  %596 = vrot.lane.b32.xlu0 %v580, 16
  %v597 = vpop.permute.xlu0 %596
  %598 = vrot.lane.b32.xlu0 %v581, 16
  %v599 = vpop.permute.xlu0 %598
  %600 = vrot.lane.b32.xlu0 %v582, 16
  %v601 = vpop.permute.xlu0 %600
  %602 = vrot.lane.b32.xlu0 %v583, 16
  %v603 = vpop.permute.xlu0 %602
  %604 = vrot.lane.b32.xlu0 %v584, 16
  %v605 = vpop.permute.xlu0 %604
  %606 = vrot.lane.b32.xlu0 %v585, 16
  %v607 = vpop.permute.xlu0 %606
  %608 = vrot.lane.b32.xlu0 %v586, 16
  %v609 = vpop.permute.xlu0 %608
  %610 = vrot.lane.b32.xlu0 %v587, 16
  %v611 = vpop.permute.xlu0 %610
  %612 = vrot.lane.b32.xlu0 %v588, 16
  %v613 = vpop.permute.xlu0 %612
  %614 = vrot.lane.b32.xlu0 %v589, 16
  %v615 = vpop.permute.xlu0 %614
  %616 = vrot.lane.b32.xlu0 %v590, 16
  %v617 = vpop.permute.xlu0 %616
  %618 = vrot.lane.b32.xlu0 %v591, 16
  %v619 = vpop.permute.xlu0 %618
  %620 = vrot.lane.b32.xlu0 %v592, 16
  %v621 = vpop.permute.xlu0 %620
  %622 = vrot.lane.b32.xlu0 %v593, 16
  %v623 = vpop.permute.xlu0 %622
  %624 = vrot.lane.b32.xlu0 %v594, 16
  %v625 = vpop.permute.xlu0 %624
  %626 = vrot.lane.b32.xlu0 %v595, 16
  %v627 = vpop.permute.xlu0 %626
  %v644 = vunpack.c.l.b16 %v98
  %v645 = vunpack.c.l.b16 %v99
  %v646 = vunpack.c.l.b16 %v100
  %v647 = vunpack.c.l.b16 %v101
  %v648 = vunpack.c.l.b16 %v102
  %v649 = vunpack.c.l.b16 %v103
  %v650 = vunpack.c.l.b16 %v104
  %v651 = vunpack.c.l.b16 %v105
  %v652 = vunpack.c.l.b16 %v106
  %v653 = vunpack.c.l.b16 %v107
  %v654 = vunpack.c.l.b16 %v108
  %v655 = vunpack.c.l.b16 %v109
  %v656 = vunpack.c.l.b16 %v110
  %v657 = vunpack.c.l.b16 %v111
  %v658 = vunpack.c.l.b16 %v112
  %v659 = vunpack.c.l.b16 %v113
  %v660 = vpack.c.b16 %v644, %v484
  %v661 = vpack.c.b16 %v645, %v485
  %v662 = vpack.c.b16 %v646, %v486
  %v663 = vpack.c.b16 %v647, %v487
  %v664 = vpack.c.b16 %v648, %v488
  %v665 = vpack.c.b16 %v649, %v489
  %v666 = vpack.c.b16 %v650, %v490
  %v667 = vpack.c.b16 %v651, %v491
  %v668 = vpack.c.b16 %v652, %v492
  %v669 = vpack.c.b16 %v653, %v493
  %v670 = vpack.c.b16 %v654, %v494
  %v671 = vpack.c.b16 %v655, %v495
  %v672 = vpack.c.b16 %v656, %v496
  %v673 = vpack.c.b16 %v657, %v497
  %v674 = vpack.c.b16 %v658, %v498
  %v675 = vpack.c.b16 %v659, %v499
  %v677 = vshrl.u32 %v660, 16
  %v679 = vshll.u32 %v660, 16
  %v681 = vrot.slane %v679, 1
  %v682 = vor.u32 %v677, %v681
  %v684 = vshrl.u32 %v661, 16
  %v686 = vshll.u32 %v661, 16
  %v688 = vrot.slane %v686, 1
  %v689 = vor.u32 %v684, %v688
  %v691 = vshrl.u32 %v662, 16
  %v693 = vshll.u32 %v662, 16
  %v695 = vrot.slane %v693, 1
  %v696 = vor.u32 %v691, %v695
  %v698 = vshrl.u32 %v663, 16
  %v700 = vshll.u32 %v663, 16
  %v702 = vrot.slane %v700, 1
  %v703 = vor.u32 %v698, %v702
  %v705 = vshrl.u32 %v664, 16
  %v707 = vshll.u32 %v664, 16
  %v709 = vrot.slane %v707, 1
  %v710 = vor.u32 %v705, %v709
  %v712 = vshrl.u32 %v665, 16
  %v714 = vshll.u32 %v665, 16
  %v716 = vrot.slane %v714, 1
  %v717 = vor.u32 %v712, %v716
  %v719 = vshrl.u32 %v666, 16
  %v721 = vshll.u32 %v666, 16
  %v723 = vrot.slane %v721, 1
  %v724 = vor.u32 %v719, %v723
  %v726 = vshrl.u32 %v667, 16
  %v728 = vshll.u32 %v667, 16
  %v730 = vrot.slane %v728, 1
  %v731 = vor.u32 %v726, %v730
  %v733 = vshrl.u32 %v668, 16
  %v735 = vshll.u32 %v668, 16
  %v737 = vrot.slane %v735, 1
  %v738 = vor.u32 %v733, %v737
  %v740 = vshrl.u32 %v669, 16
  %v742 = vshll.u32 %v669, 16
  %v744 = vrot.slane %v742, 1
  %v745 = vor.u32 %v740, %v744
  %v747 = vshrl.u32 %v670, 16
  %v749 = vshll.u32 %v670, 16
  %v751 = vrot.slane %v749, 1
  %v752 = vor.u32 %v747, %v751
  %v754 = vshrl.u32 %v671, 16
  %v756 = vshll.u32 %v671, 16
  %v758 = vrot.slane %v756, 1
  %v759 = vor.u32 %v754, %v758
  %v761 = vshrl.u32 %v672, 16
  %v763 = vshll.u32 %v672, 16
  %v765 = vrot.slane %v763, 1
  %v766 = vor.u32 %v761, %v765
  %v768 = vshrl.u32 %v673, 16
  %v770 = vshll.u32 %v673, 16
  %v772 = vrot.slane %v770, 1
  %v773 = vor.u32 %v768, %v772
  %v775 = vshrl.u32 %v674, 16
  %v777 = vshll.u32 %v674, 16
  %v779 = vrot.slane %v777, 1
  %v780 = vor.u32 %v775, %v779
  %v782 = vshrl.u32 %v675, 16
  %v784 = vshll.u32 %v675, 16
  %v786 = vrot.slane %v784, 1
  %v787 = vor.u32 %v782, %v786
  %788 = vrot.lane.b32.xlu0 %v682, 20
  %v789 = vpop.permute.xlu0 %788
  %790 = vrot.lane.b32.xlu0 %v689, 20
  %v791 = vpop.permute.xlu0 %790
  %792 = vrot.lane.b32.xlu0 %v696, 20
  %v793 = vpop.permute.xlu0 %792
  %794 = vrot.lane.b32.xlu0 %v703, 20
  %v795 = vpop.permute.xlu0 %794
  %796 = vrot.lane.b32.xlu0 %v710, 20
  %v797 = vpop.permute.xlu0 %796
  %798 = vrot.lane.b32.xlu0 %v717, 20
  %v799 = vpop.permute.xlu0 %798
  %800 = vrot.lane.b32.xlu0 %v724, 20
  %v801 = vpop.permute.xlu0 %800
  %802 = vrot.lane.b32.xlu0 %v731, 20
  %v803 = vpop.permute.xlu0 %802
  %804 = vrot.lane.b32.xlu0 %v738, 20
  %v805 = vpop.permute.xlu0 %804
  %806 = vrot.lane.b32.xlu0 %v745, 20
  %v807 = vpop.permute.xlu0 %806
  %808 = vrot.lane.b32.xlu0 %v752, 20
  %v809 = vpop.permute.xlu0 %808
  %810 = vrot.lane.b32.xlu0 %v759, 20
  %v811 = vpop.permute.xlu0 %810
  %812 = vrot.lane.b32.xlu0 %v766, 20
  %v813 = vpop.permute.xlu0 %812
  %814 = vrot.lane.b32.xlu0 %v773, 20
  %v815 = vpop.permute.xlu0 %814
  %816 = vrot.lane.b32.xlu0 %v780, 20
  %v817 = vpop.permute.xlu0 %816
  %818 = vrot.lane.b32.xlu0 %v787, 20
  %v819 = vpop.permute.xlu0 %818
  %v836 = vunpack.c.l.b16 %v115
  %v837 = vunpack.c.l.b16 %v116
  %v838 = vunpack.c.l.b16 %v117
  %v839 = vunpack.c.l.b16 %v118
  %v840 = vunpack.c.l.b16 %v119
  %v841 = vunpack.c.l.b16 %v120
  %v842 = vunpack.c.l.b16 %v121
  %v843 = vunpack.c.l.b16 %v122
  %v844 = vunpack.c.l.b16 %v123
  %v845 = vunpack.c.l.b16 %v124
  %v846 = vunpack.c.l.b16 %v125
  %v847 = vunpack.c.l.b16 %v126
  %v848 = vunpack.c.l.b16 %v127
  %v849 = vunpack.c.l.b16 %v128
  %v850 = vunpack.c.l.b16 %v129
  %v851 = vunpack.c.l.b16 %v130
  %v852 = vpack.c.b16 %v836, %v836
  %v853 = vpack.c.b16 %v837, %v837
  %v854 = vpack.c.b16 %v838, %v838
  %v855 = vpack.c.b16 %v839, %v839
  %v856 = vpack.c.b16 %v840, %v840
  %v857 = vpack.c.b16 %v841, %v841
  %v858 = vpack.c.b16 %v842, %v842
  %v859 = vpack.c.b16 %v843, %v843
  %v860 = vpack.c.b16 %v844, %v844
  %v861 = vpack.c.b16 %v845, %v845
  %v862 = vpack.c.b16 %v846, %v846
  %v863 = vpack.c.b16 %v847, %v847
  %v864 = vpack.c.b16 %v848, %v848
  %v865 = vpack.c.b16 %v849, %v849
  %v866 = vpack.c.b16 %v850, %v850
  %v867 = vpack.c.b16 %v851, %v851
  %868 = vrot.lane.b32.xlu0 %v852, 24
  %v869 = vpop.permute.xlu0 %868
  %870 = vrot.lane.b32.xlu0 %v853, 24
  %v871 = vpop.permute.xlu0 %870
  %872 = vrot.lane.b32.xlu0 %v854, 24
  %v873 = vpop.permute.xlu0 %872
  %874 = vrot.lane.b32.xlu0 %v855, 24
  %v875 = vpop.permute.xlu0 %874
  %876 = vrot.lane.b32.xlu0 %v856, 24
  %v877 = vpop.permute.xlu0 %876
  %878 = vrot.lane.b32.xlu0 %v857, 24
  %v879 = vpop.permute.xlu0 %878
  %880 = vrot.lane.b32.xlu0 %v858, 24
  %v881 = vpop.permute.xlu0 %880
  %882 = vrot.lane.b32.xlu0 %v859, 24
  %v883 = vpop.permute.xlu0 %882
  %884 = vrot.lane.b32.xlu0 %v860, 24
  %v885 = vpop.permute.xlu0 %884
  %886 = vrot.lane.b32.xlu0 %v861, 24
  %v887 = vpop.permute.xlu0 %886
  %888 = vrot.lane.b32.xlu0 %v862, 24
  %v889 = vpop.permute.xlu0 %888
  %890 = vrot.lane.b32.xlu0 %v863, 24
  %v891 = vpop.permute.xlu0 %890
  %892 = vrot.lane.b32.xlu0 %v864, 24
  %v893 = vpop.permute.xlu0 %892
  %894 = vrot.lane.b32.xlu0 %v865, 24
  %v895 = vpop.permute.xlu0 %894
  %896 = vrot.lane.b32.xlu0 %v866, 24
  %v897 = vpop.permute.xlu0 %896
  %898 = vrot.lane.b32.xlu0 %v867, 24
  %v899 = vpop.permute.xlu0 %898
  %v916 = vunpack.c.l.b16 %v132
  %v917 = vunpack.c.l.b16 %v133
  %v918 = vunpack.c.l.b16 %v134
  %v919 = vunpack.c.l.b16 %v135
  %v920 = vunpack.c.l.b16 %v136
  %v921 = vunpack.c.l.b16 %v137
  %v922 = vunpack.c.l.b16 %v138
  %v923 = vunpack.c.l.b16 %v139
  %v924 = vunpack.c.l.b16 %v140
  %v925 = vunpack.c.l.b16 %v141
  %v926 = vunpack.c.l.b16 %v142
  %v927 = vunpack.c.l.b16 %v143
  %v928 = vunpack.c.l.b16 %v144
  %v929 = vunpack.c.l.b16 %v145
  %v930 = vunpack.c.l.b16 %v146
  %v931 = vunpack.c.l.b16 %v147
  %v932 = vpack.c.b16 %v916, %v916
  %v933 = vpack.c.b16 %v917, %v917
  %v934 = vpack.c.b16 %v918, %v918
  %v935 = vpack.c.b16 %v919, %v919
  %v936 = vpack.c.b16 %v920, %v920
  %v937 = vpack.c.b16 %v921, %v921
  %v938 = vpack.c.b16 %v922, %v922
  %v939 = vpack.c.b16 %v923, %v923
  %v940 = vpack.c.b16 %v924, %v924
  %v941 = vpack.c.b16 %v925, %v925
  %v942 = vpack.c.b16 %v926, %v926
  %v943 = vpack.c.b16 %v927, %v927
  %v944 = vpack.c.b16 %v928, %v928
  %v945 = vpack.c.b16 %v929, %v929
  %v946 = vpack.c.b16 %v930, %v930
  %v947 = vpack.c.b16 %v931, %v931
  %948 = vrot.lane.b32.xlu0 %v932, 28
  %v949 = vpop.permute.xlu0 %948
  %950 = vrot.lane.b32.xlu0 %v933, 28
  %v951 = vpop.permute.xlu0 %950
  %952 = vrot.lane.b32.xlu0 %v934, 28
  %v953 = vpop.permute.xlu0 %952
  %954 = vrot.lane.b32.xlu0 %v935, 28
  %v955 = vpop.permute.xlu0 %954
  %956 = vrot.lane.b32.xlu0 %v936, 28
  %v957 = vpop.permute.xlu0 %956
  %958 = vrot.lane.b32.xlu0 %v937, 28
  %v959 = vpop.permute.xlu0 %958
  %960 = vrot.lane.b32.xlu0 %v938, 28
  %v961 = vpop.permute.xlu0 %960
  %962 = vrot.lane.b32.xlu0 %v939, 28
  %v963 = vpop.permute.xlu0 %962
  %964 = vrot.lane.b32.xlu0 %v940, 28
  %v965 = vpop.permute.xlu0 %964
  %966 = vrot.lane.b32.xlu0 %v941, 28
  %v967 = vpop.permute.xlu0 %966
  %968 = vrot.lane.b32.xlu0 %v942, 28
  %v969 = vpop.permute.xlu0 %968
  %970 = vrot.lane.b32.xlu0 %v943, 28
  %v971 = vpop.permute.xlu0 %970
  %972 = vrot.lane.b32.xlu0 %v944, 28
  %v973 = vpop.permute.xlu0 %972
  %974 = vrot.lane.b32.xlu0 %v945, 28
  %v975 = vpop.permute.xlu0 %974
  %976 = vrot.lane.b32.xlu0 %v946, 28
  %v977 = vpop.permute.xlu0 %976
  %978 = vrot.lane.b32.xlu0 %v947, 28
  %v979 = vpop.permute.xlu0 %978
  %v996 = vunpack.c.l.b16 %v148
  %v997 = vunpack.c.l.b16 %v149
  %v998 = vunpack.c.l.b16 %v150
  %v999 = vunpack.c.l.b16 %v151
  %v1000 = vunpack.c.l.b16 %v152
  %v1001 = vunpack.c.l.b16 %v153
  %v1002 = vunpack.c.l.b16 %v154
  %v1003 = vunpack.c.l.b16 %v155
  %v1004 = vunpack.c.l.b16 %v156
  %v1005 = vunpack.c.l.b16 %v157
  %v1006 = vunpack.c.l.b16 %v158
  %v1007 = vunpack.c.l.b16 %v159
  %v1008 = vunpack.c.l.b16 %v160
  %v1009 = vunpack.c.l.b16 %v161
  %v1010 = vunpack.c.l.b16 %v162
  %v1011 = vunpack.c.l.b16 %v163
  %v1012 = vpack.c.b16 %v996, %v836
  %v1013 = vpack.c.b16 %v997, %v837
  %v1014 = vpack.c.b16 %v998, %v838
  %v1015 = vpack.c.b16 %v999, %v839
  %v1016 = vpack.c.b16 %v1000, %v840
  %v1017 = vpack.c.b16 %v1001, %v841
  %v1018 = vpack.c.b16 %v1002, %v842
  %v1019 = vpack.c.b16 %v1003, %v843
  %v1020 = vpack.c.b16 %v1004, %v844
  %v1021 = vpack.c.b16 %v1005, %v845
  %v1022 = vpack.c.b16 %v1006, %v846
  %v1023 = vpack.c.b16 %v1007, %v847
  %v1024 = vpack.c.b16 %v1008, %v848
  %v1025 = vpack.c.b16 %v1009, %v849
  %v1026 = vpack.c.b16 %v1010, %v850
  %v1027 = vpack.c.b16 %v1011, %v851
  %v1029 = vshrl.u32 %v1012, 16
  %v1031 = vshll.u32 %v1012, 16
  %v1033 = vrot.slane %v1031, 1
  %v1034 = vor.u32 %v1029, %v1033
  %v1036 = vshrl.u32 %v1013, 16
  %v1038 = vshll.u32 %v1013, 16
  %v1040 = vrot.slane %v1038, 1
  %v1041 = vor.u32 %v1036, %v1040
  %v1043 = vshrl.u32 %v1014, 16
  %v1045 = vshll.u32 %v1014, 16
  %v1047 = vrot.slane %v1045, 1
  %v1048 = vor.u32 %v1043, %v1047
  %v1050 = vshrl.u32 %v1015, 16
  %v1052 = vshll.u32 %v1015, 16
  %v1054 = vrot.slane %v1052, 1
  %v1055 = vor.u32 %v1050, %v1054
  %v1057 = vshrl.u32 %v1016, 16
  %v1059 = vshll.u32 %v1016, 16
  %v1061 = vrot.slane %v1059, 1
  %v1062 = vor.u32 %v1057, %v1061
  %v1064 = vshrl.u32 %v1017, 16
  %v1066 = vshll.u32 %v1017, 16
  %v1068 = vrot.slane %v1066, 1
  %v1069 = vor.u32 %v1064, %v1068
  %v1071 = vshrl.u32 %v1018, 16
  %v1073 = vshll.u32 %v1018, 16
  %v1075 = vrot.slane %v1073, 1
  %v1076 = vor.u32 %v1071, %v1075
  %v1078 = vshrl.u32 %v1019, 16
  %v1080 = vshll.u32 %v1019, 16
  %v1082 = vrot.slane %v1080, 1
  %v1083 = vor.u32 %v1078, %v1082
  %v1085 = vshrl.u32 %v1020, 16
  %v1087 = vshll.u32 %v1020, 16
  %v1089 = vrot.slane %v1087, 1
  %v1090 = vor.u32 %v1085, %v1089
  %v1092 = vshrl.u32 %v1021, 16
  %v1094 = vshll.u32 %v1021, 16
  %v1096 = vrot.slane %v1094, 1
  %v1097 = vor.u32 %v1092, %v1096
  %v1099 = vshrl.u32 %v1022, 16
  %v1101 = vshll.u32 %v1022, 16
  %v1103 = vrot.slane %v1101, 1
  %v1104 = vor.u32 %v1099, %v1103
  %v1106 = vshrl.u32 %v1023, 16
  %v1108 = vshll.u32 %v1023, 16
  %v1110 = vrot.slane %v1108, 1
  %v1111 = vor.u32 %v1106, %v1110
  %v1113 = vshrl.u32 %v1024, 16
  %v1115 = vshll.u32 %v1024, 16
  %v1117 = vrot.slane %v1115, 1
  %v1118 = vor.u32 %v1113, %v1117
  %v1120 = vshrl.u32 %v1025, 16
  %v1122 = vshll.u32 %v1025, 16
  %v1124 = vrot.slane %v1122, 1
  %v1125 = vor.u32 %v1120, %v1124
  %v1127 = vshrl.u32 %v1026, 16
  %v1129 = vshll.u32 %v1026, 16
  %v1131 = vrot.slane %v1129, 1
  %v1132 = vor.u32 %v1127, %v1131
  %v1134 = vshrl.u32 %v1027, 16
  %v1136 = vshll.u32 %v1027, 16
  %v1138 = vrot.slane %v1136, 1
  %v1139 = vor.u32 %v1134, %v1138
  %1140 = vrot.lane.b32.xlu0 %v1034, 32
  %v1141 = vpop.permute.xlu0 %1140
  %1142 = vrot.lane.b32.xlu0 %v1041, 32
  %v1143 = vpop.permute.xlu0 %1142
  %1144 = vrot.lane.b32.xlu0 %v1048, 32
  %v1145 = vpop.permute.xlu0 %1144
  %1146 = vrot.lane.b32.xlu0 %v1055, 32
  %v1147 = vpop.permute.xlu0 %1146
  %1148 = vrot.lane.b32.xlu0 %v1062, 32
  %v1149 = vpop.permute.xlu0 %1148
  %1150 = vrot.lane.b32.xlu0 %v1069, 32
  %v1151 = vpop.permute.xlu0 %1150
  %1152 = vrot.lane.b32.xlu0 %v1076, 32
  %v1153 = vpop.permute.xlu0 %1152
  %1154 = vrot.lane.b32.xlu0 %v1083, 32
  %v1155 = vpop.permute.xlu0 %1154
  %1156 = vrot.lane.b32.xlu0 %v1090, 32
  %v1157 = vpop.permute.xlu0 %1156
  %1158 = vrot.lane.b32.xlu0 %v1097, 32
  %v1159 = vpop.permute.xlu0 %1158
  %1160 = vrot.lane.b32.xlu0 %v1104, 32
  %v1161 = vpop.permute.xlu0 %1160
  %1162 = vrot.lane.b32.xlu0 %v1111, 32
  %v1163 = vpop.permute.xlu0 %1162
  %1164 = vrot.lane.b32.xlu0 %v1118, 32
  %v1165 = vpop.permute.xlu0 %1164
  %1166 = vrot.lane.b32.xlu0 %v1125, 32
  %v1167 = vpop.permute.xlu0 %1166
  %1168 = vrot.lane.b32.xlu0 %v1132, 32
  %v1169 = vpop.permute.xlu0 %1168
  %1170 = vrot.lane.b32.xlu0 %v1139, 32
  %v1171 = vpop.permute.xlu0 %1170
  %vm1172 = vcmask 31744
  %v1175 = vsel %vm1172, %v15, %v213
  %v1178 = vsel %vm1172, %v16, %v215
  %v1181 = vsel %vm1172, %v17, %v217
  %v1184 = vsel %vm1172, %v18, %v219
  %v1187 = vsel %vm1172, %v19, %v221
  %v1190 = vsel %vm1172, %v20, %v223
  %v1193 = vsel %vm1172, %v21, %v225
  %v1196 = vsel %vm1172, %v22, %v227
  %v1199 = vsel %vm1172, %v23, %v229
  %v1202 = vsel %vm1172, %v24, %v231
  %v1205 = vsel %vm1172, %v25, %v233
  %v1208 = vsel %vm1172, %v26, %v235
  %v1211 = vsel %vm1172, %v27, %v237
  %v1214 = vsel %vm1172, %v28, %v239
  %v1217 = vsel %vm1172, %v29, %v241
  %v1220 = vsel %vm1172, %v30, %v243
  %vm1221 = vcmask 64512
  %v1223 = vsel %vm1221, %v1175, %v437
  %v1225 = vsel %vm1221, %v1178, %v439
  %v1227 = vsel %vm1221, %v1181, %v441
  %v1229 = vsel %vm1221, %v1184, %v443
  %v1231 = vsel %vm1221, %v1187, %v445
  %v1233 = vsel %vm1221, %v1190, %v447
  %v1235 = vsel %vm1221, %v1193, %v449
  %v1237 = vsel %vm1221, %v1196, %v451
  %v1239 = vsel %vm1221, %v1199, %v453
  %v1241 = vsel %vm1221, %v1202, %v455
  %v1243 = vsel %vm1221, %v1205, %v457
  %v1245 = vsel %vm1221, %v1208, %v459
  %v1247 = vsel %vm1221, %v1211, %v461
  %v1249 = vsel %vm1221, %v1214, %v463
  %v1251 = vsel %vm1221, %v1217, %v465
  %v1253 = vsel %vm1221, %v1220, %v467
  %vm1254 = vcmask 97280
  %v1256 = vsel %vm1254, %v1223, %v517
  %v1258 = vsel %vm1254, %v1225, %v519
  %v1260 = vsel %vm1254, %v1227, %v521
  %v1262 = vsel %vm1254, %v1229, %v523
  %v1264 = vsel %vm1254, %v1231, %v525
  %v1266 = vsel %vm1254, %v1233, %v527
  %v1268 = vsel %vm1254, %v1235, %v529
  %v1270 = vsel %vm1254, %v1237, %v531
  %v1272 = vsel %vm1254, %v1239, %v533
  %v1274 = vsel %vm1254, %v1241, %v535
  %v1276 = vsel %vm1254, %v1243, %v537
  %v1278 = vsel %vm1254, %v1245, %v539
  %v1280 = vsel %vm1254, %v1247, %v541
  %v1282 = vsel %vm1254, %v1249, %v543
  %v1284 = vsel %vm1254, %v1251, %v545
  %v1286 = vsel %vm1254, %v1253, %v547
  %vm1287 = vcmask 130048
  %v1289 = vsel %vm1287, %v1256, %v597
  %v1291 = vsel %vm1287, %v1258, %v599
  %v1293 = vsel %vm1287, %v1260, %v601
  %v1295 = vsel %vm1287, %v1262, %v603
  %v1297 = vsel %vm1287, %v1264, %v605
  %v1299 = vsel %vm1287, %v1266, %v607
  %v1301 = vsel %vm1287, %v1268, %v609
  %v1303 = vsel %vm1287, %v1270, %v611
  %v1305 = vsel %vm1287, %v1272, %v613
  %v1307 = vsel %vm1287, %v1274, %v615
  %v1309 = vsel %vm1287, %v1276, %v617
  %v1311 = vsel %vm1287, %v1278, %v619
  %v1313 = vsel %vm1287, %v1280, %v621
  %v1315 = vsel %vm1287, %v1282, %v623
  %v1317 = vsel %vm1287, %v1284, %v625
  %v1319 = vsel %vm1287, %v1286, %v627
  %vm1320 = vcmask 162816
  %v1322 = vsel %vm1320, %v1289, %v789
  %v1324 = vsel %vm1320, %v1291, %v791
  %v1326 = vsel %vm1320, %v1293, %v793
  %v1328 = vsel %vm1320, %v1295, %v795
  %v1330 = vsel %vm1320, %v1297, %v797
  %v1332 = vsel %vm1320, %v1299, %v799
  %v1334 = vsel %vm1320, %v1301, %v801
  %v1336 = vsel %vm1320, %v1303, %v803
  %v1338 = vsel %vm1320, %v1305, %v805
  %v1340 = vsel %vm1320, %v1307, %v807
  %v1342 = vsel %vm1320, %v1309, %v809
  %v1344 = vsel %vm1320, %v1311, %v811
  %v1346 = vsel %vm1320, %v1313, %v813
  %v1348 = vsel %vm1320, %v1315, %v815
  %v1350 = vsel %vm1320, %v1317, %v817
  %v1352 = vsel %vm1320, %v1319, %v819
  %vm1353 = vcmask 195584
  %v1355 = vsel %vm1353, %v1322, %v869
  %v1357 = vsel %vm1353, %v1324, %v871
  %v1359 = vsel %vm1353, %v1326, %v873
  %v1361 = vsel %vm1353, %v1328, %v875
  %v1363 = vsel %vm1353, %v1330, %v877
  %v1365 = vsel %vm1353, %v1332, %v879
  %v1367 = vsel %vm1353, %v1334, %v881
  %v1369 = vsel %vm1353, %v1336, %v883
  %v1371 = vsel %vm1353, %v1338, %v885
  %v1373 = vsel %vm1353, %v1340, %v887
  %v1375 = vsel %vm1353, %v1342, %v889
  %v1377 = vsel %vm1353, %v1344, %v891
  %v1379 = vsel %vm1353, %v1346, %v893
  %v1381 = vsel %vm1353, %v1348, %v895
  %v1383 = vsel %vm1353, %v1350, %v897
  %v1385 = vsel %vm1353, %v1352, %v899
  %vm1386 = vcmask 228352
  %v1388 = vsel %vm1386, %v1355, %v949
  %v1390 = vsel %vm1386, %v1357, %v951
  %v1392 = vsel %vm1386, %v1359, %v953
  %v1394 = vsel %vm1386, %v1361, %v955
  %v1396 = vsel %vm1386, %v1363, %v957
  %v1398 = vsel %vm1386, %v1365, %v959
  %v1400 = vsel %vm1386, %v1367, %v961
  %v1402 = vsel %vm1386, %v1369, %v963
  %v1404 = vsel %vm1386, %v1371, %v965
  %v1406 = vsel %vm1386, %v1373, %v967
  %v1408 = vsel %vm1386, %v1375, %v969
  %v1410 = vsel %vm1386, %v1377, %v971
  %v1412 = vsel %vm1386, %v1379, %v973
  %v1414 = vsel %vm1386, %v1381, %v975
  %v1416 = vsel %vm1386, %v1383, %v977
  %v1418 = vsel %vm1386, %v1385, %v979
  %vm1419 = vcmask 261120
  %v1421 = vsel %vm1419, %v1388, %v1141
  %v1423 = vsel %vm1419, %v1390, %v1143
  %v1425 = vsel %vm1419, %v1392, %v1145
  %v1427 = vsel %vm1419, %v1394, %v1147
  %v1429 = vsel %vm1419, %v1396, %v1149
  %v1431 = vsel %vm1419, %v1398, %v1151
  %v1433 = vsel %vm1419, %v1400, %v1153
  %v1435 = vsel %vm1419, %v1402, %v1155
  %v1437 = vsel %vm1419, %v1404, %v1157
  %v1439 = vsel %vm1419, %v1406, %v1159
  %v1441 = vsel %vm1419, %v1408, %v1161
  %v1443 = vsel %vm1419, %v1410, %v1163
  %v1445 = vsel %vm1419, %v1412, %v1165
  %v1447 = vsel %vm1419, %v1414, %v1167
  %v1449 = vsel %vm1419, %v1416, %v1169
  %v1451 = vsel %vm1419, %v1418, %v1171
  %v1452 = vld [vmem:[%s1] sm:$0xf]
  %v1453 = vld [vmem:[%s1 + $0x4] sm:$0xf]
  %v1454 = vld [vmem:[%s1 + $0x8] sm:$0xf]
  %v1455 = vld [vmem:[%s1 + $0xc] sm:$0xf]
  %v1456 = vld [vmem:[%s1 + $0x10] sm:$0x3]
  %v1473 = vunpack.c.l.b16 %v1421
  %v1474 = vunpack.c.l.b16 %v1423
  %v1475 = vunpack.c.l.b16 %v1425
  %v1476 = vunpack.c.l.b16 %v1427
  %v1477 = vunpack.c.l.b16 %v1429
  %v1478 = vunpack.c.l.b16 %v1431
  %v1479 = vunpack.c.l.b16 %v1433
  %v1480 = vunpack.c.l.b16 %v1435
  %v1481 = vunpack.c.l.b16 %v1437
  %v1482 = vunpack.c.l.b16 %v1439
  %v1483 = vunpack.c.l.b16 %v1441
  %v1484 = vunpack.c.l.b16 %v1443
  %v1485 = vunpack.c.l.b16 %v1445
  %v1486 = vunpack.c.l.b16 %v1447
  %v1487 = vunpack.c.l.b16 %v1449
  %v1488 = vunpack.c.l.b16 %v1451
  %v1489 = vpack.c.b16 %v1474, %v1473
  %v1490 = vpack.c.b16 %v1476, %v1475
  %v1491 = vpack.c.b16 %v1478, %v1477
  %v1492 = vpack.c.b16 %v1480, %v1479
  %v1493 = vpack.c.b16 %v1482, %v1481
  %v1494 = vpack.c.b16 %v1484, %v1483
  %v1495 = vpack.c.b16 %v1486, %v1485
  %v1496 = vpack.c.b16 %v1488, %v1487
  %v1502 = vunpack.c.l.b16 %v1452
  %v1503 = vunpack.c.l.b16 %v1453
  %v1504 = vunpack.c.l.b16 %v1454
  %v1505 = vunpack.c.l.b16 %v1455
  %v1506 = vunpack.c.l.b16 %v1456
  %v1507 = vpack.c.b16 %v1503, %v1502
  %v1508 = vpack.c.b16 %v1505, %v1504
  %v1509 = vpack.c.b16 %v1506, %v1506
  %vm1512 = vcmask 293888
  %v1514 = vsel %vm1512, %v1489, 0
  %v1517 = vsel %vm1512, %v1490, 0
  %v1520 = vsel %vm1512, %v1491, 0
  %v1523 = vsel %vm1512, %v1492, 0
  %v1526 = vsel %vm1512, %v1493, 0
  %v1529 = vsel %vm1512, %v1494, 0
  %v1532 = vsel %vm1512, %v1495, 0
  %v1535 = vsel %vm1512, %v1496, 0
  %vm1537 = vcmask 1041408
  %v1539 = vsel %vm1537, %v1509, 0
  %1541 = vmatprep.subr.bf16.mxu0 0
  %1542 = vmatpush1.bf16.msra.mxu0 %v1507
  %1543 = vmatprep.subr.bf16.mxu0 0
  %1544 = vmatpush1.bf16.msra.mxu0 %v1508
  %1545 = vmatprep.subr.bf16.mxu0 0
  %1546 = vmatpush1.bf16.msra.mxu0 %v1539
  %1547 = vmatprep.subr.bf16.mxu0 0
  %1548 = vmatpush1.bf16.msra.mxu0 0
  %1549 = vmatprep.subr.bf16.mxu0 0
  %1550 = vmatpush1.bf16.msra.mxu0 0
  %1551 = vmatprep.subr.bf16.mxu0 0
  %1552 = vmatpush1.bf16.msra.mxu0 0
  %1553 = vmatprep.subr.bf16.mxu0 0
  %1554 = vmatpush1.bf16.msra.mxu0 0
  %1555 = vmatprep.subr.bf16.mxu0 0
  %1556 = vmatpush1.bf16.msra.mxu0 0
  %1557 = vmatprep.subr.bf16.mxu0 0
  %1558 = vmatpush1.bf16.msra.mxu0 0
  %1559 = vmatprep.subr.bf16.mxu0 0
  %1560 = vmatpush1.bf16.msra.mxu0 0
  %1561 = vmatprep.subr.bf16.mxu0 0
  %1562 = vmatpush1.bf16.msra.mxu0 0
  %1563 = vmatprep.subr.bf16.mxu0 0
  %1564 = vmatpush1.bf16.msra.mxu0 0
  %1565 = vmatprep.subr.bf16.mxu0 0
  %1566 = vmatpush1.bf16.msra.mxu0 0
  %1567 = vmatprep.subr.bf16.mxu0 0
  %1568 = vmatpush1.bf16.msra.mxu0 0
  %1569 = vmatprep.subr.bf16.mxu0 0
  %1570 = vmatpush1.bf16.msra.mxu0 0
  %1571 = vmatprep.subr.bf16.mxu0 0
  %1572 = vmatpush1.bf16.msra.mxu0 0
  %1573 = vmatprep.mubr.bf16.mxu0 0
  %1574 = vmatmul.mubr.bf16.gmra.mrb[0].mxu0 %v1514
  %v1575 = vpop.f32.mrb[0].mxu0
  %v1576 = vadd.f32 0.0, %v1575
  %v1577 = vpop.f32.mrb[0].mxu0
  %v1578 = vpop.f32.mrb[0].mxu0
  %v1579 = vadd.f32 0.0, %v1578
  %v1580 = vpop.f32.mrb[0].mxu0
  %1581 = vmatprep.mubr.bf16.mxu0 0
  %1582 = vmatmul.mubr.bf16.gmra.mrb[0].mxu0 %v1517
  %v1583 = vpop.f32.mrb[0].mxu0
  %v1584 = vadd.f32 0.0, %v1583
  %v1585 = vpop.f32.mrb[0].mxu0
  %v1586 = vpop.f32.mrb[0].mxu0
  %v1587 = vadd.f32 0.0, %v1586
  %v1588 = vpop.f32.mrb[0].mxu0
  %1589 = vmatprep.mubr.bf16.mxu0 0
  %1590 = vmatmul.mubr.bf16.gmra.mrb[0].mxu0 %v1520
  %v1591 = vpop.f32.mrb[0].mxu0
  %v1592 = vadd.f32 0.0, %v1591
  %v1593 = vpop.f32.mrb[0].mxu0
  %v1594 = vpop.f32.mrb[0].mxu0
  %v1595 = vadd.f32 0.0, %v1594
  %v1596 = vpop.f32.mrb[0].mxu0
  %1597 = vmatprep.mubr.bf16.mxu0 0
  %1598 = vmatmul.mubr.bf16.gmra.mrb[0].mxu0 %v1523
  %v1599 = vpop.f32.mrb[0].mxu0
  %v1600 = vadd.f32 0.0, %v1599
  %v1601 = vpop.f32.mrb[0].mxu0
  %v1602 = vpop.f32.mrb[0].mxu0
  %v1603 = vadd.f32 0.0, %v1602
  %v1604 = vpop.f32.mrb[0].mxu0
  %1605 = vmatprep.mubr.bf16.mxu0 0
  %1606 = vmatmul.mubr.bf16.gmra.mrb[0].mxu0 %v1526
  %v1607 = vpop.f32.mrb[0].mxu0
  %v1608 = vadd.f32 0.0, %v1607
  %v1609 = vpop.f32.mrb[0].mxu0
  %v1610 = vpop.f32.mrb[0].mxu0
  %v1611 = vadd.f32 0.0, %v1610
  %v1612 = vpop.f32.mrb[0].mxu0
  %1613 = vmatprep.mubr.bf16.mxu0 0
  %1614 = vmatmul.mubr.bf16.gmra.mrb[0].mxu0 %v1529
  %v1615 = vpop.f32.mrb[0].mxu0
  %v1616 = vadd.f32 0.0, %v1615
  %v1617 = vpop.f32.mrb[0].mxu0
  %v1618 = vpop.f32.mrb[0].mxu0
  %v1619 = vadd.f32 0.0, %v1618
  %v1620 = vpop.f32.mrb[0].mxu0
  %1621 = vmatprep.mubr.bf16.mxu0 0
  %1622 = vmatmul.mubr.bf16.gmra.mrb[0].mxu0 %v1532
  %v1623 = vpop.f32.mrb[0].mxu0
  %v1624 = vadd.f32 0.0, %v1623
  %v1625 = vpop.f32.mrb[0].mxu0
  %v1626 = vpop.f32.mrb[0].mxu0
  %v1627 = vadd.f32 0.0, %v1626
  %v1628 = vpop.f32.mrb[0].mxu0
  %1629 = vmatprep.mubr.bf16.mxu0 0
  %1630 = vmatmul.mubr.bf16.gmra.mrb[0].mxu0 %v1535
  %v1631 = vpop.f32.mrb[0].mxu0
  %v1632 = vadd.f32 0.0, %v1631
  %v1633 = vpop.f32.mrb[0].mxu0
  %v1634 = vpop.f32.mrb[0].mxu0
  %v1635 = vadd.f32 0.0, %v1634
  %v1636 = vpop.f32.mrb[0].mxu0
  %1637 = vdwg.mxu0
  %v1638 = vpack.c.bf16 %v1576, %v1576
  %v1639 = vpack.c.bf16 %v1579, %v1579
  %v1640 = vpack.c.bf16 %v1584, %v1584
  %v1641 = vpack.c.bf16 %v1587, %v1587
  %v1642 = vpack.c.bf16 %v1592, %v1592
  %v1643 = vpack.c.bf16 %v1595, %v1595
  %v1644 = vpack.c.bf16 %v1600, %v1600
  %v1645 = vpack.c.bf16 %v1603, %v1603
  %v1646 = vpack.c.bf16 %v1608, %v1608
  %v1647 = vpack.c.bf16 %v1611, %v1611
  %v1648 = vpack.c.bf16 %v1616, %v1616
  %v1649 = vpack.c.bf16 %v1619, %v1619
  %v1650 = vpack.c.bf16 %v1624, %v1624
  %v1651 = vpack.c.bf16 %v1627, %v1627
  %v1652 = vpack.c.bf16 %v1632, %v1632
  %v1653 = vpack.c.bf16 %v1635, %v1635
  %vm1654 = vcmask 60416
  %1655 = vst.msk [vmem:[%s2] sm:$0xf] %vm1654, %v1638
  %1656 = vst.msk [vmem:[%s2 + $0x4] sm:$0xf] %vm1654, %v1639
  %1657 = vst.msk [vmem:[%s2 + $0x8] sm:$0xf] %vm1654, %v1640
  %1658 = vst.msk [vmem:[%s2 + $0xc] sm:$0xf] %vm1654, %v1641
  %1659 = vst.msk [vmem:[%s2 + $0x10] sm:$0xf] %vm1654, %v1642
  %1660 = vst.msk [vmem:[%s2 + $0x14] sm:$0xf] %vm1654, %v1643
  %1661 = vst.msk [vmem:[%s2 + $0x18] sm:$0xf] %vm1654, %v1644
  %1662 = vst.msk [vmem:[%s2 + $0x1c] sm:$0xf] %vm1654, %v1645
  %1663 = vst.msk [vmem:[%s2 + $0x20] sm:$0xf] %vm1654, %v1646
  %1664 = vst.msk [vmem:[%s2 + $0x24] sm:$0xf] %vm1654, %v1647
  %1665 = vst.msk [vmem:[%s2 + $0x28] sm:$0xf] %vm1654, %v1648
  %1666 = vst.msk [vmem:[%s2 + $0x2c] sm:$0xf] %vm1654, %v1649
  %1667 = vst.msk [vmem:[%s2 + $0x30] sm:$0xf] %vm1654, %v1650
  %1668 = vst.msk [vmem:[%s2 + $0x34] sm:$0xf] %vm1654, %v1651
  %1669 = vst.msk [vmem:[%s2 + $0x38] sm:$0xf] %vm1654, %v1652
  %1670 = vst.msk [vmem:[%s2 + $0x3c] sm:$0xf] %vm1654, %v1653
  %v1671 = vsel %vm1221, %v1576, 0.0
  %v1672 = vsel %vm1221, %v1579, 0.0
  %v1673 = vadd.f32 %v1671, %v1672
  %v1674 = vsel %vm1221, %v1584, 0.0
  %v1675 = vadd.f32 %v1673, %v1674
  %v1676 = vsel %vm1221, %v1587, 0.0
  %v1677 = vadd.f32 %v1675, %v1676
  %v1678 = vsel %vm1221, %v1592, 0.0
  %v1679 = vadd.f32 %v1677, %v1678
  %v1680 = vsel %vm1221, %v1595, 0.0
  %v1681 = vadd.f32 %v1679, %v1680
  %v1682 = vsel %vm1221, %v1600, 0.0
  %v1683 = vadd.f32 %v1681, %v1682
  %v1684 = vsel %vm1221, %v1603, 0.0
  %v1685 = vadd.f32 %v1683, %v1684
  %v1686 = vsel %vm1221, %v1608, 0.0
  %v1687 = vadd.f32 %v1685, %v1686
  %v1688 = vsel %vm1221, %v1611, 0.0
  %v1689 = vadd.f32 %v1687, %v1688
  %v1690 = vsel %vm1221, %v1616, 0.0
  %v1691 = vadd.f32 %v1689, %v1690
  %v1692 = vsel %vm1221, %v1619, 0.0
  %v1693 = vadd.f32 %v1691, %v1692
  %v1694 = vsel %vm1221, %v1624, 0.0
  %v1695 = vadd.f32 %v1693, %v1694
  %v1696 = vsel %vm1221, %v1627, 0.0
  %v1697 = vadd.f32 %v1695, %v1696
  %v1698 = vsel %vm1221, %v1632, 0.0
  %v1699 = vadd.f32 %v1697, %v1698
  %v1700 = vsel %vm1221, %v1635, 0.0
  %v1701 = vadd.f32 %v1699, %v1700
  %v1702 = vrot.slane %v1701, 4
  %v1703 = vadd.f32 %v1701, %v1702
  %v1704 = vrot.slane %v1703, 2
  %v1705 = vadd.f32 %v1703, %v1704
  %v1706 = vrot.slane %v1705, 1
  %v1707 = vadd.f32 %v1705, %v1706
  %vm1708 = vcmask 57344
  %1709 = vst.msk [vmem:[%s3] sm:$0x1] %vm1708, %v1707
  %v1710 = vmul.f32 %v1576, %v1576
  %v1711 = vmul.f32 %v1579, %v1579
  %v1712 = vmul.f32 %v1584, %v1584
  %v1713 = vmul.f32 %v1587, %v1587
  %v1714 = vmul.f32 %v1592, %v1592
  %v1715 = vmul.f32 %v1595, %v1595
  %v1716 = vmul.f32 %v1600, %v1600
  %v1717 = vmul.f32 %v1603, %v1603
  %v1718 = vmul.f32 %v1608, %v1608
  %v1719 = vmul.f32 %v1611, %v1611
  %v1720 = vmul.f32 %v1616, %v1616
  %v1721 = vmul.f32 %v1619, %v1619
  %v1722 = vmul.f32 %v1624, %v1624
  %v1723 = vmul.f32 %v1627, %v1627
  %v1724 = vmul.f32 %v1632, %v1632
  %v1725 = vmul.f32 %v1635, %v1635
  %v1726 = vsel %vm1221, %v1710, 0.0
  %v1727 = vsel %vm1221, %v1711, 0.0
  %v1728 = vadd.f32 %v1726, %v1727
  %v1729 = vsel %vm1221, %v1712, 0.0
  %v1730 = vadd.f32 %v1728, %v1729
  %v1731 = vsel %vm1221, %v1713, 0.0
  %v1732 = vadd.f32 %v1730, %v1731
  %v1733 = vsel %vm1221, %v1714, 0.0
  %v1734 = vadd.f32 %v1732, %v1733
  %v1735 = vsel %vm1221, %v1715, 0.0
  %v1736 = vadd.f32 %v1734, %v1735
  %v1737 = vsel %vm1221, %v1716, 0.0
  %v1738 = vadd.f32 %v1736, %v1737
  %v1739 = vsel %vm1221, %v1717, 0.0
  %v1740 = vadd.f32 %v1738, %v1739
  %v1741 = vsel %vm1221, %v1718, 0.0
  %v1742 = vadd.f32 %v1740, %v1741
  %v1743 = vsel %vm1221, %v1719, 0.0
  %v1744 = vadd.f32 %v1742, %v1743
  %v1745 = vsel %vm1221, %v1720, 0.0
  %v1746 = vadd.f32 %v1744, %v1745
  %v1747 = vsel %vm1221, %v1721, 0.0
  %v1748 = vadd.f32 %v1746, %v1747
  %v1749 = vsel %vm1221, %v1722, 0.0
  %v1750 = vadd.f32 %v1748, %v1749
  %v1751 = vsel %vm1221, %v1723, 0.0
  %v1752 = vadd.f32 %v1750, %v1751
  %v1753 = vsel %vm1221, %v1724, 0.0
  %v1754 = vadd.f32 %v1752, %v1753
  %v1755 = vsel %vm1221, %v1725, 0.0
  %v1756 = vadd.f32 %v1754, %v1755
  %v1757 = vrot.slane %v1756, 4
  %v1758 = vadd.f32 %v1756, %v1757
  %v1759 = vrot.slane %v1758, 2
  %v1760 = vadd.f32 %v1758, %v1759
  %v1761 = vrot.slane %v1760, 1
  %v1762 = vadd.f32 %v1760, %v1761
  %1763 = vst.msk [vmem:[%s4] sm:$0x1] %vm1708, %v1762
  // Predicated region
  $region10: #{basic_block_a.3} parent=0 // pred_check
    _
  $region11: #{basic_block_a.3} parent=0 // pred_check_branch
    %1765 = sbr.rel (0) target = $region13
  $region12: #{basic_block_a.3} parent=0 // pred_region
    _
  $region13: #{basic_block_a.3} parent=0 // pred_fallthru
    _
  // Predicated region
  $region14: #{basic_block_a.3} parent=0 // pred_check
    _
  $region15: #{basic_block_a.3} parent=0 // pred_check_branch
    %1767 = sbr.rel (0) target = $region17
  $region16: #{basic_block_a.3} parent=0 // pred_region
    _
  $region17: #{basic_block_a.3} parent=0 // pred_fallthru
    _
  // Predicated region
  $region18: #{basic_block_a.3} parent=0 // pred_check
    _
  $region19: #{basic_block_a.3} parent=0 // pred_check_branch
    %1769 = sbr.rel (0) target = $region21
  $region20: #{basic_block_a.3} parent=0 // pred_region
    _
  $region21: #{basic_block_a.3} parent=0 // pred_fallthru
    _
  // Predicated region
  $region22: #{basic_block_a.3} parent=0 // pred_check
    _
  $region23: #{basic_block_a.3} parent=0 // pred_check_branch
    %1771 = sbr.rel (0) target = $region25
  $region24: #{basic_block_a.3} parent=0 // pred_region
    _
  $region25: #{basic_block_a.3} parent=0 // pred_fallthru
    _
  // Predicated region
  $region26: #{basic_block_a.3} parent=0 // pred_check
    _
  $region27: #{basic_block_a.3} parent=0 // pred_check_branch
    %1773 = sbr.rel (0) target = $region29
  $region28: #{basic_block_a.3} parent=0 // pred_region
    _
  $region29: #{basic_block_a.3} parent=0 // pred_fallthru
    _
  // Predicated region
  $region30: #{basic_block_a.3} parent=0 // pred_check
    _
  $region31: #{basic_block_a.3} parent=0 // pred_check_branch
    %1775 = sbr.rel (0) target = $region33
  $region32: #{basic_block_a.3} parent=0 // pred_region
    _
  $region33: #{basic_block_a.3} parent=0 // pred_fallthru
    _

// kernel: basic_block_a.4
$region0: #{basic_block_a.4}
  #allocation0 [shape = 'u32[]', space=smem, size = 0x4, offset = 0x4, fixed_abs, tag = 'smem constant byte address 0x4 - core index']
  #allocation1 [shape = 'u32[144,128]{1,0:T(1,128)}', space=vmem, size = 0x12000, scoped, tag = 'internal scratch']
  #allocation2 [shape = 'bf16[2,10,10,8]{3,2,1,0:T(8,128)(2,1)}', space=vmem, size = 0x14000, scoped, tag = 'scratch operand']
  %s0 = inlined_call_operand.vmem [shape: bf16[2,8,8,8], index: 0, kind: input, shape index: {}]
  %s1 = inlined_call_operand.vmem [shape: f32[1,8], index: 1, kind: input, shape index: {}]
  %s2 = inlined_call_operand.vmem [shape: f32[1,8], index: 2, kind: input, shape index: {}]
  %s3 = inlined_call_operand.vmem [shape: bf16[72,8], index: 3, kind: input, shape index: {}]
  %s4 = inlined_call_operand.vmem [shape: bf16[2,8,8,8], index: 4, kind: output, shape index: {0}]
  %s5 = inlined_call_operand.vmem [shape: f32[1,1,8], index: 5, kind: output, shape index: {1}]
  %s6 = inlined_call_operand.vmem [shape: f32[1,1,8], index: 6, kind: output, shape index: {2}]
  %7 = xla_tuple %s4, %s5, %s6
  %s8 = sld [smem:[#allocation0]]
  $region42: #{basic_block_a.4} parent=0
    _
  %s10 = ssub.s32 1, %s8
  %s11 = scalar_select 0, %s10, %s8
  // Predicated region
  $region2: #{basic_block_a.4} parent=0 // pred_check
    _
  $region3: #{basic_block_a.4} parent=0 // pred_check_branch
    %13 = sbr.rel (0) target = $region5
  $region4: #{basic_block_a.4} parent=0 // pred_region
    _
  $region5: #{basic_block_a.4} parent=0 // pred_fallthru
    _
  // Predicated region
  $region6: #{basic_block_a.4} parent=0 // pred_check
    _
  $region7: #{basic_block_a.4} parent=0 // pred_check_branch
    %15 = sbr.rel (0) target = $region9
  $region8: #{basic_block_a.4} parent=0 // pred_region
    _
  $region9: #{basic_block_a.4} parent=0 // pred_fallthru
    _
  // Predicated region
  $region10: #{basic_block_a.4} parent=0 // pred_check
    _
  $region11: #{basic_block_a.4} parent=0 // pred_check_branch
    %17 = sbr.rel (0) target = $region13
  $region12: #{basic_block_a.4} parent=0 // pred_region
    _
  $region13: #{basic_block_a.4} parent=0 // pred_fallthru
    _
  // Predicated region
  $region14: #{basic_block_a.4} parent=0 // pred_check
    _
  $region15: #{basic_block_a.4} parent=0 // pred_check_branch
    %19 = sbr.rel (0) target = $region17
  $region16: #{basic_block_a.4} parent=0 // pred_region
    _
  $region17: #{basic_block_a.4} parent=0 // pred_fallthru
    _
  %vm21 = vcmask 60416
  %22 = vst.msk [vmem:[#allocation2] sm:$0xf] %vm21, 0
  %vm23 = vcmask 57344
  %24 = vst.msk [vmem:[#allocation2 + $0x4] sm:$0x1] %vm23, 0
  %25 = vst.msk [vmem:[#allocation2 + $0x50] sm:$0xf] %vm21, 0
  %26 = vst.msk [vmem:[#allocation2 + $0x54] sm:$0x1] %vm23, 0
  %s27 = scalar_lea.vmem [#allocation2], 72
  %28 = vst.msk [vmem:[%s27] sm:$0xf] %vm21, 0
  %29 = vst.msk [vmem:[%s27 + $0x4] sm:$0x1] %vm23, 0
  %30 = vst.msk [vmem:[%s27 + $0x50] sm:$0xf] %vm21, 0
  %31 = vst.msk [vmem:[%s27 + $0x54] sm:$0x1] %vm23, 0
  %s32 = scalar_lea.vmem [#allocation2], 8
  %vm33 = vcmask 57344
  %vm34 = vsmask.f32 256
  %vm35 = vmand %vm33, %vm34
  %v36 = vld [vmem:[%s32] sm:$0x1]
  %v37 = vsel %vm35, 0, %v36
  %38 = vst [vmem:[%s32] sm:$0x1] %v37
  %v39 = vld [vmem:[%s32 + $0x8] sm:$0x1]
  %v40 = vsel %vm35, 0, %v39
  %41 = vst [vmem:[%s32 + $0x8] sm:$0x1] %v40
  %v42 = vld [vmem:[%s32 + $0x10] sm:$0x1]
  %v43 = vsel %vm35, 0, %v42
  %44 = vst [vmem:[%s32 + $0x10] sm:$0x1] %v43
  %v45 = vld [vmem:[%s32 + $0x18] sm:$0x1]
  %v46 = vsel %vm35, 0, %v45
  %47 = vst [vmem:[%s32 + $0x18] sm:$0x1] %v46
  %v48 = vld [vmem:[%s32 + $0x20] sm:$0x1]
  %v49 = vsel %vm35, 0, %v48
  %50 = vst [vmem:[%s32 + $0x20] sm:$0x1] %v49
  %v51 = vld [vmem:[%s32 + $0x28] sm:$0x1]
  %v52 = vsel %vm35, 0, %v51
  %53 = vst [vmem:[%s32 + $0x28] sm:$0x1] %v52
  %v54 = vld [vmem:[%s32 + $0x30] sm:$0x1]
  %v55 = vsel %vm35, 0, %v54
  %56 = vst [vmem:[%s32 + $0x30] sm:$0x1] %v55
  %v57 = vld [vmem:[%s32 + $0x38] sm:$0x1]
  %v58 = vsel %vm35, 0, %v57
  %59 = vst [vmem:[%s32 + $0x38] sm:$0x1] %v58
  %v60 = vld [vmem:[%s32 + $0x50] sm:$0x1]
  %v61 = vsel %vm35, 0, %v60
  %62 = vst [vmem:[%s32 + $0x50] sm:$0x1] %v61
  %v63 = vld [vmem:[%s32 + $0x58] sm:$0x1]
  %v64 = vsel %vm35, 0, %v63
  %65 = vst [vmem:[%s32 + $0x58] sm:$0x1] %v64
  %v66 = vld [vmem:[%s32 + $0x60] sm:$0x1]
  %v67 = vsel %vm35, 0, %v66
  %68 = vst [vmem:[%s32 + $0x60] sm:$0x1] %v67
  %v69 = vld [vmem:[%s32 + $0x68] sm:$0x1]
  %v70 = vsel %vm35, 0, %v69
  %71 = vst [vmem:[%s32 + $0x68] sm:$0x1] %v70
  %v72 = vld [vmem:[%s32 + $0x70] sm:$0x1]
  %v73 = vsel %vm35, 0, %v72
  %74 = vst [vmem:[%s32 + $0x70] sm:$0x1] %v73
  %v75 = vld [vmem:[%s32 + $0x78] sm:$0x1]
  %v76 = vsel %vm35, 0, %v75
  %77 = vst [vmem:[%s32 + $0x78] sm:$0x1] %v76
  %v78 = vld [vmem:[%s32 + $0x80] sm:$0x1]
  %v79 = vsel %vm35, 0, %v78
  %80 = vst [vmem:[%s32 + $0x80] sm:$0x1] %v79
  %v81 = vld [vmem:[%s32 + $0x88] sm:$0x1]
  %v82 = vsel %vm35, 0, %v81
  %83 = vst [vmem:[%s32 + $0x88] sm:$0x1] %v82
  %vm84 = vsmask.f32 7938
  %vm85 = vmand %vm33, %vm84
  %v86 = vld [vmem:[%s32 + $0x4] sm:$0x1]
  %v87 = vsel %vm85, 0, %v86
  %88 = vst [vmem:[%s32 + $0x4] sm:$0x1] %v87
  %v89 = vld [vmem:[%s32 + $0xc] sm:$0x1]
  %v90 = vsel %vm85, 0, %v89
  %91 = vst [vmem:[%s32 + $0xc] sm:$0x1] %v90
  %v92 = vld [vmem:[%s32 + $0x14] sm:$0x1]
  %v93 = vsel %vm85, 0, %v92
  %94 = vst [vmem:[%s32 + $0x14] sm:$0x1] %v93
  %v95 = vld [vmem:[%s32 + $0x1c] sm:$0x1]
  %v96 = vsel %vm85, 0, %v95
  %97 = vst [vmem:[%s32 + $0x1c] sm:$0x1] %v96
  %v98 = vld [vmem:[%s32 + $0x24] sm:$0x1]
  %v99 = vsel %vm85, 0, %v98
  %100 = vst [vmem:[%s32 + $0x24] sm:$0x1] %v99
  %v101 = vld [vmem:[%s32 + $0x2c] sm:$0x1]
  %v102 = vsel %vm85, 0, %v101
  %103 = vst [vmem:[%s32 + $0x2c] sm:$0x1] %v102
  %v104 = vld [vmem:[%s32 + $0x34] sm:$0x1]
  %v105 = vsel %vm85, 0, %v104
  %106 = vst [vmem:[%s32 + $0x34] sm:$0x1] %v105
  %v107 = vld [vmem:[%s32 + $0x3c] sm:$0x1]
  %v108 = vsel %vm85, 0, %v107
  %109 = vst [vmem:[%s32 + $0x3c] sm:$0x1] %v108
  %v110 = vld [vmem:[%s32 + $0x54] sm:$0x1]
  %v111 = vsel %vm85, 0, %v110
  %112 = vst [vmem:[%s32 + $0x54] sm:$0x1] %v111
  %v113 = vld [vmem:[%s32 + $0x5c] sm:$0x1]
  %v114 = vsel %vm85, 0, %v113
  %115 = vst [vmem:[%s32 + $0x5c] sm:$0x1] %v114
  %v116 = vld [vmem:[%s32 + $0x64] sm:$0x1]
  %v117 = vsel %vm85, 0, %v116
  %118 = vst [vmem:[%s32 + $0x64] sm:$0x1] %v117
  %v119 = vld [vmem:[%s32 + $0x6c] sm:$0x1]
  %v120 = vsel %vm85, 0, %v119
  %121 = vst [vmem:[%s32 + $0x6c] sm:$0x1] %v120
  %v122 = vld [vmem:[%s32 + $0x74] sm:$0x1]
  %v123 = vsel %vm85, 0, %v122
  %124 = vst [vmem:[%s32 + $0x74] sm:$0x1] %v123
  %v125 = vld [vmem:[%s32 + $0x7c] sm:$0x1]
  %v126 = vsel %vm85, 0, %v125
  %127 = vst [vmem:[%s32 + $0x7c] sm:$0x1] %v126
  %v128 = vld [vmem:[%s32 + $0x84] sm:$0x1]
  %v129 = vsel %vm85, 0, %v128
  %130 = vst [vmem:[%s32 + $0x84] sm:$0x1] %v129
  %v131 = vld [vmem:[%s32 + $0x8c] sm:$0x1]
  %v132 = vsel %vm85, 0, %v131
  %133 = vst [vmem:[%s32 + $0x8c] sm:$0x1] %v132
  %v134 = vld [vmem:[%s0] sm:$0xf]
  %v135 = vld [vmem:[%s0 + $0x4] sm:$0xf]
  %v136 = vld [vmem:[%s0 + $0x8] sm:$0xf]
  %v137 = vld [vmem:[%s0 + $0xc] sm:$0xf]
  %v138 = vld [vmem:[%s0 + $0x10] sm:$0xf]
  %v139 = vld [vmem:[%s0 + $0x14] sm:$0xf]
  %v140 = vld [vmem:[%s0 + $0x18] sm:$0xf]
  %v141 = vld [vmem:[%s0 + $0x1c] sm:$0xf]
  %v142 = vld [vmem:[%s0 + $0x20] sm:$0xf]
  %v143 = vld [vmem:[%s0 + $0x24] sm:$0xf]
  %v144 = vld [vmem:[%s0 + $0x28] sm:$0xf]
  %v145 = vld [vmem:[%s0 + $0x2c] sm:$0xf]
  %v146 = vld [vmem:[%s0 + $0x30] sm:$0xf]
  %v147 = vld [vmem:[%s0 + $0x34] sm:$0xf]
  %v148 = vld [vmem:[%s0 + $0x38] sm:$0xf]
  %v149 = vld [vmem:[%s0 + $0x3c] sm:$0xf]
  %v150 = vunpack.c.l.bf16 %v134
  %v151 = vunpack.c.l.bf16 %v135
  %v152 = vunpack.c.l.bf16 %v136
  %v153 = vunpack.c.l.bf16 %v137
  %v154 = vunpack.c.l.bf16 %v138
  %v155 = vunpack.c.l.bf16 %v139
  %v156 = vunpack.c.l.bf16 %v140
  %v157 = vunpack.c.l.bf16 %v141
  %v158 = vunpack.c.l.bf16 %v142
  %v159 = vunpack.c.l.bf16 %v143
  %v160 = vunpack.c.l.bf16 %v144
  %v161 = vunpack.c.l.bf16 %v145
  %v162 = vunpack.c.l.bf16 %v146
  %v163 = vunpack.c.l.bf16 %v147
  %v164 = vunpack.c.l.bf16 %v148
  %v165 = vunpack.c.l.bf16 %v149
  %v166 = vld [vmem:[%s1] sm:$0x1]
  %v168 = vlaneseq
  %v169 = vshrl.u32 %v168, 7
  %v170 = vsub.s32 0, %v169
  %v171 = vrot.slane %v166, %v170
  %v173 = vmul.f32 %v150, %v171
  %v174 = vmul.f32 %v151, %v171
  %v175 = vmul.f32 %v152, %v171
  %v176 = vmul.f32 %v153, %v171
  %v177 = vmul.f32 %v154, %v171
  %v178 = vmul.f32 %v155, %v171
  %v179 = vmul.f32 %v156, %v171
  %v180 = vmul.f32 %v157, %v171
  %v181 = vmul.f32 %v158, %v171
  %v182 = vmul.f32 %v159, %v171
  %v183 = vmul.f32 %v160, %v171
  %v184 = vmul.f32 %v161, %v171
  %v185 = vmul.f32 %v162, %v171
  %v186 = vmul.f32 %v163, %v171
  %v187 = vmul.f32 %v164, %v171
  %v188 = vmul.f32 %v165, %v171
  %v189 = vld [vmem:[%s2] sm:$0x1]
  %v191 = vlaneseq
  %v192 = vshrl.u32 %v191, 7
  %v193 = vsub.s32 0, %v192
  %v194 = vrot.slane %v189, %v193
  %v196 = vadd.f32 %v173, %v194
  %v197 = vadd.f32 %v174, %v194
  %v198 = vadd.f32 %v175, %v194
  %v199 = vadd.f32 %v176, %v194
  %v200 = vadd.f32 %v177, %v194
  %v201 = vadd.f32 %v178, %v194
  %v202 = vadd.f32 %v179, %v194
  %v203 = vadd.f32 %v180, %v194
  %v204 = vadd.f32 %v181, %v194
  %v205 = vadd.f32 %v182, %v194
  %v206 = vadd.f32 %v183, %v194
  %v207 = vadd.f32 %v184, %v194
  %v208 = vadd.f32 %v185, %v194
  %v209 = vadd.f32 %v186, %v194
  %v210 = vadd.f32 %v187, %v194
  %v211 = vadd.f32 %v188, %v194
  %v212 = vmax.f32 %v196, 0.0
  %v213 = vmax.f32 %v197, 0.0
  %v214 = vmax.f32 %v198, 0.0
  %v215 = vmax.f32 %v199, 0.0
  %v216 = vmax.f32 %v200, 0.0
  %v217 = vmax.f32 %v201, 0.0
  %v218 = vmax.f32 %v202, 0.0
  %v219 = vmax.f32 %v203, 0.0
  %v220 = vmax.f32 %v204, 0.0
  %v221 = vmax.f32 %v205, 0.0
  %v222 = vmax.f32 %v206, 0.0
  %v223 = vmax.f32 %v207, 0.0
  %v224 = vmax.f32 %v208, 0.0
  %v225 = vmax.f32 %v209, 0.0
  %v226 = vmax.f32 %v210, 0.0
  %v227 = vmax.f32 %v211, 0.0
  %v228 = vpack.c.bf16 %v212, %v212
  %v229 = vpack.c.bf16 %v213, %v213
  %v230 = vpack.c.bf16 %v214, %v214
  %v231 = vpack.c.bf16 %v215, %v215
  %v232 = vpack.c.bf16 %v216, %v216
  %v233 = vpack.c.bf16 %v217, %v217
  %v234 = vpack.c.bf16 %v218, %v218
  %v235 = vpack.c.bf16 %v219, %v219
  %v236 = vpack.c.bf16 %v220, %v220
  %v237 = vpack.c.bf16 %v221, %v221
  %v238 = vpack.c.bf16 %v222, %v222
  %v239 = vpack.c.bf16 %v223, %v223
  %v240 = vpack.c.bf16 %v224, %v224
  %v241 = vpack.c.bf16 %v225, %v225
  %v242 = vpack.c.bf16 %v226, %v226
  %v243 = vpack.c.bf16 %v227, %v227
  %v260 = vunpack.c.l.b16 %v228
  %v261 = vunpack.c.l.b16 %v229
  %v262 = vunpack.c.l.b16 %v230
  %v263 = vunpack.c.l.b16 %v231
  %v264 = vunpack.c.l.b16 %v232
  %v265 = vunpack.c.l.b16 %v233
  %v266 = vunpack.c.l.b16 %v234
  %v267 = vunpack.c.l.b16 %v235
  %v268 = vunpack.c.l.b16 %v236
  %v269 = vunpack.c.l.b16 %v237
  %v270 = vunpack.c.l.b16 %v238
  %v271 = vunpack.c.l.b16 %v239
  %v272 = vunpack.c.l.b16 %v240
  %v273 = vunpack.c.l.b16 %v241
  %v274 = vunpack.c.l.b16 %v242
  %v275 = vunpack.c.l.b16 %v243
  %v276 = vpack.c.b16 %v260, %v260
  %v277 = vpack.c.b16 %v261, %v261
  %v278 = vpack.c.b16 %v262, %v262
  %v279 = vpack.c.b16 %v263, %v263
  %v280 = vpack.c.b16 %v264, %v264
  %v281 = vpack.c.b16 %v265, %v265
  %v282 = vpack.c.b16 %v266, %v266
  %v283 = vpack.c.b16 %v267, %v267
  %v284 = vpack.c.b16 %v268, %v268
  %v285 = vpack.c.b16 %v269, %v269
  %v286 = vpack.c.b16 %v270, %v270
  %v287 = vpack.c.b16 %v271, %v271
  %v288 = vpack.c.b16 %v272, %v272
  %v289 = vpack.c.b16 %v273, %v273
  %v290 = vpack.c.b16 %v274, %v274
  %v291 = vpack.c.b16 %v275, %v275
  %v293 = vshrl.u32 %v276, 16
  %v295 = vrot.slane %v293, 7
  %v296 = vshll.u32 %v276, 16
  %v298 = vor.u32 %v295, %v296
  %v299 = vrot.slane %v295, 4
  %v301 = vshrl.u32 %v277, 16
  %v303 = vrot.slane %v301, 7
  %v304 = vshll.u32 %v277, 16
  %v306 = vor.u32 %v303, %v304
  %v307 = vrot.slane %v303, 4
  %v309 = vshrl.u32 %v278, 16
  %v311 = vrot.slane %v309, 7
  %v312 = vshll.u32 %v278, 16
  %v314 = vor.u32 %v311, %v312
  %v315 = vrot.slane %v311, 4
  %v317 = vshrl.u32 %v279, 16
  %v319 = vrot.slane %v317, 7
  %v320 = vshll.u32 %v279, 16
  %v322 = vor.u32 %v319, %v320
  %v323 = vrot.slane %v319, 4
  %v325 = vshrl.u32 %v280, 16
  %v327 = vrot.slane %v325, 7
  %v328 = vshll.u32 %v280, 16
  %v330 = vor.u32 %v327, %v328
  %v331 = vrot.slane %v327, 4
  %v333 = vshrl.u32 %v281, 16
  %v335 = vrot.slane %v333, 7
  %v336 = vshll.u32 %v281, 16
  %v338 = vor.u32 %v335, %v336
  %v339 = vrot.slane %v335, 4
  %v341 = vshrl.u32 %v282, 16
  %v343 = vrot.slane %v341, 7
  %v344 = vshll.u32 %v282, 16
  %v346 = vor.u32 %v343, %v344
  %v347 = vrot.slane %v343, 4
  %v349 = vshrl.u32 %v283, 16
  %v351 = vrot.slane %v349, 7
  %v352 = vshll.u32 %v283, 16
  %v354 = vor.u32 %v351, %v352
  %v355 = vrot.slane %v351, 4
  %v357 = vshrl.u32 %v284, 16
  %v359 = vrot.slane %v357, 7
  %v360 = vshll.u32 %v284, 16
  %v362 = vor.u32 %v359, %v360
  %v363 = vrot.slane %v359, 4
  %v365 = vshrl.u32 %v285, 16
  %v367 = vrot.slane %v365, 7
  %v368 = vshll.u32 %v285, 16
  %v370 = vor.u32 %v367, %v368
  %v371 = vrot.slane %v367, 4
  %v373 = vshrl.u32 %v286, 16
  %v375 = vrot.slane %v373, 7
  %v376 = vshll.u32 %v286, 16
  %v378 = vor.u32 %v375, %v376
  %v379 = vrot.slane %v375, 4
  %v381 = vshrl.u32 %v287, 16
  %v383 = vrot.slane %v381, 7
  %v384 = vshll.u32 %v287, 16
  %v386 = vor.u32 %v383, %v384
  %v387 = vrot.slane %v383, 4
  %v389 = vshrl.u32 %v288, 16
  %v391 = vrot.slane %v389, 7
  %v392 = vshll.u32 %v288, 16
  %v394 = vor.u32 %v391, %v392
  %v395 = vrot.slane %v391, 4
  %v397 = vshrl.u32 %v289, 16
  %v399 = vrot.slane %v397, 7
  %v400 = vshll.u32 %v289, 16
  %v402 = vor.u32 %v399, %v400
  %v403 = vrot.slane %v399, 4
  %v405 = vshrl.u32 %v290, 16
  %v407 = vrot.slane %v405, 7
  %v408 = vshll.u32 %v290, 16
  %v410 = vor.u32 %v407, %v408
  %v411 = vrot.slane %v407, 4
  %v413 = vshrl.u32 %v291, 16
  %v415 = vrot.slane %v413, 7
  %v416 = vshll.u32 %v291, 16
  %v418 = vor.u32 %v415, %v416
  %v419 = vrot.slane %v415, 4
  %vm452 = vcmask 60416
  %vm453 = vmand %vm452, %vm84
  %v454 = vld [vmem:[%s32] sm:$0xf]
  %v455 = vsel %vm453, %v298, %v454
  %456 = vst [vmem:[%s32] sm:$0xf] %v455
  %v457 = vld [vmem:[%s32 + $0x4] sm:$0x1]
  %v458 = vsel %vm35, %v299, %v457
  %459 = vst [vmem:[%s32 + $0x4] sm:$0x1] %v458
  %v460 = vld [vmem:[%s32 + $0x8] sm:$0xf]
  %v461 = vsel %vm453, %v306, %v460
  %462 = vst [vmem:[%s32 + $0x8] sm:$0xf] %v461
  %v463 = vld [vmem:[%s32 + $0xc] sm:$0x1]
  %v464 = vsel %vm35, %v307, %v463
  %465 = vst [vmem:[%s32 + $0xc] sm:$0x1] %v464
  %v466 = vld [vmem:[%s32 + $0x10] sm:$0xf]
  %v467 = vsel %vm453, %v314, %v466
  %468 = vst [vmem:[%s32 + $0x10] sm:$0xf] %v467
  %v469 = vld [vmem:[%s32 + $0x14] sm:$0x1]
  %v470 = vsel %vm35, %v315, %v469
  %471 = vst [vmem:[%s32 + $0x14] sm:$0x1] %v470
  %v472 = vld [vmem:[%s32 + $0x18] sm:$0xf]
  %v473 = vsel %vm453, %v322, %v472
  %474 = vst [vmem:[%s32 + $0x18] sm:$0xf] %v473
  %v475 = vld [vmem:[%s32 + $0x1c] sm:$0x1]
  %v476 = vsel %vm35, %v323, %v475
  %477 = vst [vmem:[%s32 + $0x1c] sm:$0x1] %v476
  %v478 = vld [vmem:[%s32 + $0x20] sm:$0xf]
  %v479 = vsel %vm453, %v330, %v478
  %480 = vst [vmem:[%s32 + $0x20] sm:$0xf] %v479
  %v481 = vld [vmem:[%s32 + $0x24] sm:$0x1]
  %v482 = vsel %vm35, %v331, %v481
  %483 = vst [vmem:[%s32 + $0x24] sm:$0x1] %v482
  %v484 = vld [vmem:[%s32 + $0x28] sm:$0xf]
  %v485 = vsel %vm453, %v338, %v484
  %486 = vst [vmem:[%s32 + $0x28] sm:$0xf] %v485
  %v487 = vld [vmem:[%s32 + $0x2c] sm:$0x1]
  %v488 = vsel %vm35, %v339, %v487
  %489 = vst [vmem:[%s32 + $0x2c] sm:$0x1] %v488
  %v490 = vld [vmem:[%s32 + $0x30] sm:$0xf]
  %v491 = vsel %vm453, %v346, %v490
  %492 = vst [vmem:[%s32 + $0x30] sm:$0xf] %v491
  %v493 = vld [vmem:[%s32 + $0x34] sm:$0x1]
  %v494 = vsel %vm35, %v347, %v493
  %495 = vst [vmem:[%s32 + $0x34] sm:$0x1] %v494
  %v496 = vld [vmem:[%s32 + $0x38] sm:$0xf]
  %v497 = vsel %vm453, %v354, %v496
  %498 = vst [vmem:[%s32 + $0x38] sm:$0xf] %v497
  %v499 = vld [vmem:[%s32 + $0x3c] sm:$0x1]
  %v500 = vsel %vm35, %v355, %v499
  %501 = vst [vmem:[%s32 + $0x3c] sm:$0x1] %v500
  %v502 = vld [vmem:[%s32 + $0x50] sm:$0xf]
  %v503 = vsel %vm453, %v362, %v502
  %504 = vst [vmem:[%s32 + $0x50] sm:$0xf] %v503
  %v505 = vld [vmem:[%s32 + $0x54] sm:$0x1]
  %v506 = vsel %vm35, %v363, %v505
  %507 = vst [vmem:[%s32 + $0x54] sm:$0x1] %v506
  %v508 = vld [vmem:[%s32 + $0x58] sm:$0xf]
  %v509 = vsel %vm453, %v370, %v508
  %510 = vst [vmem:[%s32 + $0x58] sm:$0xf] %v509
  %v511 = vld [vmem:[%s32 + $0x5c] sm:$0x1]
  %v512 = vsel %vm35, %v371, %v511
  %513 = vst [vmem:[%s32 + $0x5c] sm:$0x1] %v512
  %v514 = vld [vmem:[%s32 + $0x60] sm:$0xf]
  %v515 = vsel %vm453, %v378, %v514
  %516 = vst [vmem:[%s32 + $0x60] sm:$0xf] %v515
  %v517 = vld [vmem:[%s32 + $0x64] sm:$0x1]
  %v518 = vsel %vm35, %v379, %v517
  %519 = vst [vmem:[%s32 + $0x64] sm:$0x1] %v518
  %v520 = vld [vmem:[%s32 + $0x68] sm:$0xf]
  %v521 = vsel %vm453, %v386, %v520
  %522 = vst [vmem:[%s32 + $0x68] sm:$0xf] %v521
  %v523 = vld [vmem:[%s32 + $0x6c] sm:$0x1]
  %v524 = vsel %vm35, %v387, %v523
  %525 = vst [vmem:[%s32 + $0x6c] sm:$0x1] %v524
  %v526 = vld [vmem:[%s32 + $0x70] sm:$0xf]
  %v527 = vsel %vm453, %v394, %v526
  %528 = vst [vmem:[%s32 + $0x70] sm:$0xf] %v527
  %v529 = vld [vmem:[%s32 + $0x74] sm:$0x1]
  %v530 = vsel %vm35, %v395, %v529
  %531 = vst [vmem:[%s32 + $0x74] sm:$0x1] %v530
  %v532 = vld [vmem:[%s32 + $0x78] sm:$0xf]
  %v533 = vsel %vm453, %v402, %v532
  %534 = vst [vmem:[%s32 + $0x78] sm:$0xf] %v533
  %v535 = vld [vmem:[%s32 + $0x7c] sm:$0x1]
  %v536 = vsel %vm35, %v403, %v535
  %537 = vst [vmem:[%s32 + $0x7c] sm:$0x1] %v536
  %v538 = vld [vmem:[%s32 + $0x80] sm:$0xf]
  %v539 = vsel %vm453, %v410, %v538
  %540 = vst [vmem:[%s32 + $0x80] sm:$0xf] %v539
  %v541 = vld [vmem:[%s32 + $0x84] sm:$0x1]
  %v542 = vsel %vm35, %v411, %v541
  %543 = vst [vmem:[%s32 + $0x84] sm:$0x1] %v542
  %v544 = vld [vmem:[%s32 + $0x88] sm:$0xf]
  %v545 = vsel %vm453, %v418, %v544
  %546 = vst [vmem:[%s32 + $0x88] sm:$0xf] %v545
  %v547 = vld [vmem:[%s32 + $0x8c] sm:$0x1]
  %v548 = vsel %vm35, %v419, %v547
  %549 = vst [vmem:[%s32 + $0x8c] sm:$0x1] %v548
  %v550 = vld [vmem:[#allocation2] sm:$0xf]
  %v551 = vld [vmem:[#allocation2 + $0x8] sm:$0xf]
  %v552 = vld [vmem:[#allocation2 + $0x10] sm:$0xf]
  %v553 = vld [vmem:[#allocation2 + $0x18] sm:$0xf]
  %v554 = vld [vmem:[#allocation2 + $0x20] sm:$0xf]
  %v555 = vld [vmem:[#allocation2 + $0x28] sm:$0xf]
  %v556 = vld [vmem:[#allocation2 + $0x30] sm:$0xf]
  %v557 = vld [vmem:[#allocation2 + $0x38] sm:$0xf]
  %v558 = vld [vmem:[#allocation2 + $0x50] sm:$0xf]
  %v559 = vld [vmem:[#allocation2 + $0x58] sm:$0xf]
  %v560 = vld [vmem:[#allocation2 + $0x60] sm:$0xf]
  %v561 = vld [vmem:[#allocation2 + $0x68] sm:$0xf]
  %v562 = vld [vmem:[#allocation2 + $0x70] sm:$0xf]
  %v563 = vld [vmem:[#allocation2 + $0x78] sm:$0xf]
  %v564 = vld [vmem:[#allocation2 + $0x80] sm:$0xf]
  %v565 = vld [vmem:[#allocation2 + $0x88] sm:$0xf]
  %v566 = vld [vmem:[#allocation2 + $0x4] sm:$0x1]
  %v567 = vld [vmem:[#allocation2 + $0xc] sm:$0x1]
  %v568 = vld [vmem:[#allocation2 + $0x14] sm:$0x1]
  %v569 = vld [vmem:[#allocation2 + $0x1c] sm:$0x1]
  %v570 = vld [vmem:[#allocation2 + $0x24] sm:$0x1]
  %v571 = vld [vmem:[#allocation2 + $0x2c] sm:$0x1]
  %v572 = vld [vmem:[#allocation2 + $0x34] sm:$0x1]
  %v573 = vld [vmem:[#allocation2 + $0x3c] sm:$0x1]
  %v574 = vld [vmem:[#allocation2 + $0x54] sm:$0x1]
  %v575 = vld [vmem:[#allocation2 + $0x5c] sm:$0x1]
  %v576 = vld [vmem:[#allocation2 + $0x64] sm:$0x1]
  %v577 = vld [vmem:[#allocation2 + $0x6c] sm:$0x1]
  %v578 = vld [vmem:[#allocation2 + $0x74] sm:$0x1]
  %v579 = vld [vmem:[#allocation2 + $0x7c] sm:$0x1]
  %v580 = vld [vmem:[#allocation2 + $0x84] sm:$0x1]
  %v581 = vld [vmem:[#allocation2 + $0x8c] sm:$0x1]
  %v582 = vld [vmem:[#allocation2] sm:$0xe]
  %v583 = vld [vmem:[#allocation2 + $0x8] sm:$0xe]
  %v584 = vld [vmem:[#allocation2 + $0x10] sm:$0xe]
  %v585 = vld [vmem:[#allocation2 + $0x18] sm:$0xe]
  %v586 = vld [vmem:[#allocation2 + $0x20] sm:$0xe]
  %v587 = vld [vmem:[#allocation2 + $0x28] sm:$0xe]
  %v588 = vld [vmem:[#allocation2 + $0x30] sm:$0xe]
  %v589 = vld [vmem:[#allocation2 + $0x38] sm:$0xe]
  %v590 = vld [vmem:[#allocation2 + $0x50] sm:$0xe]
  %v591 = vld [vmem:[#allocation2 + $0x58] sm:$0xe]
  %v592 = vld [vmem:[#allocation2 + $0x60] sm:$0xe]
  %v593 = vld [vmem:[#allocation2 + $0x68] sm:$0xe]
  %v594 = vld [vmem:[#allocation2 + $0x70] sm:$0xe]
  %v595 = vld [vmem:[#allocation2 + $0x78] sm:$0xe]
  %v596 = vld [vmem:[#allocation2 + $0x80] sm:$0xe]
  %v597 = vld [vmem:[#allocation2 + $0x88] sm:$0xe]
  %v598 = vld [vmem:[%s32] sm:$0xf]
  %v599 = vld [vmem:[%s32 + $0x8] sm:$0xf]
  %v600 = vld [vmem:[%s32 + $0x10] sm:$0xf]
  %v601 = vld [vmem:[%s32 + $0x18] sm:$0xf]
  %v602 = vld [vmem:[%s32 + $0x20] sm:$0xf]
  %v603 = vld [vmem:[%s32 + $0x28] sm:$0xf]
  %v604 = vld [vmem:[%s32 + $0x30] sm:$0xf]
  %v605 = vld [vmem:[%s32 + $0x38] sm:$0xf]
  %v606 = vld [vmem:[%s32 + $0x50] sm:$0xf]
  %v607 = vld [vmem:[%s32 + $0x58] sm:$0xf]
  %v608 = vld [vmem:[%s32 + $0x60] sm:$0xf]
  %v609 = vld [vmem:[%s32 + $0x68] sm:$0xf]
  %v610 = vld [vmem:[%s32 + $0x70] sm:$0xf]
  %v611 = vld [vmem:[%s32 + $0x78] sm:$0xf]
  %v612 = vld [vmem:[%s32 + $0x80] sm:$0xf]
  %v613 = vld [vmem:[%s32 + $0x88] sm:$0xf]
  %v614 = vld [vmem:[%s32 + $0x4] sm:$0x1]
  %v615 = vld [vmem:[%s32 + $0xc] sm:$0x1]
  %v616 = vld [vmem:[%s32 + $0x14] sm:$0x1]
  %v617 = vld [vmem:[%s32 + $0x1c] sm:$0x1]
  %v618 = vld [vmem:[%s32 + $0x24] sm:$0x1]
  %v619 = vld [vmem:[%s32 + $0x2c] sm:$0x1]
  %v620 = vld [vmem:[%s32 + $0x34] sm:$0x1]
  %v621 = vld [vmem:[%s32 + $0x3c] sm:$0x1]
  %v622 = vld [vmem:[%s32 + $0x54] sm:$0x1]
  %v623 = vld [vmem:[%s32 + $0x5c] sm:$0x1]
  %v624 = vld [vmem:[%s32 + $0x64] sm:$0x1]
  %v625 = vld [vmem:[%s32 + $0x6c] sm:$0x1]
  %v626 = vld [vmem:[%s32 + $0x74] sm:$0x1]
  %v627 = vld [vmem:[%s32 + $0x7c] sm:$0x1]
  %v628 = vld [vmem:[%s32 + $0x84] sm:$0x1]
  %v629 = vld [vmem:[%s32 + $0x8c] sm:$0x1]
  %v630 = vld [vmem:[%s32] sm:$0xe]
  %v631 = vld [vmem:[%s32 + $0x8] sm:$0xe]
  %v632 = vld [vmem:[%s32 + $0x10] sm:$0xe]
  %v633 = vld [vmem:[%s32 + $0x18] sm:$0xe]
  %v634 = vld [vmem:[%s32 + $0x20] sm:$0xe]
  %v635 = vld [vmem:[%s32 + $0x28] sm:$0xe]
  %v636 = vld [vmem:[%s32 + $0x30] sm:$0xe]
  %v637 = vld [vmem:[%s32 + $0x38] sm:$0xe]
  %v638 = vld [vmem:[%s32 + $0x50] sm:$0xe]
  %v639 = vld [vmem:[%s32 + $0x58] sm:$0xe]
  %v640 = vld [vmem:[%s32 + $0x60] sm:$0xe]
  %v641 = vld [vmem:[%s32 + $0x68] sm:$0xe]
  %v642 = vld [vmem:[%s32 + $0x70] sm:$0xe]
  %v643 = vld [vmem:[%s32 + $0x78] sm:$0xe]
  %v644 = vld [vmem:[%s32 + $0x80] sm:$0xe]
  %v645 = vld [vmem:[%s32 + $0x88] sm:$0xe]
  %s646 = scalar_lea.vmem [#allocation2], 16
  %v647 = vld [vmem:[%s646] sm:$0xf]
  %v648 = vld [vmem:[%s646 + $0x8] sm:$0xf]
  %v649 = vld [vmem:[%s646 + $0x10] sm:$0xf]
  %v650 = vld [vmem:[%s646 + $0x18] sm:$0xf]
  %v651 = vld [vmem:[%s646 + $0x20] sm:$0xf]
  %v652 = vld [vmem:[%s646 + $0x28] sm:$0xf]
  %v653 = vld [vmem:[%s646 + $0x30] sm:$0xf]
  %v654 = vld [vmem:[%s646 + $0x38] sm:$0xf]
  %v655 = vld [vmem:[%s646 + $0x50] sm:$0xf]
  %v656 = vld [vmem:[%s646 + $0x58] sm:$0xf]
  %v657 = vld [vmem:[%s646 + $0x60] sm:$0xf]
  %v658 = vld [vmem:[%s646 + $0x68] sm:$0xf]
  %v659 = vld [vmem:[%s646 + $0x70] sm:$0xf]
  %v660 = vld [vmem:[%s646 + $0x78] sm:$0xf]
  %v661 = vld [vmem:[%s646 + $0x80] sm:$0xf]
  %v662 = vld [vmem:[%s646 + $0x88] sm:$0xf]
  %v663 = vld [vmem:[%s646 + $0x4] sm:$0x1]
  %v664 = vld [vmem:[%s646 + $0xc] sm:$0x1]
  %v665 = vld [vmem:[%s646 + $0x14] sm:$0x1]
  %v666 = vld [vmem:[%s646 + $0x1c] sm:$0x1]
  %v667 = vld [vmem:[%s646 + $0x24] sm:$0x1]
  %v668 = vld [vmem:[%s646 + $0x2c] sm:$0x1]
  %v669 = vld [vmem:[%s646 + $0x34] sm:$0x1]
  %v670 = vld [vmem:[%s646 + $0x3c] sm:$0x1]
  %v671 = vld [vmem:[%s646 + $0x54] sm:$0x1]
  %v672 = vld [vmem:[%s646 + $0x5c] sm:$0x1]
  %v673 = vld [vmem:[%s646 + $0x64] sm:$0x1]
  %v674 = vld [vmem:[%s646 + $0x6c] sm:$0x1]
  %v675 = vld [vmem:[%s646 + $0x74] sm:$0x1]
  %v676 = vld [vmem:[%s646 + $0x7c] sm:$0x1]
  %v677 = vld [vmem:[%s646 + $0x84] sm:$0x1]
  %v678 = vld [vmem:[%s646 + $0x8c] sm:$0x1]
  %v679 = vld [vmem:[%s646] sm:$0xe]
  %v680 = vld [vmem:[%s646 + $0x8] sm:$0xe]
  %v681 = vld [vmem:[%s646 + $0x10] sm:$0xe]
  %v682 = vld [vmem:[%s646 + $0x18] sm:$0xe]
  %v683 = vld [vmem:[%s646 + $0x20] sm:$0xe]
  %v684 = vld [vmem:[%s646 + $0x28] sm:$0xe]
  %v685 = vld [vmem:[%s646 + $0x30] sm:$0xe]
  %v686 = vld [vmem:[%s646 + $0x38] sm:$0xe]
  %v687 = vld [vmem:[%s646 + $0x50] sm:$0xe]
  %v688 = vld [vmem:[%s646 + $0x58] sm:$0xe]
  %v689 = vld [vmem:[%s646 + $0x60] sm:$0xe]
  %v690 = vld [vmem:[%s646 + $0x68] sm:$0xe]
  %v691 = vld [vmem:[%s646 + $0x70] sm:$0xe]
  %v692 = vld [vmem:[%s646 + $0x78] sm:$0xe]
  %v693 = vld [vmem:[%s646 + $0x80] sm:$0xe]
  %v694 = vld [vmem:[%s646 + $0x88] sm:$0xe]
  %v727 = vunpack.c.l.b16 %v550
  %v728 = vunpack.c.l.b16 %v566
  %v729 = vunpack.c.l.b16 %v551
  %v730 = vunpack.c.l.b16 %v567
  %v731 = vunpack.c.l.b16 %v552
  %v732 = vunpack.c.l.b16 %v568
  %v733 = vunpack.c.l.b16 %v553
  %v734 = vunpack.c.l.b16 %v569
  %v735 = vunpack.c.l.b16 %v554
  %v736 = vunpack.c.l.b16 %v570
  %v737 = vunpack.c.l.b16 %v555
  %v738 = vunpack.c.l.b16 %v571
  %v739 = vunpack.c.l.b16 %v556
  %v740 = vunpack.c.l.b16 %v572
  %v741 = vunpack.c.l.b16 %v557
  %v742 = vunpack.c.l.b16 %v573
  %v743 = vunpack.c.l.b16 %v558
  %v744 = vunpack.c.l.b16 %v574
  %v745 = vunpack.c.l.b16 %v559
  %v746 = vunpack.c.l.b16 %v575
  %v747 = vunpack.c.l.b16 %v560
  %v748 = vunpack.c.l.b16 %v576
  %v749 = vunpack.c.l.b16 %v561
  %v750 = vunpack.c.l.b16 %v577
  %v751 = vunpack.c.l.b16 %v562
  %v752 = vunpack.c.l.b16 %v578
  %v753 = vunpack.c.l.b16 %v563
  %v754 = vunpack.c.l.b16 %v579
  %v755 = vunpack.c.l.b16 %v564
  %v756 = vunpack.c.l.b16 %v580
  %v757 = vunpack.c.l.b16 %v565
  %v758 = vunpack.c.l.b16 %v581
  %v759 = vpack.c.b16 %v728, %v727
  %v760 = vpack.c.b16 %v730, %v729
  %v761 = vpack.c.b16 %v732, %v731
  %v762 = vpack.c.b16 %v734, %v733
  %v763 = vpack.c.b16 %v736, %v735
  %v764 = vpack.c.b16 %v738, %v737
  %v765 = vpack.c.b16 %v740, %v739
  %v766 = vpack.c.b16 %v742, %v741
  %v767 = vpack.c.b16 %v744, %v743
  %v768 = vpack.c.b16 %v746, %v745
  %v769 = vpack.c.b16 %v748, %v747
  %v770 = vpack.c.b16 %v750, %v749
  %v771 = vpack.c.b16 %v752, %v751
  %v772 = vpack.c.b16 %v754, %v753
  %v773 = vpack.c.b16 %v756, %v755
  %v774 = vpack.c.b16 %v758, %v757
  %v776 = vshrl.u32 %v759, 16
  %v778 = vshll.u32 %v759, 16
  %v780 = vrot.slane %v778, 1
  %v781 = vor.u32 %v776, %v780
  %v783 = vshrl.u32 %v760, 16
  %v785 = vshll.u32 %v760, 16
  %v787 = vrot.slane %v785, 1
  %v788 = vor.u32 %v783, %v787
  %v790 = vshrl.u32 %v761, 16
  %v792 = vshll.u32 %v761, 16
  %v794 = vrot.slane %v792, 1
  %v795 = vor.u32 %v790, %v794
  %v797 = vshrl.u32 %v762, 16
  %v799 = vshll.u32 %v762, 16
  %v801 = vrot.slane %v799, 1
  %v802 = vor.u32 %v797, %v801
  %v804 = vshrl.u32 %v763, 16
  %v806 = vshll.u32 %v763, 16
  %v808 = vrot.slane %v806, 1
  %v809 = vor.u32 %v804, %v808
  %v811 = vshrl.u32 %v764, 16
  %v813 = vshll.u32 %v764, 16
  %v815 = vrot.slane %v813, 1
  %v816 = vor.u32 %v811, %v815
  %v818 = vshrl.u32 %v765, 16
  %v820 = vshll.u32 %v765, 16
  %v822 = vrot.slane %v820, 1
  %v823 = vor.u32 %v818, %v822
  %v825 = vshrl.u32 %v766, 16
  %v827 = vshll.u32 %v766, 16
  %v829 = vrot.slane %v827, 1
  %v830 = vor.u32 %v825, %v829
  %v832 = vshrl.u32 %v767, 16
  %v834 = vshll.u32 %v767, 16
  %v836 = vrot.slane %v834, 1
  %v837 = vor.u32 %v832, %v836
  %v839 = vshrl.u32 %v768, 16
  %v841 = vshll.u32 %v768, 16
  %v843 = vrot.slane %v841, 1
  %v844 = vor.u32 %v839, %v843
  %v846 = vshrl.u32 %v769, 16
  %v848 = vshll.u32 %v769, 16
  %v850 = vrot.slane %v848, 1
  %v851 = vor.u32 %v846, %v850
  %v853 = vshrl.u32 %v770, 16
  %v855 = vshll.u32 %v770, 16
  %v857 = vrot.slane %v855, 1
  %v858 = vor.u32 %v853, %v857
  %v860 = vshrl.u32 %v771, 16
  %v862 = vshll.u32 %v771, 16
  %v864 = vrot.slane %v862, 1
  %v865 = vor.u32 %v860, %v864
  %v867 = vshrl.u32 %v772, 16
  %v869 = vshll.u32 %v772, 16
  %v871 = vrot.slane %v869, 1
  %v872 = vor.u32 %v867, %v871
  %v874 = vshrl.u32 %v773, 16
  %v876 = vshll.u32 %v773, 16
  %v878 = vrot.slane %v876, 1
  %v879 = vor.u32 %v874, %v878
  %v881 = vshrl.u32 %v774, 16
  %v883 = vshll.u32 %v774, 16
  %v885 = vrot.slane %v883, 1
  %v886 = vor.u32 %v881, %v885
  %887 = vrot.lane.b32.xlu0 %v781, 8
  %v888 = vpop.permute.xlu0 %887
  %889 = vrot.lane.b32.xlu0 %v788, 8
  %v890 = vpop.permute.xlu0 %889
  %891 = vrot.lane.b32.xlu0 %v795, 8
  %v892 = vpop.permute.xlu0 %891
  %893 = vrot.lane.b32.xlu0 %v802, 8
  %v894 = vpop.permute.xlu0 %893
  %895 = vrot.lane.b32.xlu0 %v809, 8
  %v896 = vpop.permute.xlu0 %895
  %897 = vrot.lane.b32.xlu0 %v816, 8
  %v898 = vpop.permute.xlu0 %897
  %899 = vrot.lane.b32.xlu0 %v823, 8
  %v900 = vpop.permute.xlu0 %899
  %901 = vrot.lane.b32.xlu0 %v830, 8
  %v902 = vpop.permute.xlu0 %901
  %903 = vrot.lane.b32.xlu0 %v837, 8
  %v904 = vpop.permute.xlu0 %903
  %905 = vrot.lane.b32.xlu0 %v844, 8
  %v906 = vpop.permute.xlu0 %905
  %907 = vrot.lane.b32.xlu0 %v851, 8
  %v908 = vpop.permute.xlu0 %907
  %909 = vrot.lane.b32.xlu0 %v858, 8
  %v910 = vpop.permute.xlu0 %909
  %911 = vrot.lane.b32.xlu0 %v865, 8
  %v912 = vpop.permute.xlu0 %911
  %913 = vrot.lane.b32.xlu0 %v872, 8
  %v914 = vpop.permute.xlu0 %913
  %915 = vrot.lane.b32.xlu0 %v879, 8
  %v916 = vpop.permute.xlu0 %915
  %917 = vrot.lane.b32.xlu0 %v886, 8
  %v918 = vpop.permute.xlu0 %917
  %v935 = vunpack.c.l.b16 %v582
  %v936 = vunpack.c.l.b16 %v583
  %v937 = vunpack.c.l.b16 %v584
  %v938 = vunpack.c.l.b16 %v585
  %v939 = vunpack.c.l.b16 %v586
  %v940 = vunpack.c.l.b16 %v587
  %v941 = vunpack.c.l.b16 %v588
  %v942 = vunpack.c.l.b16 %v589
  %v943 = vunpack.c.l.b16 %v590
  %v944 = vunpack.c.l.b16 %v591
  %v945 = vunpack.c.l.b16 %v592
  %v946 = vunpack.c.l.b16 %v593
  %v947 = vunpack.c.l.b16 %v594
  %v948 = vunpack.c.l.b16 %v595
  %v949 = vunpack.c.l.b16 %v596
  %v950 = vunpack.c.l.b16 %v597
  %v951 = vpack.c.b16 %v728, %v935
  %v952 = vpack.c.b16 %v730, %v936
  %v953 = vpack.c.b16 %v732, %v937
  %v954 = vpack.c.b16 %v734, %v938
  %v955 = vpack.c.b16 %v736, %v939
  %v956 = vpack.c.b16 %v738, %v940
  %v957 = vpack.c.b16 %v740, %v941
  %v958 = vpack.c.b16 %v742, %v942
  %v959 = vpack.c.b16 %v744, %v943
  %v960 = vpack.c.b16 %v746, %v944
  %v961 = vpack.c.b16 %v748, %v945
  %v962 = vpack.c.b16 %v750, %v946
  %v963 = vpack.c.b16 %v752, %v947
  %v964 = vpack.c.b16 %v754, %v948
  %v965 = vpack.c.b16 %v756, %v949
  %v966 = vpack.c.b16 %v758, %v950
  %v967 = vrot.slane %v951, 1
  %v968 = vrot.slane %v952, 1
  %v969 = vrot.slane %v953, 1
  %v970 = vrot.slane %v954, 1
  %v971 = vrot.slane %v955, 1
  %v972 = vrot.slane %v956, 1
  %v973 = vrot.slane %v957, 1
  %v974 = vrot.slane %v958, 1
  %v975 = vrot.slane %v959, 1
  %v976 = vrot.slane %v960, 1
  %v977 = vrot.slane %v961, 1
  %v978 = vrot.slane %v962, 1
  %v979 = vrot.slane %v963, 1
  %v980 = vrot.slane %v964, 1
  %v981 = vrot.slane %v965, 1
  %v982 = vrot.slane %v966, 1
  %983 = vrot.lane.b32.xlu0 %v967, 16
  %v984 = vpop.permute.xlu0 %983
  %985 = vrot.lane.b32.xlu0 %v968, 16
  %v986 = vpop.permute.xlu0 %985
  %987 = vrot.lane.b32.xlu0 %v969, 16
  %v988 = vpop.permute.xlu0 %987
  %989 = vrot.lane.b32.xlu0 %v970, 16
  %v990 = vpop.permute.xlu0 %989
  %991 = vrot.lane.b32.xlu0 %v971, 16
  %v992 = vpop.permute.xlu0 %991
  %993 = vrot.lane.b32.xlu0 %v972, 16
  %v994 = vpop.permute.xlu0 %993
  %995 = vrot.lane.b32.xlu0 %v973, 16
  %v996 = vpop.permute.xlu0 %995
  %997 = vrot.lane.b32.xlu0 %v974, 16
  %v998 = vpop.permute.xlu0 %997
  %999 = vrot.lane.b32.xlu0 %v975, 16
  %v1000 = vpop.permute.xlu0 %999
  %1001 = vrot.lane.b32.xlu0 %v976, 16
  %v1002 = vpop.permute.xlu0 %1001
  %1003 = vrot.lane.b32.xlu0 %v977, 16
  %v1004 = vpop.permute.xlu0 %1003
  %1005 = vrot.lane.b32.xlu0 %v978, 16
  %v1006 = vpop.permute.xlu0 %1005
  %1007 = vrot.lane.b32.xlu0 %v979, 16
  %v1008 = vpop.permute.xlu0 %1007
  %1009 = vrot.lane.b32.xlu0 %v980, 16
  %v1010 = vpop.permute.xlu0 %1009
  %1011 = vrot.lane.b32.xlu0 %v981, 16
  %v1012 = vpop.permute.xlu0 %1011
  %1013 = vrot.lane.b32.xlu0 %v982, 16
  %v1014 = vpop.permute.xlu0 %1013
  %v1031 = vunpack.c.l.b16 %v598
  %v1032 = vunpack.c.l.b16 %v599
  %v1033 = vunpack.c.l.b16 %v600
  %v1034 = vunpack.c.l.b16 %v601
  %v1035 = vunpack.c.l.b16 %v602
  %v1036 = vunpack.c.l.b16 %v603
  %v1037 = vunpack.c.l.b16 %v604
  %v1038 = vunpack.c.l.b16 %v605
  %v1039 = vunpack.c.l.b16 %v606
  %v1040 = vunpack.c.l.b16 %v607
  %v1041 = vunpack.c.l.b16 %v608
  %v1042 = vunpack.c.l.b16 %v609
  %v1043 = vunpack.c.l.b16 %v610
  %v1044 = vunpack.c.l.b16 %v611
  %v1045 = vunpack.c.l.b16 %v612
  %v1046 = vunpack.c.l.b16 %v613
  %v1047 = vpack.c.b16 %v1031, %v1031
  %v1048 = vpack.c.b16 %v1032, %v1032
  %v1049 = vpack.c.b16 %v1033, %v1033
  %v1050 = vpack.c.b16 %v1034, %v1034
  %v1051 = vpack.c.b16 %v1035, %v1035
  %v1052 = vpack.c.b16 %v1036, %v1036
  %v1053 = vpack.c.b16 %v1037, %v1037
  %v1054 = vpack.c.b16 %v1038, %v1038
  %v1055 = vpack.c.b16 %v1039, %v1039
  %v1056 = vpack.c.b16 %v1040, %v1040
  %v1057 = vpack.c.b16 %v1041, %v1041
  %v1058 = vpack.c.b16 %v1042, %v1042
  %v1059 = vpack.c.b16 %v1043, %v1043
  %v1060 = vpack.c.b16 %v1044, %v1044
  %v1061 = vpack.c.b16 %v1045, %v1045
  %v1062 = vpack.c.b16 %v1046, %v1046
  %1063 = vrot.lane.b32.xlu0 %v1047, 24
  %v1064 = vpop.permute.xlu0 %1063
  %1065 = vrot.lane.b32.xlu0 %v1048, 24
  %v1066 = vpop.permute.xlu0 %1065
  %1067 = vrot.lane.b32.xlu0 %v1049, 24
  %v1068 = vpop.permute.xlu0 %1067
  %1069 = vrot.lane.b32.xlu0 %v1050, 24
  %v1070 = vpop.permute.xlu0 %1069
  %1071 = vrot.lane.b32.xlu0 %v1051, 24
  %v1072 = vpop.permute.xlu0 %1071
  %1073 = vrot.lane.b32.xlu0 %v1052, 24
  %v1074 = vpop.permute.xlu0 %1073
  %1075 = vrot.lane.b32.xlu0 %v1053, 24
  %v1076 = vpop.permute.xlu0 %1075
  %1077 = vrot.lane.b32.xlu0 %v1054, 24
  %v1078 = vpop.permute.xlu0 %1077
  %1079 = vrot.lane.b32.xlu0 %v1055, 24
  %v1080 = vpop.permute.xlu0 %1079
  %1081 = vrot.lane.b32.xlu0 %v1056, 24
  %v1082 = vpop.permute.xlu0 %1081
  %1083 = vrot.lane.b32.xlu0 %v1057, 24
  %v1084 = vpop.permute.xlu0 %1083
  %1085 = vrot.lane.b32.xlu0 %v1058, 24
  %v1086 = vpop.permute.xlu0 %1085
  %1087 = vrot.lane.b32.xlu0 %v1059, 24
  %v1088 = vpop.permute.xlu0 %1087
  %1089 = vrot.lane.b32.xlu0 %v1060, 24
  %v1090 = vpop.permute.xlu0 %1089
  %1091 = vrot.lane.b32.xlu0 %v1061, 24
  %v1092 = vpop.permute.xlu0 %1091
  %1093 = vrot.lane.b32.xlu0 %v1062, 24
  %v1094 = vpop.permute.xlu0 %1093
  %v1111 = vunpack.c.l.b16 %v614
  %v1112 = vunpack.c.l.b16 %v615
  %v1113 = vunpack.c.l.b16 %v616
  %v1114 = vunpack.c.l.b16 %v617
  %v1115 = vunpack.c.l.b16 %v618
  %v1116 = vunpack.c.l.b16 %v619
  %v1117 = vunpack.c.l.b16 %v620
  %v1118 = vunpack.c.l.b16 %v621
  %v1119 = vunpack.c.l.b16 %v622
  %v1120 = vunpack.c.l.b16 %v623
  %v1121 = vunpack.c.l.b16 %v624
  %v1122 = vunpack.c.l.b16 %v625
  %v1123 = vunpack.c.l.b16 %v626
  %v1124 = vunpack.c.l.b16 %v627
  %v1125 = vunpack.c.l.b16 %v628
  %v1126 = vunpack.c.l.b16 %v629
  %v1127 = vpack.c.b16 %v1111, %v1031
  %v1128 = vpack.c.b16 %v1112, %v1032
  %v1129 = vpack.c.b16 %v1113, %v1033
  %v1130 = vpack.c.b16 %v1114, %v1034
  %v1131 = vpack.c.b16 %v1115, %v1035
  %v1132 = vpack.c.b16 %v1116, %v1036
  %v1133 = vpack.c.b16 %v1117, %v1037
  %v1134 = vpack.c.b16 %v1118, %v1038
  %v1135 = vpack.c.b16 %v1119, %v1039
  %v1136 = vpack.c.b16 %v1120, %v1040
  %v1137 = vpack.c.b16 %v1121, %v1041
  %v1138 = vpack.c.b16 %v1122, %v1042
  %v1139 = vpack.c.b16 %v1123, %v1043
  %v1140 = vpack.c.b16 %v1124, %v1044
  %v1141 = vpack.c.b16 %v1125, %v1045
  %v1142 = vpack.c.b16 %v1126, %v1046
  %v1144 = vshrl.u32 %v1127, 16
  %v1146 = vshll.u32 %v1127, 16
  %v1148 = vrot.slane %v1146, 1
  %v1149 = vor.u32 %v1144, %v1148
  %v1151 = vshrl.u32 %v1128, 16
  %v1153 = vshll.u32 %v1128, 16
  %v1155 = vrot.slane %v1153, 1
  %v1156 = vor.u32 %v1151, %v1155
  %v1158 = vshrl.u32 %v1129, 16
  %v1160 = vshll.u32 %v1129, 16
  %v1162 = vrot.slane %v1160, 1
  %v1163 = vor.u32 %v1158, %v1162
  %v1165 = vshrl.u32 %v1130, 16
  %v1167 = vshll.u32 %v1130, 16
  %v1169 = vrot.slane %v1167, 1
  %v1170 = vor.u32 %v1165, %v1169
  %v1172 = vshrl.u32 %v1131, 16
  %v1174 = vshll.u32 %v1131, 16
  %v1176 = vrot.slane %v1174, 1
  %v1177 = vor.u32 %v1172, %v1176
  %v1179 = vshrl.u32 %v1132, 16
  %v1181 = vshll.u32 %v1132, 16
  %v1183 = vrot.slane %v1181, 1
  %v1184 = vor.u32 %v1179, %v1183
  %v1186 = vshrl.u32 %v1133, 16
  %v1188 = vshll.u32 %v1133, 16
  %v1190 = vrot.slane %v1188, 1
  %v1191 = vor.u32 %v1186, %v1190
  %v1193 = vshrl.u32 %v1134, 16
  %v1195 = vshll.u32 %v1134, 16
  %v1197 = vrot.slane %v1195, 1
  %v1198 = vor.u32 %v1193, %v1197
  %v1200 = vshrl.u32 %v1135, 16
  %v1202 = vshll.u32 %v1135, 16
  %v1204 = vrot.slane %v1202, 1
  %v1205 = vor.u32 %v1200, %v1204
  %v1207 = vshrl.u32 %v1136, 16
  %v1209 = vshll.u32 %v1136, 16
  %v1211 = vrot.slane %v1209, 1
  %v1212 = vor.u32 %v1207, %v1211
  %v1214 = vshrl.u32 %v1137, 16
  %v1216 = vshll.u32 %v1137, 16
  %v1218 = vrot.slane %v1216, 1
  %v1219 = vor.u32 %v1214, %v1218
  %v1221 = vshrl.u32 %v1138, 16
  %v1223 = vshll.u32 %v1138, 16
  %v1225 = vrot.slane %v1223, 1
  %v1226 = vor.u32 %v1221, %v1225
  %v1228 = vshrl.u32 %v1139, 16
  %v1230 = vshll.u32 %v1139, 16
  %v1232 = vrot.slane %v1230, 1
  %v1233 = vor.u32 %v1228, %v1232
  %v1235 = vshrl.u32 %v1140, 16
  %v1237 = vshll.u32 %v1140, 16
  %v1239 = vrot.slane %v1237, 1
  %v1240 = vor.u32 %v1235, %v1239
  %v1242 = vshrl.u32 %v1141, 16
  %v1244 = vshll.u32 %v1141, 16
  %v1246 = vrot.slane %v1244, 1
  %v1247 = vor.u32 %v1242, %v1246
  %v1249 = vshrl.u32 %v1142, 16
  %v1251 = vshll.u32 %v1142, 16
  %v1253 = vrot.slane %v1251, 1
  %v1254 = vor.u32 %v1249, %v1253
  %1255 = vrot.lane.b32.xlu0 %v1149, 32
  %v1256 = vpop.permute.xlu0 %1255
  %1257 = vrot.lane.b32.xlu0 %v1156, 32
  %v1258 = vpop.permute.xlu0 %1257
  %1259 = vrot.lane.b32.xlu0 %v1163, 32
  %v1260 = vpop.permute.xlu0 %1259
  %1261 = vrot.lane.b32.xlu0 %v1170, 32
  %v1262 = vpop.permute.xlu0 %1261
  %1263 = vrot.lane.b32.xlu0 %v1177, 32
  %v1264 = vpop.permute.xlu0 %1263
  %1265 = vrot.lane.b32.xlu0 %v1184, 32
  %v1266 = vpop.permute.xlu0 %1265
  %1267 = vrot.lane.b32.xlu0 %v1191, 32
  %v1268 = vpop.permute.xlu0 %1267
  %1269 = vrot.lane.b32.xlu0 %v1198, 32
  %v1270 = vpop.permute.xlu0 %1269
  %1271 = vrot.lane.b32.xlu0 %v1205, 32
  %v1272 = vpop.permute.xlu0 %1271
  %1273 = vrot.lane.b32.xlu0 %v1212, 32
  %v1274 = vpop.permute.xlu0 %1273
  %1275 = vrot.lane.b32.xlu0 %v1219, 32
  %v1276 = vpop.permute.xlu0 %1275
  %1277 = vrot.lane.b32.xlu0 %v1226, 32
  %v1278 = vpop.permute.xlu0 %1277
  %1279 = vrot.lane.b32.xlu0 %v1233, 32
  %v1280 = vpop.permute.xlu0 %1279
  %1281 = vrot.lane.b32.xlu0 %v1240, 32
  %v1282 = vpop.permute.xlu0 %1281
  %1283 = vrot.lane.b32.xlu0 %v1247, 32
  %v1284 = vpop.permute.xlu0 %1283
  %1285 = vrot.lane.b32.xlu0 %v1254, 32
  %v1286 = vpop.permute.xlu0 %1285
  %v1303 = vunpack.c.l.b16 %v630
  %v1304 = vunpack.c.l.b16 %v631
  %v1305 = vunpack.c.l.b16 %v632
  %v1306 = vunpack.c.l.b16 %v633
  %v1307 = vunpack.c.l.b16 %v634
  %v1308 = vunpack.c.l.b16 %v635
  %v1309 = vunpack.c.l.b16 %v636
  %v1310 = vunpack.c.l.b16 %v637
  %v1311 = vunpack.c.l.b16 %v638
  %v1312 = vunpack.c.l.b16 %v639
  %v1313 = vunpack.c.l.b16 %v640
  %v1314 = vunpack.c.l.b16 %v641
  %v1315 = vunpack.c.l.b16 %v642
  %v1316 = vunpack.c.l.b16 %v643
  %v1317 = vunpack.c.l.b16 %v644
  %v1318 = vunpack.c.l.b16 %v645
  %v1319 = vpack.c.b16 %v1111, %v1303
  %v1320 = vpack.c.b16 %v1112, %v1304
  %v1321 = vpack.c.b16 %v1113, %v1305
  %v1322 = vpack.c.b16 %v1114, %v1306
  %v1323 = vpack.c.b16 %v1115, %v1307
  %v1324 = vpack.c.b16 %v1116, %v1308
  %v1325 = vpack.c.b16 %v1117, %v1309
  %v1326 = vpack.c.b16 %v1118, %v1310
  %v1327 = vpack.c.b16 %v1119, %v1311
  %v1328 = vpack.c.b16 %v1120, %v1312
  %v1329 = vpack.c.b16 %v1121, %v1313
  %v1330 = vpack.c.b16 %v1122, %v1314
  %v1331 = vpack.c.b16 %v1123, %v1315
  %v1332 = vpack.c.b16 %v1124, %v1316
  %v1333 = vpack.c.b16 %v1125, %v1317
  %v1334 = vpack.c.b16 %v1126, %v1318
  %v1335 = vrot.slane %v1319, 1
  %v1336 = vrot.slane %v1320, 1
  %v1337 = vrot.slane %v1321, 1
  %v1338 = vrot.slane %v1322, 1
  %v1339 = vrot.slane %v1323, 1
  %v1340 = vrot.slane %v1324, 1
  %v1341 = vrot.slane %v1325, 1
  %v1342 = vrot.slane %v1326, 1
  %v1343 = vrot.slane %v1327, 1
  %v1344 = vrot.slane %v1328, 1
  %v1345 = vrot.slane %v1329, 1
  %v1346 = vrot.slane %v1330, 1
  %v1347 = vrot.slane %v1331, 1
  %v1348 = vrot.slane %v1332, 1
  %v1349 = vrot.slane %v1333, 1
  %v1350 = vrot.slane %v1334, 1
  %1351 = vrot.lane.b32.xlu0 %v1335, 40
  %v1352 = vpop.permute.xlu0 %1351
  %1353 = vrot.lane.b32.xlu0 %v1336, 40
  %v1354 = vpop.permute.xlu0 %1353
  %1355 = vrot.lane.b32.xlu0 %v1337, 40
  %v1356 = vpop.permute.xlu0 %1355
  %1357 = vrot.lane.b32.xlu0 %v1338, 40
  %v1358 = vpop.permute.xlu0 %1357
  %1359 = vrot.lane.b32.xlu0 %v1339, 40
  %v1360 = vpop.permute.xlu0 %1359
  %1361 = vrot.lane.b32.xlu0 %v1340, 40
  %v1362 = vpop.permute.xlu0 %1361
  %1363 = vrot.lane.b32.xlu0 %v1341, 40
  %v1364 = vpop.permute.xlu0 %1363
  %1365 = vrot.lane.b32.xlu0 %v1342, 40
  %v1366 = vpop.permute.xlu0 %1365
  %1367 = vrot.lane.b32.xlu0 %v1343, 40
  %v1368 = vpop.permute.xlu0 %1367
  %1369 = vrot.lane.b32.xlu0 %v1344, 40
  %v1370 = vpop.permute.xlu0 %1369
  %1371 = vrot.lane.b32.xlu0 %v1345, 40
  %v1372 = vpop.permute.xlu0 %1371
  %1373 = vrot.lane.b32.xlu0 %v1346, 40
  %v1374 = vpop.permute.xlu0 %1373
  %1375 = vrot.lane.b32.xlu0 %v1347, 40
  %v1376 = vpop.permute.xlu0 %1375
  %1377 = vrot.lane.b32.xlu0 %v1348, 40
  %v1378 = vpop.permute.xlu0 %1377
  %1379 = vrot.lane.b32.xlu0 %v1349, 40
  %v1380 = vpop.permute.xlu0 %1379
  %1381 = vrot.lane.b32.xlu0 %v1350, 40
  %v1382 = vpop.permute.xlu0 %1381
  %v1399 = vunpack.c.l.b16 %v647
  %v1400 = vunpack.c.l.b16 %v648
  %v1401 = vunpack.c.l.b16 %v649
  %v1402 = vunpack.c.l.b16 %v650
  %v1403 = vunpack.c.l.b16 %v651
  %v1404 = vunpack.c.l.b16 %v652
  %v1405 = vunpack.c.l.b16 %v653
  %v1406 = vunpack.c.l.b16 %v654
  %v1407 = vunpack.c.l.b16 %v655
  %v1408 = vunpack.c.l.b16 %v656
  %v1409 = vunpack.c.l.b16 %v657
  %v1410 = vunpack.c.l.b16 %v658
  %v1411 = vunpack.c.l.b16 %v659
  %v1412 = vunpack.c.l.b16 %v660
  %v1413 = vunpack.c.l.b16 %v661
  %v1414 = vunpack.c.l.b16 %v662
  %v1415 = vpack.c.b16 %v1399, %v1399
  %v1416 = vpack.c.b16 %v1400, %v1400
  %v1417 = vpack.c.b16 %v1401, %v1401
  %v1418 = vpack.c.b16 %v1402, %v1402
  %v1419 = vpack.c.b16 %v1403, %v1403
  %v1420 = vpack.c.b16 %v1404, %v1404
  %v1421 = vpack.c.b16 %v1405, %v1405
  %v1422 = vpack.c.b16 %v1406, %v1406
  %v1423 = vpack.c.b16 %v1407, %v1407
  %v1424 = vpack.c.b16 %v1408, %v1408
  %v1425 = vpack.c.b16 %v1409, %v1409
  %v1426 = vpack.c.b16 %v1410, %v1410
  %v1427 = vpack.c.b16 %v1411, %v1411
  %v1428 = vpack.c.b16 %v1412, %v1412
  %v1429 = vpack.c.b16 %v1413, %v1413
  %v1430 = vpack.c.b16 %v1414, %v1414
  %1431 = vrot.lane.b32.xlu0 %v1415, 48
  %v1432 = vpop.permute.xlu0 %1431
  %1433 = vrot.lane.b32.xlu0 %v1416, 48
  %v1434 = vpop.permute.xlu0 %1433
  %1435 = vrot.lane.b32.xlu0 %v1417, 48
  %v1436 = vpop.permute.xlu0 %1435
  %1437 = vrot.lane.b32.xlu0 %v1418, 48
  %v1438 = vpop.permute.xlu0 %1437
  %1439 = vrot.lane.b32.xlu0 %v1419, 48
  %v1440 = vpop.permute.xlu0 %1439
  %1441 = vrot.lane.b32.xlu0 %v1420, 48
  %v1442 = vpop.permute.xlu0 %1441
  %1443 = vrot.lane.b32.xlu0 %v1421, 48
  %v1444 = vpop.permute.xlu0 %1443
  %1445 = vrot.lane.b32.xlu0 %v1422, 48
  %v1446 = vpop.permute.xlu0 %1445
  %1447 = vrot.lane.b32.xlu0 %v1423, 48
  %v1448 = vpop.permute.xlu0 %1447
  %1449 = vrot.lane.b32.xlu0 %v1424, 48
  %v1450 = vpop.permute.xlu0 %1449
  %1451 = vrot.lane.b32.xlu0 %v1425, 48
  %v1452 = vpop.permute.xlu0 %1451
  %1453 = vrot.lane.b32.xlu0 %v1426, 48
  %v1454 = vpop.permute.xlu0 %1453
  %1455 = vrot.lane.b32.xlu0 %v1427, 48
  %v1456 = vpop.permute.xlu0 %1455
  %1457 = vrot.lane.b32.xlu0 %v1428, 48
  %v1458 = vpop.permute.xlu0 %1457
  %1459 = vrot.lane.b32.xlu0 %v1429, 48
  %v1460 = vpop.permute.xlu0 %1459
  %1461 = vrot.lane.b32.xlu0 %v1430, 48
  %v1462 = vpop.permute.xlu0 %1461
  %v1479 = vunpack.c.l.b16 %v663
  %v1480 = vunpack.c.l.b16 %v664
  %v1481 = vunpack.c.l.b16 %v665
  %v1482 = vunpack.c.l.b16 %v666
  %v1483 = vunpack.c.l.b16 %v667
  %v1484 = vunpack.c.l.b16 %v668
  %v1485 = vunpack.c.l.b16 %v669
  %v1486 = vunpack.c.l.b16 %v670
  %v1487 = vunpack.c.l.b16 %v671
  %v1488 = vunpack.c.l.b16 %v672
  %v1489 = vunpack.c.l.b16 %v673
  %v1490 = vunpack.c.l.b16 %v674
  %v1491 = vunpack.c.l.b16 %v675
  %v1492 = vunpack.c.l.b16 %v676
  %v1493 = vunpack.c.l.b16 %v677
  %v1494 = vunpack.c.l.b16 %v678
  %v1495 = vpack.c.b16 %v1479, %v1399
  %v1496 = vpack.c.b16 %v1480, %v1400
  %v1497 = vpack.c.b16 %v1481, %v1401
  %v1498 = vpack.c.b16 %v1482, %v1402
  %v1499 = vpack.c.b16 %v1483, %v1403
  %v1500 = vpack.c.b16 %v1484, %v1404
  %v1501 = vpack.c.b16 %v1485, %v1405
  %v1502 = vpack.c.b16 %v1486, %v1406
  %v1503 = vpack.c.b16 %v1487, %v1407
  %v1504 = vpack.c.b16 %v1488, %v1408
  %v1505 = vpack.c.b16 %v1489, %v1409
  %v1506 = vpack.c.b16 %v1490, %v1410
  %v1507 = vpack.c.b16 %v1491, %v1411
  %v1508 = vpack.c.b16 %v1492, %v1412
  %v1509 = vpack.c.b16 %v1493, %v1413
  %v1510 = vpack.c.b16 %v1494, %v1414
  %v1512 = vshrl.u32 %v1495, 16
  %v1514 = vshll.u32 %v1495, 16
  %v1516 = vrot.slane %v1514, 1
  %v1517 = vor.u32 %v1512, %v1516
  %v1519 = vshrl.u32 %v1496, 16
  %v1521 = vshll.u32 %v1496, 16
  %v1523 = vrot.slane %v1521, 1
  %v1524 = vor.u32 %v1519, %v1523
  %v1526 = vshrl.u32 %v1497, 16
  %v1528 = vshll.u32 %v1497, 16
  %v1530 = vrot.slane %v1528, 1
  %v1531 = vor.u32 %v1526, %v1530
  %v1533 = vshrl.u32 %v1498, 16
  %v1535 = vshll.u32 %v1498, 16
  %v1537 = vrot.slane %v1535, 1
  %v1538 = vor.u32 %v1533, %v1537
  %v1540 = vshrl.u32 %v1499, 16
  %v1542 = vshll.u32 %v1499, 16
  %v1544 = vrot.slane %v1542, 1
  %v1545 = vor.u32 %v1540, %v1544
  %v1547 = vshrl.u32 %v1500, 16
  %v1549 = vshll.u32 %v1500, 16
  %v1551 = vrot.slane %v1549, 1
  %v1552 = vor.u32 %v1547, %v1551
  %v1554 = vshrl.u32 %v1501, 16
  %v1556 = vshll.u32 %v1501, 16
  %v1558 = vrot.slane %v1556, 1
  %v1559 = vor.u32 %v1554, %v1558
  %v1561 = vshrl.u32 %v1502, 16
  %v1563 = vshll.u32 %v1502, 16
  %v1565 = vrot.slane %v1563, 1
  %v1566 = vor.u32 %v1561, %v1565
  %v1568 = vshrl.u32 %v1503, 16
  %v1570 = vshll.u32 %v1503, 16
  %v1572 = vrot.slane %v1570, 1
  %v1573 = vor.u32 %v1568, %v1572
  %v1575 = vshrl.u32 %v1504, 16
  %v1577 = vshll.u32 %v1504, 16
  %v1579 = vrot.slane %v1577, 1
  %v1580 = vor.u32 %v1575, %v1579
  %v1582 = vshrl.u32 %v1505, 16
  %v1584 = vshll.u32 %v1505, 16
  %v1586 = vrot.slane %v1584, 1
  %v1587 = vor.u32 %v1582, %v1586
  %v1589 = vshrl.u32 %v1506, 16
  %v1591 = vshll.u32 %v1506, 16
  %v1593 = vrot.slane %v1591, 1
  %v1594 = vor.u32 %v1589, %v1593
  %v1596 = vshrl.u32 %v1507, 16
  %v1598 = vshll.u32 %v1507, 16
  %v1600 = vrot.slane %v1598, 1
  %v1601 = vor.u32 %v1596, %v1600
  %v1603 = vshrl.u32 %v1508, 16
  %v1605 = vshll.u32 %v1508, 16
  %v1607 = vrot.slane %v1605, 1
  %v1608 = vor.u32 %v1603, %v1607
  %v1610 = vshrl.u32 %v1509, 16
  %v1612 = vshll.u32 %v1509, 16
  %v1614 = vrot.slane %v1612, 1
  %v1615 = vor.u32 %v1610, %v1614
  %v1617 = vshrl.u32 %v1510, 16
  %v1619 = vshll.u32 %v1510, 16
  %v1621 = vrot.slane %v1619, 1
  %v1622 = vor.u32 %v1617, %v1621
  %1623 = vrot.lane.b32.xlu0 %v1517, 56
  %v1624 = vpop.permute.xlu0 %1623
  %1625 = vrot.lane.b32.xlu0 %v1524, 56
  %v1626 = vpop.permute.xlu0 %1625
  %1627 = vrot.lane.b32.xlu0 %v1531, 56
  %v1628 = vpop.permute.xlu0 %1627
  %1629 = vrot.lane.b32.xlu0 %v1538, 56
  %v1630 = vpop.permute.xlu0 %1629
  %1631 = vrot.lane.b32.xlu0 %v1545, 56
  %v1632 = vpop.permute.xlu0 %1631
  %1633 = vrot.lane.b32.xlu0 %v1552, 56
  %v1634 = vpop.permute.xlu0 %1633
  %1635 = vrot.lane.b32.xlu0 %v1559, 56
  %v1636 = vpop.permute.xlu0 %1635
  %1637 = vrot.lane.b32.xlu0 %v1566, 56
  %v1638 = vpop.permute.xlu0 %1637
  %1639 = vrot.lane.b32.xlu0 %v1573, 56
  %v1640 = vpop.permute.xlu0 %1639
  %1641 = vrot.lane.b32.xlu0 %v1580, 56
  %v1642 = vpop.permute.xlu0 %1641
  %1643 = vrot.lane.b32.xlu0 %v1587, 56
  %v1644 = vpop.permute.xlu0 %1643
  %1645 = vrot.lane.b32.xlu0 %v1594, 56
  %v1646 = vpop.permute.xlu0 %1645
  %1647 = vrot.lane.b32.xlu0 %v1601, 56
  %v1648 = vpop.permute.xlu0 %1647
  %1649 = vrot.lane.b32.xlu0 %v1608, 56
  %v1650 = vpop.permute.xlu0 %1649
  %1651 = vrot.lane.b32.xlu0 %v1615, 56
  %v1652 = vpop.permute.xlu0 %1651
  %1653 = vrot.lane.b32.xlu0 %v1622, 56
  %v1654 = vpop.permute.xlu0 %1653
  %v1671 = vunpack.c.l.b16 %v679
  %v1672 = vunpack.c.l.b16 %v680
  %v1673 = vunpack.c.l.b16 %v681
  %v1674 = vunpack.c.l.b16 %v682
  %v1675 = vunpack.c.l.b16 %v683
  %v1676 = vunpack.c.l.b16 %v684
  %v1677 = vunpack.c.l.b16 %v685
  %v1678 = vunpack.c.l.b16 %v686
  %v1679 = vunpack.c.l.b16 %v687
  %v1680 = vunpack.c.l.b16 %v688
  %v1681 = vunpack.c.l.b16 %v689
  %v1682 = vunpack.c.l.b16 %v690
  %v1683 = vunpack.c.l.b16 %v691
  %v1684 = vunpack.c.l.b16 %v692
  %v1685 = vunpack.c.l.b16 %v693
  %v1686 = vunpack.c.l.b16 %v694
  %v1687 = vpack.c.b16 %v1479, %v1671
  %v1688 = vpack.c.b16 %v1480, %v1672
  %v1689 = vpack.c.b16 %v1481, %v1673
  %v1690 = vpack.c.b16 %v1482, %v1674
  %v1691 = vpack.c.b16 %v1483, %v1675
  %v1692 = vpack.c.b16 %v1484, %v1676
  %v1693 = vpack.c.b16 %v1485, %v1677
  %v1694 = vpack.c.b16 %v1486, %v1678
  %v1695 = vpack.c.b16 %v1487, %v1679
  %v1696 = vpack.c.b16 %v1488, %v1680
  %v1697 = vpack.c.b16 %v1489, %v1681
  %v1698 = vpack.c.b16 %v1490, %v1682
  %v1699 = vpack.c.b16 %v1491, %v1683
  %v1700 = vpack.c.b16 %v1492, %v1684
  %v1701 = vpack.c.b16 %v1493, %v1685
  %v1702 = vpack.c.b16 %v1494, %v1686
  %v1703 = vrot.slane %v1687, 1
  %v1704 = vrot.slane %v1688, 1
  %v1705 = vrot.slane %v1689, 1
  %v1706 = vrot.slane %v1690, 1
  %v1707 = vrot.slane %v1691, 1
  %v1708 = vrot.slane %v1692, 1
  %v1709 = vrot.slane %v1693, 1
  %v1710 = vrot.slane %v1694, 1
  %v1711 = vrot.slane %v1695, 1
  %v1712 = vrot.slane %v1696, 1
  %v1713 = vrot.slane %v1697, 1
  %v1714 = vrot.slane %v1698, 1
  %v1715 = vrot.slane %v1699, 1
  %v1716 = vrot.slane %v1700, 1
  %v1717 = vrot.slane %v1701, 1
  %v1718 = vrot.slane %v1702, 1
  %1719 = vrot.lane.b32.xlu0 %v1703, 64
  %v1720 = vpop.permute.xlu0 %1719
  %1721 = vrot.lane.b32.xlu0 %v1704, 64
  %v1722 = vpop.permute.xlu0 %1721
  %1723 = vrot.lane.b32.xlu0 %v1705, 64
  %v1724 = vpop.permute.xlu0 %1723
  %1725 = vrot.lane.b32.xlu0 %v1706, 64
  %v1726 = vpop.permute.xlu0 %1725
  %1727 = vrot.lane.b32.xlu0 %v1707, 64
  %v1728 = vpop.permute.xlu0 %1727
  %1729 = vrot.lane.b32.xlu0 %v1708, 64
  %v1730 = vpop.permute.xlu0 %1729
  %1731 = vrot.lane.b32.xlu0 %v1709, 64
  %v1732 = vpop.permute.xlu0 %1731
  %1733 = vrot.lane.b32.xlu0 %v1710, 64
  %v1734 = vpop.permute.xlu0 %1733
  %1735 = vrot.lane.b32.xlu0 %v1711, 64
  %v1736 = vpop.permute.xlu0 %1735
  %1737 = vrot.lane.b32.xlu0 %v1712, 64
  %v1738 = vpop.permute.xlu0 %1737
  %1739 = vrot.lane.b32.xlu0 %v1713, 64
  %v1740 = vpop.permute.xlu0 %1739
  %1741 = vrot.lane.b32.xlu0 %v1714, 64
  %v1742 = vpop.permute.xlu0 %1741
  %1743 = vrot.lane.b32.xlu0 %v1715, 64
  %v1744 = vpop.permute.xlu0 %1743
  %1745 = vrot.lane.b32.xlu0 %v1716, 64
  %v1746 = vpop.permute.xlu0 %1745
  %1747 = vrot.lane.b32.xlu0 %v1717, 64
  %v1748 = vpop.permute.xlu0 %1747
  %1749 = vrot.lane.b32.xlu0 %v1718, 64
  %v1750 = vpop.permute.xlu0 %1749
  %vm1751 = vcmask 64512
  %v1754 = vsel %vm1751, %v550, %v888
  %v1757 = vsel %vm1751, %v551, %v890
  %v1760 = vsel %vm1751, %v552, %v892
  %v1763 = vsel %vm1751, %v553, %v894
  %v1766 = vsel %vm1751, %v554, %v896
  %v1769 = vsel %vm1751, %v555, %v898
  %v1772 = vsel %vm1751, %v556, %v900
  %v1775 = vsel %vm1751, %v557, %v902
  %v1778 = vsel %vm1751, %v558, %v904
  %v1781 = vsel %vm1751, %v559, %v906
  %v1784 = vsel %vm1751, %v560, %v908
  %v1787 = vsel %vm1751, %v561, %v910
  %v1790 = vsel %vm1751, %v562, %v912
  %v1793 = vsel %vm1751, %v563, %v914
  %v1796 = vsel %vm1751, %v564, %v916
  %v1799 = vsel %vm1751, %v565, %v918
  %vm1800 = vcmask 130048
  %v1802 = vsel %vm1800, %v1754, %v984
  %v1804 = vsel %vm1800, %v1757, %v986
  %v1806 = vsel %vm1800, %v1760, %v988
  %v1808 = vsel %vm1800, %v1763, %v990
  %v1810 = vsel %vm1800, %v1766, %v992
  %v1812 = vsel %vm1800, %v1769, %v994
  %v1814 = vsel %vm1800, %v1772, %v996
  %v1816 = vsel %vm1800, %v1775, %v998
  %v1818 = vsel %vm1800, %v1778, %v1000
  %v1820 = vsel %vm1800, %v1781, %v1002
  %v1822 = vsel %vm1800, %v1784, %v1004
  %v1824 = vsel %vm1800, %v1787, %v1006
  %v1826 = vsel %vm1800, %v1790, %v1008
  %v1828 = vsel %vm1800, %v1793, %v1010
  %v1830 = vsel %vm1800, %v1796, %v1012
  %v1832 = vsel %vm1800, %v1799, %v1014
  %vm1833 = vcmask 195584
  %v1835 = vsel %vm1833, %v1802, %v1064
  %v1837 = vsel %vm1833, %v1804, %v1066
  %v1839 = vsel %vm1833, %v1806, %v1068
  %v1841 = vsel %vm1833, %v1808, %v1070
  %v1843 = vsel %vm1833, %v1810, %v1072
  %v1845 = vsel %vm1833, %v1812, %v1074
  %v1847 = vsel %vm1833, %v1814, %v1076
  %v1849 = vsel %vm1833, %v1816, %v1078
  %v1851 = vsel %vm1833, %v1818, %v1080
  %v1853 = vsel %vm1833, %v1820, %v1082
  %v1855 = vsel %vm1833, %v1822, %v1084
  %v1857 = vsel %vm1833, %v1824, %v1086
  %v1859 = vsel %vm1833, %v1826, %v1088
  %v1861 = vsel %vm1833, %v1828, %v1090
  %v1863 = vsel %vm1833, %v1830, %v1092
  %v1865 = vsel %vm1833, %v1832, %v1094
  %vm1866 = vcmask 261120
  %v1868 = vsel %vm1866, %v1835, %v1256
  %v1870 = vsel %vm1866, %v1837, %v1258
  %v1872 = vsel %vm1866, %v1839, %v1260
  %v1874 = vsel %vm1866, %v1841, %v1262
  %v1876 = vsel %vm1866, %v1843, %v1264
  %v1878 = vsel %vm1866, %v1845, %v1266
  %v1880 = vsel %vm1866, %v1847, %v1268
  %v1882 = vsel %vm1866, %v1849, %v1270
  %v1884 = vsel %vm1866, %v1851, %v1272
  %v1886 = vsel %vm1866, %v1853, %v1274
  %v1888 = vsel %vm1866, %v1855, %v1276
  %v1890 = vsel %vm1866, %v1857, %v1278
  %v1892 = vsel %vm1866, %v1859, %v1280
  %v1894 = vsel %vm1866, %v1861, %v1282
  %v1896 = vsel %vm1866, %v1863, %v1284
  %v1898 = vsel %vm1866, %v1865, %v1286
  %vm1899 = vcmask 326656
  %v1901 = vsel %vm1899, %v1868, %v1352
  %v1903 = vsel %vm1899, %v1870, %v1354
  %v1905 = vsel %vm1899, %v1872, %v1356
  %v1907 = vsel %vm1899, %v1874, %v1358
  %v1909 = vsel %vm1899, %v1876, %v1360
  %v1911 = vsel %vm1899, %v1878, %v1362
  %v1913 = vsel %vm1899, %v1880, %v1364
  %v1915 = vsel %vm1899, %v1882, %v1366
  %v1917 = vsel %vm1899, %v1884, %v1368
  %v1919 = vsel %vm1899, %v1886, %v1370
  %v1921 = vsel %vm1899, %v1888, %v1372
  %v1923 = vsel %vm1899, %v1890, %v1374
  %v1925 = vsel %vm1899, %v1892, %v1376
  %v1927 = vsel %vm1899, %v1894, %v1378
  %v1929 = vsel %vm1899, %v1896, %v1380
  %v1931 = vsel %vm1899, %v1898, %v1382
  %vm1932 = vcmask 392192
  %v1934 = vsel %vm1932, %v1901, %v1432
  %v1936 = vsel %vm1932, %v1903, %v1434
  %v1938 = vsel %vm1932, %v1905, %v1436
  %v1940 = vsel %vm1932, %v1907, %v1438
  %v1942 = vsel %vm1932, %v1909, %v1440
  %v1944 = vsel %vm1932, %v1911, %v1442
  %v1946 = vsel %vm1932, %v1913, %v1444
  %v1948 = vsel %vm1932, %v1915, %v1446
  %v1950 = vsel %vm1932, %v1917, %v1448
  %v1952 = vsel %vm1932, %v1919, %v1450
  %v1954 = vsel %vm1932, %v1921, %v1452
  %v1956 = vsel %vm1932, %v1923, %v1454
  %v1958 = vsel %vm1932, %v1925, %v1456
  %v1960 = vsel %vm1932, %v1927, %v1458
  %v1962 = vsel %vm1932, %v1929, %v1460
  %v1964 = vsel %vm1932, %v1931, %v1462
  %vm1965 = vcmask 457728
  %v1967 = vsel %vm1965, %v1934, %v1624
  %v1969 = vsel %vm1965, %v1936, %v1626
  %v1971 = vsel %vm1965, %v1938, %v1628
  %v1973 = vsel %vm1965, %v1940, %v1630
  %v1975 = vsel %vm1965, %v1942, %v1632
  %v1977 = vsel %vm1965, %v1944, %v1634
  %v1979 = vsel %vm1965, %v1946, %v1636
  %v1981 = vsel %vm1965, %v1948, %v1638
  %v1983 = vsel %vm1965, %v1950, %v1640
  %v1985 = vsel %vm1965, %v1952, %v1642
  %v1987 = vsel %vm1965, %v1954, %v1644
  %v1989 = vsel %vm1965, %v1956, %v1646
  %v1991 = vsel %vm1965, %v1958, %v1648
  %v1993 = vsel %vm1965, %v1960, %v1650
  %v1995 = vsel %vm1965, %v1962, %v1652
  %v1997 = vsel %vm1965, %v1964, %v1654
  %vm1998 = vcmask 523264
  %v2000 = vsel %vm1998, %v1967, %v1720
  %v2002 = vsel %vm1998, %v1969, %v1722
  %v2004 = vsel %vm1998, %v1971, %v1724
  %v2006 = vsel %vm1998, %v1973, %v1726
  %v2008 = vsel %vm1998, %v1975, %v1728
  %v2010 = vsel %vm1998, %v1977, %v1730
  %v2012 = vsel %vm1998, %v1979, %v1732
  %v2014 = vsel %vm1998, %v1981, %v1734
  %v2016 = vsel %vm1998, %v1983, %v1736
  %v2018 = vsel %vm1998, %v1985, %v1738
  %v2020 = vsel %vm1998, %v1987, %v1740
  %v2022 = vsel %vm1998, %v1989, %v1742
  %v2024 = vsel %vm1998, %v1991, %v1744
  %v2026 = vsel %vm1998, %v1993, %v1746
  %v2028 = vsel %vm1998, %v1995, %v1748
  %v2030 = vsel %vm1998, %v1997, %v1750
  %v2031 = vld [vmem:[%s3] sm:$0xf]
  %v2032 = vld [vmem:[%s3 + $0x4] sm:$0xf]
  %v2033 = vld [vmem:[%s3 + $0x8] sm:$0xf]
  %v2034 = vld [vmem:[%s3 + $0xc] sm:$0xf]
  %v2035 = vld [vmem:[%s3 + $0x10] sm:$0xf]
  %v2036 = vld [vmem:[%s3 + $0x14] sm:$0xf]
  %v2037 = vld [vmem:[%s3 + $0x18] sm:$0xf]
  %v2038 = vld [vmem:[%s3 + $0x1c] sm:$0xf]
  %v2039 = vld [vmem:[%s3 + $0x20] sm:$0xf]
  %v2056 = vunpack.c.l.b16 %v2000
  %v2057 = vunpack.c.l.b16 %v2002
  %v2058 = vunpack.c.l.b16 %v2004
  %v2059 = vunpack.c.l.b16 %v2006
  %v2060 = vunpack.c.l.b16 %v2008
  %v2061 = vunpack.c.l.b16 %v2010
  %v2062 = vunpack.c.l.b16 %v2012
  %v2063 = vunpack.c.l.b16 %v2014
  %v2064 = vunpack.c.l.b16 %v2016
  %v2065 = vunpack.c.l.b16 %v2018
  %v2066 = vunpack.c.l.b16 %v2020
  %v2067 = vunpack.c.l.b16 %v2022
  %v2068 = vunpack.c.l.b16 %v2024
  %v2069 = vunpack.c.l.b16 %v2026
  %v2070 = vunpack.c.l.b16 %v2028
  %v2071 = vunpack.c.l.b16 %v2030
  %v2072 = vpack.c.b16 %v2057, %v2056
  %v2073 = vpack.c.b16 %v2059, %v2058
  %v2074 = vpack.c.b16 %v2061, %v2060
  %v2075 = vpack.c.b16 %v2063, %v2062
  %v2076 = vpack.c.b16 %v2065, %v2064
  %v2077 = vpack.c.b16 %v2067, %v2066
  %v2078 = vpack.c.b16 %v2069, %v2068
  %v2079 = vpack.c.b16 %v2071, %v2070
  %v2089 = vunpack.c.l.b16 %v2031
  %v2090 = vunpack.c.l.b16 %v2032
  %v2091 = vunpack.c.l.b16 %v2033
  %v2092 = vunpack.c.l.b16 %v2034
  %v2093 = vunpack.c.l.b16 %v2035
  %v2094 = vunpack.c.l.b16 %v2036
  %v2095 = vunpack.c.l.b16 %v2037
  %v2096 = vunpack.c.l.b16 %v2038
  %v2097 = vunpack.c.l.b16 %v2039
  %v2098 = vpack.c.b16 %v2090, %v2089
  %v2099 = vpack.c.b16 %v2092, %v2091
  %v2100 = vpack.c.b16 %v2094, %v2093
  %v2101 = vpack.c.b16 %v2096, %v2095
  %v2102 = vpack.c.b16 %v2097, %v2097
  %vm2107 = vcmask 588800
  %v2109 = vsel %vm2107, %v2072, 0
  %v2112 = vsel %vm2107, %v2073, 0
  %v2115 = vsel %vm2107, %v2074, 0
  %v2118 = vsel %vm2107, %v2075, 0
  %v2121 = vsel %vm2107, %v2076, 0
  %v2124 = vsel %vm2107, %v2077, 0
  %v2127 = vsel %vm2107, %v2078, 0
  %v2130 = vsel %vm2107, %v2079, 0
  %vm2132 = vcmask 1043456
  %v2134 = vsel %vm2132, %v2102, 0
  %2136 = vmatprep.subr.bf16.mxu0 0
  %2137 = vmatpush1.bf16.msra.mxu0 %v2098
  %2138 = vmatprep.subr.bf16.mxu0 0
  %2139 = vmatpush1.bf16.msra.mxu0 %v2099
  %2140 = vmatprep.subr.bf16.mxu0 0
  %2141 = vmatpush1.bf16.msra.mxu0 %v2100
  %2142 = vmatprep.subr.bf16.mxu0 0
  %2143 = vmatpush1.bf16.msra.mxu0 %v2101
  %2144 = vmatprep.subr.bf16.mxu0 0
  %2145 = vmatpush1.bf16.msra.mxu0 %v2134
  %2146 = vmatprep.subr.bf16.mxu0 0
  %2147 = vmatpush1.bf16.msra.mxu0 0
  %2148 = vmatprep.subr.bf16.mxu0 0
  %2149 = vmatpush1.bf16.msra.mxu0 0
  %2150 = vmatprep.subr.bf16.mxu0 0
  %2151 = vmatpush1.bf16.msra.mxu0 0
  %2152 = vmatprep.subr.bf16.mxu0 0
  %2153 = vmatpush1.bf16.msra.mxu0 0
  %2154 = vmatprep.subr.bf16.mxu0 0
  %2155 = vmatpush1.bf16.msra.mxu0 0
  %2156 = vmatprep.subr.bf16.mxu0 0
  %2157 = vmatpush1.bf16.msra.mxu0 0
  %2158 = vmatprep.subr.bf16.mxu0 0
  %2159 = vmatpush1.bf16.msra.mxu0 0
  %2160 = vmatprep.subr.bf16.mxu0 0
  %2161 = vmatpush1.bf16.msra.mxu0 0
  %2162 = vmatprep.subr.bf16.mxu0 0
  %2163 = vmatpush1.bf16.msra.mxu0 0
  %2164 = vmatprep.subr.bf16.mxu0 0
  %2165 = vmatpush1.bf16.msra.mxu0 0
  %2166 = vmatprep.subr.bf16.mxu0 0
  %2167 = vmatpush1.bf16.msra.mxu0 0
  %2168 = vmatprep.mubr.bf16.mxu0 0
  %2169 = vmatmul.mubr.bf16.gmra.mrb[0].mxu0 %v2109
  %v2170 = vpop.f32.mrb[0].mxu0
  %v2171 = vadd.f32 0.0, %v2170
  %v2172 = vpop.f32.mrb[0].mxu0
  %v2173 = vpop.f32.mrb[0].mxu0
  %v2174 = vadd.f32 0.0, %v2173
  %v2175 = vpop.f32.mrb[0].mxu0
  %2176 = vmatprep.mubr.bf16.mxu0 0
  %2177 = vmatmul.mubr.bf16.gmra.mrb[0].mxu0 %v2112
  %v2178 = vpop.f32.mrb[0].mxu0
  %v2179 = vadd.f32 0.0, %v2178
  %v2180 = vpop.f32.mrb[0].mxu0
  %v2181 = vpop.f32.mrb[0].mxu0
  %v2182 = vadd.f32 0.0, %v2181
  %v2183 = vpop.f32.mrb[0].mxu0
  %2184 = vmatprep.mubr.bf16.mxu0 0
  %2185 = vmatmul.mubr.bf16.gmra.mrb[0].mxu0 %v2115
  %v2186 = vpop.f32.mrb[0].mxu0
  %v2187 = vadd.f32 0.0, %v2186
  %v2188 = vpop.f32.mrb[0].mxu0
  %v2189 = vpop.f32.mrb[0].mxu0
  %v2190 = vadd.f32 0.0, %v2189
  %v2191 = vpop.f32.mrb[0].mxu0
  %2192 = vmatprep.mubr.bf16.mxu0 0
  %2193 = vmatmul.mubr.bf16.gmra.mrb[0].mxu0 %v2118
  %v2194 = vpop.f32.mrb[0].mxu0
  %v2195 = vadd.f32 0.0, %v2194
  %v2196 = vpop.f32.mrb[0].mxu0
  %v2197 = vpop.f32.mrb[0].mxu0
  %v2198 = vadd.f32 0.0, %v2197
  %v2199 = vpop.f32.mrb[0].mxu0
  %2200 = vmatprep.mubr.bf16.mxu0 0
  %2201 = vmatmul.mubr.bf16.gmra.mrb[0].mxu0 %v2121
  %v2202 = vpop.f32.mrb[0].mxu0
  %v2203 = vadd.f32 0.0, %v2202
  %v2204 = vpop.f32.mrb[0].mxu0
  %v2205 = vpop.f32.mrb[0].mxu0
  %v2206 = vadd.f32 0.0, %v2205
  %v2207 = vpop.f32.mrb[0].mxu0
  %2208 = vmatprep.mubr.bf16.mxu0 0
  %2209 = vmatmul.mubr.bf16.gmra.mrb[0].mxu0 %v2124
  %v2210 = vpop.f32.mrb[0].mxu0
  %v2211 = vadd.f32 0.0, %v2210
  %v2212 = vpop.f32.mrb[0].mxu0
  %v2213 = vpop.f32.mrb[0].mxu0
  %v2214 = vadd.f32 0.0, %v2213
  %v2215 = vpop.f32.mrb[0].mxu0
  %2216 = vmatprep.mubr.bf16.mxu0 0
  %2217 = vmatmul.mubr.bf16.gmra.mrb[0].mxu0 %v2127
  %v2218 = vpop.f32.mrb[0].mxu0
  %v2219 = vadd.f32 0.0, %v2218
  %v2220 = vpop.f32.mrb[0].mxu0
  %v2221 = vpop.f32.mrb[0].mxu0
  %v2222 = vadd.f32 0.0, %v2221
  %v2223 = vpop.f32.mrb[0].mxu0
  %2224 = vmatprep.mubr.bf16.mxu0 0
  %2225 = vmatmul.mubr.bf16.gmra.mrb[0].mxu0 %v2130
  %v2226 = vpop.f32.mrb[0].mxu0
  %v2227 = vadd.f32 0.0, %v2226
  %v2228 = vpop.f32.mrb[0].mxu0
  %v2229 = vpop.f32.mrb[0].mxu0
  %v2230 = vadd.f32 0.0, %v2229
  %v2231 = vpop.f32.mrb[0].mxu0
  %2232 = vdwg.mxu0
  %v2233 = vpack.c.bf16 %v2171, %v2171
  %v2234 = vpack.c.bf16 %v2174, %v2174
  %v2235 = vpack.c.bf16 %v2179, %v2179
  %v2236 = vpack.c.bf16 %v2182, %v2182
  %v2237 = vpack.c.bf16 %v2187, %v2187
  %v2238 = vpack.c.bf16 %v2190, %v2190
  %v2239 = vpack.c.bf16 %v2195, %v2195
  %v2240 = vpack.c.bf16 %v2198, %v2198
  %v2241 = vpack.c.bf16 %v2203, %v2203
  %v2242 = vpack.c.bf16 %v2206, %v2206
  %v2243 = vpack.c.bf16 %v2211, %v2211
  %v2244 = vpack.c.bf16 %v2214, %v2214
  %v2245 = vpack.c.bf16 %v2219, %v2219
  %v2246 = vpack.c.bf16 %v2222, %v2222
  %v2247 = vpack.c.bf16 %v2227, %v2227
  %v2248 = vpack.c.bf16 %v2230, %v2230
  %2249 = vst.msk [vmem:[%s4] sm:$0xf] %vm21, %v2233
  %2250 = vst.msk [vmem:[%s4 + $0x4] sm:$0xf] %vm21, %v2234
  %2251 = vst.msk [vmem:[%s4 + $0x8] sm:$0xf] %vm21, %v2235
  %2252 = vst.msk [vmem:[%s4 + $0xc] sm:$0xf] %vm21, %v2236
  %2253 = vst.msk [vmem:[%s4 + $0x10] sm:$0xf] %vm21, %v2237
  %2254 = vst.msk [vmem:[%s4 + $0x14] sm:$0xf] %vm21, %v2238
  %2255 = vst.msk [vmem:[%s4 + $0x18] sm:$0xf] %vm21, %v2239
  %2256 = vst.msk [vmem:[%s4 + $0x1c] sm:$0xf] %vm21, %v2240
  %2257 = vst.msk [vmem:[%s4 + $0x20] sm:$0xf] %vm21, %v2241
  %2258 = vst.msk [vmem:[%s4 + $0x24] sm:$0xf] %vm21, %v2242
  %2259 = vst.msk [vmem:[%s4 + $0x28] sm:$0xf] %vm21, %v2243
  %2260 = vst.msk [vmem:[%s4 + $0x2c] sm:$0xf] %vm21, %v2244
  %2261 = vst.msk [vmem:[%s4 + $0x30] sm:$0xf] %vm21, %v2245
  %2262 = vst.msk [vmem:[%s4 + $0x34] sm:$0xf] %vm21, %v2246
  %2263 = vst.msk [vmem:[%s4 + $0x38] sm:$0xf] %vm21, %v2247
  %2264 = vst.msk [vmem:[%s4 + $0x3c] sm:$0xf] %vm21, %v2248
  %v2265 = vsel %vm1751, %v2171, 0.0
  %v2266 = vsel %vm1751, %v2174, 0.0
  %v2267 = vadd.f32 %v2265, %v2266
  %v2268 = vsel %vm1751, %v2179, 0.0
  %v2269 = vadd.f32 %v2267, %v2268
  %v2270 = vsel %vm1751, %v2182, 0.0
  %v2271 = vadd.f32 %v2269, %v2270
  %v2272 = vsel %vm1751, %v2187, 0.0
  %v2273 = vadd.f32 %v2271, %v2272
  %v2274 = vsel %vm1751, %v2190, 0.0
  %v2275 = vadd.f32 %v2273, %v2274
  %v2276 = vsel %vm1751, %v2195, 0.0
  %v2277 = vadd.f32 %v2275, %v2276
  %v2278 = vsel %vm1751, %v2198, 0.0
  %v2279 = vadd.f32 %v2277, %v2278
  %v2280 = vsel %vm1751, %v2203, 0.0
  %v2281 = vadd.f32 %v2279, %v2280
  %v2282 = vsel %vm1751, %v2206, 0.0
  %v2283 = vadd.f32 %v2281, %v2282
  %v2284 = vsel %vm1751, %v2211, 0.0
  %v2285 = vadd.f32 %v2283, %v2284
  %v2286 = vsel %vm1751, %v2214, 0.0
  %v2287 = vadd.f32 %v2285, %v2286
  %v2288 = vsel %vm1751, %v2219, 0.0
  %v2289 = vadd.f32 %v2287, %v2288
  %v2290 = vsel %vm1751, %v2222, 0.0
  %v2291 = vadd.f32 %v2289, %v2290
  %v2292 = vsel %vm1751, %v2227, 0.0
  %v2293 = vadd.f32 %v2291, %v2292
  %v2294 = vsel %vm1751, %v2230, 0.0
  %v2295 = vadd.f32 %v2293, %v2294
  %v2296 = vrot.slane %v2295, 4
  %v2297 = vadd.f32 %v2295, %v2296
  %v2298 = vrot.slane %v2297, 2
  %v2299 = vadd.f32 %v2297, %v2298
  %v2300 = vrot.slane %v2299, 1
  %v2301 = vadd.f32 %v2299, %v2300
  %2302 = vst.msk [vmem:[%s5] sm:$0x1] %vm23, %v2301
  %v2303 = vmul.f32 %v2171, %v2171
  %v2304 = vmul.f32 %v2174, %v2174
  %v2305 = vmul.f32 %v2179, %v2179
  %v2306 = vmul.f32 %v2182, %v2182
  %v2307 = vmul.f32 %v2187, %v2187
  %v2308 = vmul.f32 %v2190, %v2190
  %v2309 = vmul.f32 %v2195, %v2195
  %v2310 = vmul.f32 %v2198, %v2198
  %v2311 = vmul.f32 %v2203, %v2203
  %v2312 = vmul.f32 %v2206, %v2206
  %v2313 = vmul.f32 %v2211, %v2211
  %v2314 = vmul.f32 %v2214, %v2214
  %v2315 = vmul.f32 %v2219, %v2219
  %v2316 = vmul.f32 %v2222, %v2222
  %v2317 = vmul.f32 %v2227, %v2227
  %v2318 = vmul.f32 %v2230, %v2230
  %v2319 = vsel %vm1751, %v2303, 0.0
  %v2320 = vsel %vm1751, %v2304, 0.0
  %v2321 = vadd.f32 %v2319, %v2320
  %v2322 = vsel %vm1751, %v2305, 0.0
  %v2323 = vadd.f32 %v2321, %v2322
  %v2324 = vsel %vm1751, %v2306, 0.0
  %v2325 = vadd.f32 %v2323, %v2324
  %v2326 = vsel %vm1751, %v2307, 0.0
  %v2327 = vadd.f32 %v2325, %v2326
  %v2328 = vsel %vm1751, %v2308, 0.0
  %v2329 = vadd.f32 %v2327, %v2328
  %v2330 = vsel %vm1751, %v2309, 0.0
  %v2331 = vadd.f32 %v2329, %v2330
  %v2332 = vsel %vm1751, %v2310, 0.0
  %v2333 = vadd.f32 %v2331, %v2332
  %v2334 = vsel %vm1751, %v2311, 0.0
  %v2335 = vadd.f32 %v2333, %v2334
  %v2336 = vsel %vm1751, %v2312, 0.0
  %v2337 = vadd.f32 %v2335, %v2336
  %v2338 = vsel %vm1751, %v2313, 0.0
  %v2339 = vadd.f32 %v2337, %v2338
  %v2340 = vsel %vm1751, %v2314, 0.0
  %v2341 = vadd.f32 %v2339, %v2340
  %v2342 = vsel %vm1751, %v2315, 0.0
  %v2343 = vadd.f32 %v2341, %v2342
  %v2344 = vsel %vm1751, %v2316, 0.0
  %v2345 = vadd.f32 %v2343, %v2344
  %v2346 = vsel %vm1751, %v2317, 0.0
  %v2347 = vadd.f32 %v2345, %v2346
  %v2348 = vsel %vm1751, %v2318, 0.0
  %v2349 = vadd.f32 %v2347, %v2348
  %v2350 = vrot.slane %v2349, 4
  %v2351 = vadd.f32 %v2349, %v2350
  %v2352 = vrot.slane %v2351, 2
  %v2353 = vadd.f32 %v2351, %v2352
  %v2354 = vrot.slane %v2353, 1
  %v2355 = vadd.f32 %v2353, %v2354
  %2356 = vst.msk [vmem:[%s6] sm:$0x1] %vm23, %v2355
  // Predicated region
  $region18: #{basic_block_a.4} parent=0 // pred_check
    _
  $region19: #{basic_block_a.4} parent=0 // pred_check_branch
    %2358 = sbr.rel (0) target = $region21
  $region20: #{basic_block_a.4} parent=0 // pred_region
    _
  $region21: #{basic_block_a.4} parent=0 // pred_fallthru
    _
  // Predicated region
  $region22: #{basic_block_a.4} parent=0 // pred_check
    _
  $region23: #{basic_block_a.4} parent=0 // pred_check_branch
    %2360 = sbr.rel (0) target = $region25
  $region24: #{basic_block_a.4} parent=0 // pred_region
    _
  $region25: #{basic_block_a.4} parent=0 // pred_fallthru
    _
  // Predicated region
  $region26: #{basic_block_a.4} parent=0 // pred_check
    _
  $region27: #{basic_block_a.4} parent=0 // pred_check_branch
    %2362 = sbr.rel (0) target = $region29
  $region28: #{basic_block_a.4} parent=0 // pred_region
    _
  $region29: #{basic_block_a.4} parent=0 // pred_fallthru
    _
  // Predicated region
  $region30: #{basic_block_a.4} parent=0 // pred_check
    _
  $region31: #{basic_block_a.4} parent=0 // pred_check_branch
    %2364 = sbr.rel (0) target = $region33
  $region32: #{basic_block_a.4} parent=0 // pred_region
    _
  $region33: #{basic_block_a.4} parent=0 // pred_fallthru
    _
  // Predicated region
  $region34: #{basic_block_a.4} parent=0 // pred_check
    _
  $region35: #{basic_block_a.4} parent=0 // pred_check_branch
    %2366 = sbr.rel (0) target = $region37
  $region36: #{basic_block_a.4} parent=0 // pred_region
    _
  $region37: #{basic_block_a.4} parent=0 // pred_fallthru
    _
  // Predicated region
  $region38: #{basic_block_a.4} parent=0 // pred_check
    _
  $region39: #{basic_block_a.4} parent=0 // pred_check_branch
    %2368 = sbr.rel (0) target = $region41
  $region40: #{basic_block_a.4} parent=0 // pred_region
    _
  $region41: #{basic_block_a.4} parent=0 // pred_fallthru
    _

</llo_original>
